<compile_context>
chip_gen: v5e
topology: v5e:2x2
jax: 0.10.0
libtpu: 0.0.40
codegen_flags: <defaults>
</compile_context>

<pallas_src>
import functools
import math

import jax
import jax.numpy as jnp
from jax.experimental import pallas as pl
from jax.experimental.pallas import tpu as pltpu


def fcca_kernel(x_ref, w1_ref, b1_ref, w2_ref, b2_ref, w3_ref, b3_ref, o_ref,
                *, matmul_dtype=jnp.float32):
    """One batch-tile of the full 3-layer MLP (matmuls + bias + ReLU fused)."""
    x = x_ref[...].astype(matmul_dtype)
    h = jnp.dot(x, w1_ref[...].astype(matmul_dtype),
                preferred_element_type=jnp.float32) + b1_ref[...]
    h = jnp.maximum(h, 0.0)                                   # activation_fc = relu
    h = jnp.dot(h.astype(matmul_dtype), w2_ref[...].astype(matmul_dtype),
                preferred_element_type=jnp.float32) + b2_ref[...]
    h = jnp.maximum(h, 0.0)
    out = jnp.dot(h.astype(matmul_dtype), w3_ref[...].astype(matmul_dtype),
                  preferred_element_type=jnp.float32) + b3_ref[...]
    o_ref[...] = out.astype(o_ref.dtype)


def fcca_reference(x, params):
    """Pure-JAX reference (also the small-batch fast path)."""
    w1, b1, w2, b2, w3, b3 = params
    h = jnp.maximum(x @ w1 + b1, 0.0)
    h = jnp.maximum(h @ w2 + b2, 0.0)
    return h @ w3 + b3


def _num_tensorcores():
    """Best-effort TensorCores-per-chip query; defaults to 1 (v5e/v6e)."""
    n = 1
    try:
        info = pltpu.get_tpu_info()
        for attr in ("num_cores", "num_tensorcores", "tensor_cores_per_chip",
                     "cores_per_chip"):
            v = getattr(info, attr, None)
            if isinstance(v, int) and v > 0:
                n = v
                break
    except Exception:
        pass
    if n == 1:
        try:
            if "v7" in jax.devices()[0].device_kind.lower():
                n = 2
        except Exception:
            pass
    return n


def _choose_batch_tile(B, tb_max, num_cores):
    """Largest legal batch tile; split only when a 2-TC chip can use it."""
    if B <= tb_max:
        if num_cores >= 2:
            tb = -(-B // num_cores)                 # ceil(B / num_cores)
            tb = max(8, ((tb + 7) // 8) * 8)        # sublane multiple of 8
            if tb < B:
                return tb                           # 2 balanced steps for 2 TCs
        return B                                    # one full-batch block
    return max(8, (tb_max // 8) * 8)                # many big steps


def fcca_forward(x, params, *, tb=8192, matmul_dtype=jnp.float32,
                 out_dtype=None, min_pallas_batch=1024):
    """Run the FCCA forward pass. x: (B, input_dim) float32 (or 1-D, unsqueezed)."""
    w1, b1, w2, b2, w3, b3 = params
    if x.ndim == 1:                                  # mirrors FCCA._format
        x = x[None, :]
    B, d_in = x.shape
    h1 = w1.shape[1]
    h2 = w2.shape[1]
    d_out = w3.shape[1]
    out_dtype = jnp.float32 if out_dtype is None else out_dtype

    # Small batches: pallas_call fixed cost (launch + DMA setup + grid-step
    # overhead) loses to the XLA-fused reference for a few-hundred-KFLOP job.
    if B < min_pallas_batch:
        return fcca_reference(x, params).astype(out_dtype)

    num_cores = _num_tensorcores()
    tb_eff = _choose_batch_tile(B, tb, num_cores)
    grid = (pl.cdiv(B, tb_eff),)                     # ragged last block is masked
    kernel = functools.partial(fcca_kernel, matmul_dtype=matmul_dtype)

    return pl.pallas_call(
        kernel,
        out_shape=jax.ShapeDtypeStruct((B, d_out), out_dtype),
        grid_spec=pltpu.PrefetchScalarGridSpec(
            num_scalar_prefetch=0,
            grid=grid,
            in_specs=[
                pl.BlockSpec((tb_eff, d_in), lambda i: (i, 0)),   # x tile
                pl.BlockSpec((d_in, h1), lambda i: (0, 0)),       # W1
                pl.BlockSpec((1, h1), lambda i: (0, 0)),          # b1
                pl.BlockSpec((h1, h2), lambda i: (0, 0)),         # W2
                pl.BlockSpec((1, h2), lambda i: (0, 0)),          # b2
                pl.BlockSpec((h2, d_out), lambda i: (0, 0)),      # W3
                pl.BlockSpec((1, d_out), lambda i: (0, 0)),       # b3
            ],
            out_specs=pl.BlockSpec((tb_eff, d_out), lambda i: (i, 0)),
        ),
        compiler_params=pltpu.CompilerParams(
            dimension_semantics=("parallel",),
        ),
    )(x, w1, b1, w2, b2, w3, b3)


def init_fcca_params(key, input_dim, hidden_dims, output_dim):
    """Deterministic init matching nn.Linear's default U(-1/sqrt(fan_in), 1/sqrt(fan_in))."""
    dims = [input_dim] + list(hidden_dims) + [sum(output_dim)]
    params = []
    for i in range(len(dims) - 1):
        fan_in, fan_out = dims[i], dims[i + 1]
        bound = 1.0 / math.sqrt(fan_in)
        key, kw, kb = jax.random.split(key, 3)
        w = jax.random.uniform(kw, (fan_in, fan_out), jnp.float32, -bound, bound)
        b = jax.random.uniform(kb, (1, fan_out), jnp.float32, -bound, bound)
        params += [w, b]
    return tuple(params)


if __name__ == "__main__":
    key = jax.random.PRNGKey(0)

    # Module config: input_dim=(8,), hidden_dims=(32, 32), output_dim=(3, 3)
    input_dim = 8
    hidden_dims = (32, 32)
    output_dim = (3, 3)      # logits split later by split_logits; forward returns sum = 6
    # TODO(synk): split_logits / Categorical sampling heads are host-side
    # post-processing of the forward logits and are not part of this kernel.

    kp, kx1, kx2 = jax.random.split(key, 3)
    params = init_fcca_params(kp, input_dim, hidden_dims, output_dim)

    # Case 1: default path (big enough batch to take the Pallas route;
    # single or dual full-batch blocks depending on TC count).
    batch1 = 2048
    x1 = jax.random.normal(kx1, (batch1, input_dim), jnp.float32)
    out1 = jax.block_until_ready(fcca_forward(x1, params))
    ref1 = fcca_reference(x1, params)
    assert out1.shape == (batch1, sum(output_dim))
    assert jnp.allclose(out1, ref1, atol=1e-5, rtol=1e-5)

    # Case 2: forced multi-step grid with a ragged last block (1000 = 512 + 488)
    # to exercise Pallas edge-block masking on real hardware.
    batch2 = 1000
    x2 = jax.random.normal(kx2, (batch2, input_dim), jnp.float32)
    out2 = jax.block_until_ready(
        fcca_forward(x2, params, tb=512, min_pallas_batch=0))
    ref2 = fcca_reference(x2, params)
    assert out2.shape == (batch2, sum(output_dim))
    assert jnp.allclose(out2, ref2, atol=1e-5, rtol=1e-5)

    print("KERNEL_OK")
</pallas_src>

<mosaic_0001>
module attributes {stable_mosaic.version = 11 : i64} {
  func.func @fcca_kernel(%arg0: i32, %arg1: memref<2048x8xf32, #tpu.memory_space<vmem>>, %arg2: memref<8x32xf32, #tpu.memory_space<vmem>>, %arg3: memref<1x32xf32, #tpu.memory_space<vmem>>, %arg4: memref<32x32xf32, #tpu.memory_space<vmem>>, %arg5: memref<1x32xf32, #tpu.memory_space<vmem>>, %arg6: memref<32x6xf32, #tpu.memory_space<vmem>>, %arg7: memref<1x6xf32, #tpu.memory_space<vmem>>, %arg8: memref<2048x6xf32, #tpu.memory_space<vmem>>) attributes {dimension_semantics = [#tpu.dimension_semantics<parallel>], iteration_bounds = array<i64: 1>, scalar_prefetch = 0 : i64, scratch_operands = 0 : i64, tpu.core_type = #tpu.core_type<tc>, window_params = [{transform_indices = @transform_0, window_bounds = array<i64: 2048, 8>}, {pipeline_mode = #tpu.pipeline_mode<synchronous>, transform_indices = @transform_1, window_bounds = array<i64: 8, 32>}, {pipeline_mode = #tpu.pipeline_mode<synchronous>, transform_indices = @transform_2, window_bounds = array<i64: 1, 32>}, {pipeline_mode = #tpu.pipeline_mode<synchronous>, transform_indices = @transform_3, window_bounds = array<i64: 32, 32>}, {pipeline_mode = #tpu.pipeline_mode<synchronous>, transform_indices = @transform_4, window_bounds = array<i64: 1, 32>}, {pipeline_mode = #tpu.pipeline_mode<synchronous>, transform_indices = @transform_5, window_bounds = array<i64: 32, 6>}, {pipeline_mode = #tpu.pipeline_mode<synchronous>, transform_indices = @transform_6, window_bounds = array<i64: 1, 6>}, {transform_indices = @transform_7, window_bounds = array<i64: 2048, 6>}]} {
    %c0 = arith.constant 0 : index
    %c0_0 = arith.constant 0 : index
    %0 = vector.load %arg1[%c0, %c0_0] : memref<2048x8xf32, #tpu.memory_space<vmem>>, vector<2048x8xf32>
    %c0_1 = arith.constant 0 : index
    %c0_2 = arith.constant 0 : index
    %1 = vector.load %arg2[%c0_1, %c0_2] : memref<8x32xf32, #tpu.memory_space<vmem>>, vector<8x32xf32>
    %cst = arith.constant dense<0.000000e+00> : vector<2048x32xf32>
    %2 = tpu.matmul %0, %1, %cst {dimension_numbers = #tpu.dot_dimension_numbers<[1], [0], [0], [1], [0, 0, 1, 1], [], []>} : vector<2048x8xf32>, vector<8x32xf32>, vector<2048x32xf32> -> vector<2048x32xf32>
    %c0_3 = arith.constant 0 : index
    %c0_4 = arith.constant 0 : index
    %3 = vector.load %arg3[%c0_3, %c0_4] : memref<1x32xf32, #tpu.memory_space<vmem>>, vector<1x32xf32>
    %4 = vector.broadcast %3 : vector<1x32xf32> to vector<2048x32xf32>
    %5 = arith.addf %2, %4 : vector<2048x32xf32>
    %cst_5 = arith.constant 0.000000e+00 : f32
    %6 = vector.broadcast %cst_5 : f32 to vector<2048x32xf32>
    %7 = arith.maximumf %5, %6 : vector<2048x32xf32>
    %c0_6 = arith.constant 0 : index
    %c0_7 = arith.constant 0 : index
    %8 = vector.load %arg4[%c0_6, %c0_7] : memref<32x32xf32, #tpu.memory_space<vmem>>, vector<32x32xf32>
    %cst_8 = arith.constant dense<0.000000e+00> : vector<2048x32xf32>
    %9 = tpu.matmul %7, %8, %cst_8 {dimension_numbers = #tpu.dot_dimension_numbers<[1], [0], [0], [1], [0, 0, 1, 1], [], []>} : vector<2048x32xf32>, vector<32x32xf32>, vector<2048x32xf32> -> vector<2048x32xf32>
    %c0_9 = arith.constant 0 : index
    %c0_10 = arith.constant 0 : index
    %10 = vector.load %arg5[%c0_9, %c0_10] : memref<1x32xf32, #tpu.memory_space<vmem>>, vector<1x32xf32>
    %11 = vector.broadcast %10 : vector<1x32xf32> to vector<2048x32xf32>
    %12 = arith.addf %9, %11 : vector<2048x32xf32>
    %cst_11 = arith.constant 0.000000e+00 : f32
    %13 = vector.broadcast %cst_11 : f32 to vector<2048x32xf32>
    %14 = arith.maximumf %12, %13 : vector<2048x32xf32>
    %c0_12 = arith.constant 0 : index
    %c0_13 = arith.constant 0 : index
    %15 = vector.load %arg6[%c0_12, %c0_13] : memref<32x6xf32, #tpu.memory_space<vmem>>, vector<32x6xf32>
    %cst_14 = arith.constant dense<0.000000e+00> : vector<2048x6xf32>
    %16 = tpu.matmul %14, %15, %cst_14 {dimension_numbers = #tpu.dot_dimension_numbers<[1], [0], [0], [1], [0, 0, 1, 1], [], []>} : vector<2048x32xf32>, vector<32x6xf32>, vector<2048x6xf32> -> vector<2048x6xf32>
    %c0_15 = arith.constant 0 : index
    %c0_16 = arith.constant 0 : index
    %17 = vector.load %arg7[%c0_15, %c0_16] : memref<1x6xf32, #tpu.memory_space<vmem>>, vector<1x6xf32>
    %18 = vector.broadcast %17 : vector<1x6xf32> to vector<2048x6xf32>
    %19 = arith.addf %16, %18 : vector<2048x6xf32>
    %c0_17 = arith.constant 0 : index
    %c0_18 = arith.constant 0 : index
    %20 = vector.load %arg8[%c0_17, %c0_18] : memref<2048x6xf32, #tpu.memory_space<vmem>>, vector<2048x6xf32>
    tpu.vector_store %arg8[%c0_17, %c0_18], %19 {strides = array<i32>} : memref<2048x6xf32, #tpu.memory_space<vmem>>, vector<2048x6xf32>,
    return
  }
  func.func @transform_0(%arg0: i32) -> (i32, i32) {
    %c0_i32 = arith.constant 0 : i32
    %c0_i32_0 = arith.constant 0 : i32
    return %arg0, %c0_i32 : i32, i32
  }
  func.func @transform_1(%arg0: i32) -> (i32, i32) {
    %c0_i32 = arith.constant 0 : i32
    %c0_i32_0 = arith.constant 0 : i32
    %c0_i32_1 = arith.constant 0 : i32
    return %c0_i32, %c0_i32_0 : i32, i32
  }
  func.func @transform_2(%arg0: i32) -> (i32, i32) {
    %c0_i32 = arith.constant 0 : i32
    %c0_i32_0 = arith.constant 0 : i32
    %c0_i32_1 = arith.constant 0 : i32
    return %c0_i32, %c0_i32_0 : i32, i32
  }
  func.func @transform_3(%arg0: i32) -> (i32, i32) {
    %c0_i32 = arith.constant 0 : i32
    %c0_i32_0 = arith.constant 0 : i32
    %c0_i32_1 = arith.constant 0 : i32
    return %c0_i32, %c0_i32_0 : i32, i32
  }
  func.func @transform_4(%arg0: i32) -> (i32, i32) {
    %c0_i32 = arith.constant 0 : i32
    %c0_i32_0 = arith.constant 0 : i32
    %c0_i32_1 = arith.constant 0 : i32
    return %c0_i32, %c0_i32_0 : i32, i32
  }
  func.func @transform_5(%arg0: i32) -> (i32, i32) {
    %c0_i32 = arith.constant 0 : i32
    %c0_i32_0 = arith.constant 0 : i32
    %c0_i32_1 = arith.constant 0 : i32
    return %c0_i32, %c0_i32_0 : i32, i32
  }
  func.func @transform_6(%arg0: i32) -> (i32, i32) {
    %c0_i32 = arith.constant 0 : i32
    %c0_i32_0 = arith.constant 0 : i32
    %c0_i32_1 = arith.constant 0 : i32
    return %c0_i32, %c0_i32_0 : i32, i32
  }
  func.func @transform_7(%arg0: i32) -> (i32, i32) {
    %c0_i32 = arith.constant 0 : i32
    %c0_i32_0 = arith.constant 0 : i32
    return %arg0, %c0_i32 : i32, i32
  }
}

</mosaic_0001>

<llo_original>
// kernel: tpu_custom_call.1
$region0: #{tpu_custom_call.1}
  #allocation0 [shape = 'u32[]', space=smem, size = 0x4, offset = 0x4, fixed_abs, tag = 'smem constant byte address 0x4 - core index']
  #allocation1 [shape = 'u32[72,128]{1,0:T(1,128)}', space=vmem, size = 0x9000, scoped, tag = 'internal scratch']
  %s0 = inlined_call_operand.vmem [shape: f32[2048,8], index: 0, kind: input, shape index: {}]
  %s1 = inlined_call_operand.vmem [shape: f32[8,32], index: 1, kind: input, shape index: {}]
  %s2 = inlined_call_operand.vmem [shape: f32[1,32], index: 2, kind: input, shape index: {}]
  %s3 = inlined_call_operand.vmem [shape: f32[32,32], index: 3, kind: input, shape index: {}]
  %s4 = inlined_call_operand.vmem [shape: f32[1,32], index: 4, kind: input, shape index: {}]
  %s5 = inlined_call_operand.vmem [shape: f32[32,6], index: 5, kind: input, shape index: {}]
  %s6 = inlined_call_operand.vmem [shape: f32[1,6], index: 6, kind: input, shape index: {}]
  %s7 = inlined_call_operand.vmem [shape: f32[2048,6], index: 7, kind: output, shape index: {}]
  %s8 = sld [smem:[#allocation0]]
  $region38: #{tpu_custom_call.1} parent=0
    _
  %s10 = ssub.s32 1, %s8
  %s11 = scalar_select 0, %s10, %s8
  // Predicated region
  $region2: #{tpu_custom_call.1} parent=0 // pred_check
    _
  $region3: #{tpu_custom_call.1} parent=0 // pred_check_branch
    %13 = sbr.rel (0) target = $region5
  $region4: #{tpu_custom_call.1} parent=0 // pred_region
    _
  $region5: #{tpu_custom_call.1} parent=0 // pred_fallthru
    _
  // Predicated region
  $region6: #{tpu_custom_call.1} parent=0 // pred_check
    _
  $region7: #{tpu_custom_call.1} parent=0 // pred_check_branch
    %15 = sbr.rel (0) target = $region9
  $region8: #{tpu_custom_call.1} parent=0 // pred_region
    _
  $region9: #{tpu_custom_call.1} parent=0 // pred_fallthru
    _
  // Predicated region
  $region10: #{tpu_custom_call.1} parent=0 // pred_check
    _
  $region11: #{tpu_custom_call.1} parent=0 // pred_check_branch
    %17 = sbr.rel (0) target = $region13
  $region12: #{tpu_custom_call.1} parent=0 // pred_region
    _
  $region13: #{tpu_custom_call.1} parent=0 // pred_fallthru
    _
  // Predicated region
  $region14: #{tpu_custom_call.1} parent=0 // pred_check
    _
  $region15: #{tpu_custom_call.1} parent=0 // pred_check_branch
    %19 = sbr.rel (0) target = $region17
  $region16: #{tpu_custom_call.1} parent=0 // pred_region
    _
  $region17: #{tpu_custom_call.1} parent=0 // pred_fallthru
    _
  // Predicated region
  $region18: #{tpu_custom_call.1} parent=0 // pred_check
    _
  $region19: #{tpu_custom_call.1} parent=0 // pred_check_branch
    %21 = sbr.rel (0) target = $region21
  $region20: #{tpu_custom_call.1} parent=0 // pred_region
    _
  $region21: #{tpu_custom_call.1} parent=0 // pred_fallthru
    _
  // Predicated region
  $region22: #{tpu_custom_call.1} parent=0 // pred_check
    _
  $region23: #{tpu_custom_call.1} parent=0 // pred_check_branch
    %23 = sbr.rel (0) target = $region25
  $region24: #{tpu_custom_call.1} parent=0 // pred_region
    _
  $region25: #{tpu_custom_call.1} parent=0 // pred_fallthru
    _
  // Predicated region
  $region26: #{tpu_custom_call.1} parent=0 // pred_check
    _
  $region27: #{tpu_custom_call.1} parent=0 // pred_check_branch
    %25 = sbr.rel (0) target = $region29
  $region28: #{tpu_custom_call.1} parent=0 // pred_region
    _
  $region29: #{tpu_custom_call.1} parent=0 // pred_fallthru
    _
  %v26 = vld [vmem:[%s0] sm:$0xff]
  %v27 = vld [vmem:[%s0 + $0x8] sm:$0xff]
  %v28 = vld [vmem:[%s0 + $0x10] sm:$0xff]
  %v29 = vld [vmem:[%s0 + $0x18] sm:$0xff]
  %v30 = vld [vmem:[%s0 + $0x20] sm:$0xff]
  %v31 = vld [vmem:[%s0 + $0x28] sm:$0xff]
  %v32 = vld [vmem:[%s0 + $0x30] sm:$0xff]
  %v33 = vld [vmem:[%s0 + $0x38] sm:$0xff]
  %v34 = vld [vmem:[%s0 + $0x40] sm:$0xff]
  %v35 = vld [vmem:[%s0 + $0x48] sm:$0xff]
  %v36 = vld [vmem:[%s0 + $0x50] sm:$0xff]
  %v37 = vld [vmem:[%s0 + $0x58] sm:$0xff]
  %v38 = vld [vmem:[%s0 + $0x60] sm:$0xff]
  %v39 = vld [vmem:[%s0 + $0x68] sm:$0xff]
  %v40 = vld [vmem:[%s0 + $0x70] sm:$0xff]
  %v41 = vld [vmem:[%s0 + $0x78] sm:$0xff]
  %v42 = vld [vmem:[%s0 + $0x80] sm:$0xff]
  %v43 = vld [vmem:[%s0 + $0x88] sm:$0xff]
  %v44 = vld [vmem:[%s0 + $0x90] sm:$0xff]
  %v45 = vld [vmem:[%s0 + $0x98] sm:$0xff]
  %v46 = vld [vmem:[%s0 + $0xa0] sm:$0xff]
  %v47 = vld [vmem:[%s0 + $0xa8] sm:$0xff]
  %v48 = vld [vmem:[%s0 + $0xb0] sm:$0xff]
  %v49 = vld [vmem:[%s0 + $0xb8] sm:$0xff]
  %v50 = vld [vmem:[%s0 + $0xc0] sm:$0xff]
  %v51 = vld [vmem:[%s0 + $0xc8] sm:$0xff]
  %v52 = vld [vmem:[%s0 + $0xd0] sm:$0xff]
  %v53 = vld [vmem:[%s0 + $0xd8] sm:$0xff]
  %v54 = vld [vmem:[%s0 + $0xe0] sm:$0xff]
  %v55 = vld [vmem:[%s0 + $0xe8] sm:$0xff]
  %v56 = vld [vmem:[%s0 + $0xf0] sm:$0xff]
  %v57 = vld [vmem:[%s0 + $0xf8] sm:$0xff]
  %v58 = vld [vmem:[%s0 + $0x100] sm:$0xff]
  %v59 = vld [vmem:[%s0 + $0x108] sm:$0xff]
  %v60 = vld [vmem:[%s0 + $0x110] sm:$0xff]
  %v61 = vld [vmem:[%s0 + $0x118] sm:$0xff]
  %v62 = vld [vmem:[%s0 + $0x120] sm:$0xff]
  %v63 = vld [vmem:[%s0 + $0x128] sm:$0xff]
  %v64 = vld [vmem:[%s0 + $0x130] sm:$0xff]
  %v65 = vld [vmem:[%s0 + $0x138] sm:$0xff]
  %v66 = vld [vmem:[%s0 + $0x140] sm:$0xff]
  %v67 = vld [vmem:[%s0 + $0x148] sm:$0xff]
  %v68 = vld [vmem:[%s0 + $0x150] sm:$0xff]
  %v69 = vld [vmem:[%s0 + $0x158] sm:$0xff]
  %v70 = vld [vmem:[%s0 + $0x160] sm:$0xff]
  %v71 = vld [vmem:[%s0 + $0x168] sm:$0xff]
  %v72 = vld [vmem:[%s0 + $0x170] sm:$0xff]
  %v73 = vld [vmem:[%s0 + $0x178] sm:$0xff]
  %v74 = vld [vmem:[%s0 + $0x180] sm:$0xff]
  %v75 = vld [vmem:[%s0 + $0x188] sm:$0xff]
  %v76 = vld [vmem:[%s0 + $0x190] sm:$0xff]
  %v77 = vld [vmem:[%s0 + $0x198] sm:$0xff]
  %v78 = vld [vmem:[%s0 + $0x1a0] sm:$0xff]
  %v79 = vld [vmem:[%s0 + $0x1a8] sm:$0xff]
  %v80 = vld [vmem:[%s0 + $0x1b0] sm:$0xff]
  %v81 = vld [vmem:[%s0 + $0x1b8] sm:$0xff]
  %v82 = vld [vmem:[%s0 + $0x1c0] sm:$0xff]
  %v83 = vld [vmem:[%s0 + $0x1c8] sm:$0xff]
  %v84 = vld [vmem:[%s0 + $0x1d0] sm:$0xff]
  %v85 = vld [vmem:[%s0 + $0x1d8] sm:$0xff]
  %v86 = vld [vmem:[%s0 + $0x1e0] sm:$0xff]
  %v87 = vld [vmem:[%s0 + $0x1e8] sm:$0xff]
  %v88 = vld [vmem:[%s0 + $0x1f0] sm:$0xff]
  %v89 = vld [vmem:[%s0 + $0x1f8] sm:$0xff]
  %v90 = vld [vmem:[%s0 + $0x200] sm:$0xff]
  %v91 = vld [vmem:[%s0 + $0x208] sm:$0xff]
  %v92 = vld [vmem:[%s0 + $0x210] sm:$0xff]
  %v93 = vld [vmem:[%s0 + $0x218] sm:$0xff]
  %v94 = vld [vmem:[%s0 + $0x220] sm:$0xff]
  %v95 = vld [vmem:[%s0 + $0x228] sm:$0xff]
  %v96 = vld [vmem:[%s0 + $0x230] sm:$0xff]
  %v97 = vld [vmem:[%s0 + $0x238] sm:$0xff]
  %v98 = vld [vmem:[%s0 + $0x240] sm:$0xff]
  %v99 = vld [vmem:[%s0 + $0x248] sm:$0xff]
  %v100 = vld [vmem:[%s0 + $0x250] sm:$0xff]
  %v101 = vld [vmem:[%s0 + $0x258] sm:$0xff]
  %v102 = vld [vmem:[%s0 + $0x260] sm:$0xff]
  %v103 = vld [vmem:[%s0 + $0x268] sm:$0xff]
  %v104 = vld [vmem:[%s0 + $0x270] sm:$0xff]
  %v105 = vld [vmem:[%s0 + $0x278] sm:$0xff]
  %v106 = vld [vmem:[%s0 + $0x280] sm:$0xff]
  %v107 = vld [vmem:[%s0 + $0x288] sm:$0xff]
  %v108 = vld [vmem:[%s0 + $0x290] sm:$0xff]
  %v109 = vld [vmem:[%s0 + $0x298] sm:$0xff]
  %v110 = vld [vmem:[%s0 + $0x2a0] sm:$0xff]
  %v111 = vld [vmem:[%s0 + $0x2a8] sm:$0xff]
  %v112 = vld [vmem:[%s0 + $0x2b0] sm:$0xff]
  %v113 = vld [vmem:[%s0 + $0x2b8] sm:$0xff]
  %v114 = vld [vmem:[%s0 + $0x2c0] sm:$0xff]
  %v115 = vld [vmem:[%s0 + $0x2c8] sm:$0xff]
  %v116 = vld [vmem:[%s0 + $0x2d0] sm:$0xff]
  %v117 = vld [vmem:[%s0 + $0x2d8] sm:$0xff]
  %v118 = vld [vmem:[%s0 + $0x2e0] sm:$0xff]
  %v119 = vld [vmem:[%s0 + $0x2e8] sm:$0xff]
  %v120 = vld [vmem:[%s0 + $0x2f0] sm:$0xff]
  %v121 = vld [vmem:[%s0 + $0x2f8] sm:$0xff]
  %v122 = vld [vmem:[%s0 + $0x300] sm:$0xff]
  %v123 = vld [vmem:[%s0 + $0x308] sm:$0xff]
  %v124 = vld [vmem:[%s0 + $0x310] sm:$0xff]
  %v125 = vld [vmem:[%s0 + $0x318] sm:$0xff]
  %v126 = vld [vmem:[%s0 + $0x320] sm:$0xff]
  %v127 = vld [vmem:[%s0 + $0x328] sm:$0xff]
  %v128 = vld [vmem:[%s0 + $0x330] sm:$0xff]
  %v129 = vld [vmem:[%s0 + $0x338] sm:$0xff]
  %v130 = vld [vmem:[%s0 + $0x340] sm:$0xff]
  %v131 = vld [vmem:[%s0 + $0x348] sm:$0xff]
  %v132 = vld [vmem:[%s0 + $0x350] sm:$0xff]
  %v133 = vld [vmem:[%s0 + $0x358] sm:$0xff]
  %v134 = vld [vmem:[%s0 + $0x360] sm:$0xff]
  %v135 = vld [vmem:[%s0 + $0x368] sm:$0xff]
  %v136 = vld [vmem:[%s0 + $0x370] sm:$0xff]
  %v137 = vld [vmem:[%s0 + $0x378] sm:$0xff]
  %v138 = vld [vmem:[%s0 + $0x380] sm:$0xff]
  %v139 = vld [vmem:[%s0 + $0x388] sm:$0xff]
  %v140 = vld [vmem:[%s0 + $0x390] sm:$0xff]
  %v141 = vld [vmem:[%s0 + $0x398] sm:$0xff]
  %v142 = vld [vmem:[%s0 + $0x3a0] sm:$0xff]
  %v143 = vld [vmem:[%s0 + $0x3a8] sm:$0xff]
  %v144 = vld [vmem:[%s0 + $0x3b0] sm:$0xff]
  %v145 = vld [vmem:[%s0 + $0x3b8] sm:$0xff]
  %v146 = vld [vmem:[%s0 + $0x3c0] sm:$0xff]
  %v147 = vld [vmem:[%s0 + $0x3c8] sm:$0xff]
  %v148 = vld [vmem:[%s0 + $0x3d0] sm:$0xff]
  %v149 = vld [vmem:[%s0 + $0x3d8] sm:$0xff]
  %v150 = vld [vmem:[%s0 + $0x3e0] sm:$0xff]
  %v151 = vld [vmem:[%s0 + $0x3e8] sm:$0xff]
  %v152 = vld [vmem:[%s0 + $0x3f0] sm:$0xff]
  %v153 = vld [vmem:[%s0 + $0x3f8] sm:$0xff]
  %v154 = vld [vmem:[%s0 + $0x400] sm:$0xff]
  %v155 = vld [vmem:[%s0 + $0x408] sm:$0xff]
  %v156 = vld [vmem:[%s0 + $0x410] sm:$0xff]
  %v157 = vld [vmem:[%s0 + $0x418] sm:$0xff]
  %v158 = vld [vmem:[%s0 + $0x420] sm:$0xff]
  %v159 = vld [vmem:[%s0 + $0x428] sm:$0xff]
  %v160 = vld [vmem:[%s0 + $0x430] sm:$0xff]
  %v161 = vld [vmem:[%s0 + $0x438] sm:$0xff]
  %v162 = vld [vmem:[%s0 + $0x440] sm:$0xff]
  %v163 = vld [vmem:[%s0 + $0x448] sm:$0xff]
  %v164 = vld [vmem:[%s0 + $0x450] sm:$0xff]
  %v165 = vld [vmem:[%s0 + $0x458] sm:$0xff]
  %v166 = vld [vmem:[%s0 + $0x460] sm:$0xff]
  %v167 = vld [vmem:[%s0 + $0x468] sm:$0xff]
  %v168 = vld [vmem:[%s0 + $0x470] sm:$0xff]
  %v169 = vld [vmem:[%s0 + $0x478] sm:$0xff]
  %v170 = vld [vmem:[%s0 + $0x480] sm:$0xff]
  %v171 = vld [vmem:[%s0 + $0x488] sm:$0xff]
  %v172 = vld [vmem:[%s0 + $0x490] sm:$0xff]
  %v173 = vld [vmem:[%s0 + $0x498] sm:$0xff]
  %v174 = vld [vmem:[%s0 + $0x4a0] sm:$0xff]
  %v175 = vld [vmem:[%s0 + $0x4a8] sm:$0xff]
  %v176 = vld [vmem:[%s0 + $0x4b0] sm:$0xff]
  %v177 = vld [vmem:[%s0 + $0x4b8] sm:$0xff]
  %v178 = vld [vmem:[%s0 + $0x4c0] sm:$0xff]
  %v179 = vld [vmem:[%s0 + $0x4c8] sm:$0xff]
  %v180 = vld [vmem:[%s0 + $0x4d0] sm:$0xff]
  %v181 = vld [vmem:[%s0 + $0x4d8] sm:$0xff]
  %v182 = vld [vmem:[%s0 + $0x4e0] sm:$0xff]
  %v183 = vld [vmem:[%s0 + $0x4e8] sm:$0xff]
  %v184 = vld [vmem:[%s0 + $0x4f0] sm:$0xff]
  %v185 = vld [vmem:[%s0 + $0x4f8] sm:$0xff]
  %v186 = vld [vmem:[%s0 + $0x500] sm:$0xff]
  %v187 = vld [vmem:[%s0 + $0x508] sm:$0xff]
  %v188 = vld [vmem:[%s0 + $0x510] sm:$0xff]
  %v189 = vld [vmem:[%s0 + $0x518] sm:$0xff]
  %v190 = vld [vmem:[%s0 + $0x520] sm:$0xff]
  %v191 = vld [vmem:[%s0 + $0x528] sm:$0xff]
  %v192 = vld [vmem:[%s0 + $0x530] sm:$0xff]
  %v193 = vld [vmem:[%s0 + $0x538] sm:$0xff]
  %v194 = vld [vmem:[%s0 + $0x540] sm:$0xff]
  %v195 = vld [vmem:[%s0 + $0x548] sm:$0xff]
  %v196 = vld [vmem:[%s0 + $0x550] sm:$0xff]
  %v197 = vld [vmem:[%s0 + $0x558] sm:$0xff]
  %v198 = vld [vmem:[%s0 + $0x560] sm:$0xff]
  %v199 = vld [vmem:[%s0 + $0x568] sm:$0xff]
  %v200 = vld [vmem:[%s0 + $0x570] sm:$0xff]
  %v201 = vld [vmem:[%s0 + $0x578] sm:$0xff]
  %v202 = vld [vmem:[%s0 + $0x580] sm:$0xff]
  %v203 = vld [vmem:[%s0 + $0x588] sm:$0xff]
  %v204 = vld [vmem:[%s0 + $0x590] sm:$0xff]
  %v205 = vld [vmem:[%s0 + $0x598] sm:$0xff]
  %v206 = vld [vmem:[%s0 + $0x5a0] sm:$0xff]
  %v207 = vld [vmem:[%s0 + $0x5a8] sm:$0xff]
  %v208 = vld [vmem:[%s0 + $0x5b0] sm:$0xff]
  %v209 = vld [vmem:[%s0 + $0x5b8] sm:$0xff]
  %v210 = vld [vmem:[%s0 + $0x5c0] sm:$0xff]
  %v211 = vld [vmem:[%s0 + $0x5c8] sm:$0xff]
  %v212 = vld [vmem:[%s0 + $0x5d0] sm:$0xff]
  %v213 = vld [vmem:[%s0 + $0x5d8] sm:$0xff]
  %v214 = vld [vmem:[%s0 + $0x5e0] sm:$0xff]
  %v215 = vld [vmem:[%s0 + $0x5e8] sm:$0xff]
  %v216 = vld [vmem:[%s0 + $0x5f0] sm:$0xff]
  %v217 = vld [vmem:[%s0 + $0x5f8] sm:$0xff]
  %v218 = vld [vmem:[%s0 + $0x600] sm:$0xff]
  %v219 = vld [vmem:[%s0 + $0x608] sm:$0xff]
  %v220 = vld [vmem:[%s0 + $0x610] sm:$0xff]
  %v221 = vld [vmem:[%s0 + $0x618] sm:$0xff]
  %v222 = vld [vmem:[%s0 + $0x620] sm:$0xff]
  %v223 = vld [vmem:[%s0 + $0x628] sm:$0xff]
  %v224 = vld [vmem:[%s0 + $0x630] sm:$0xff]
  %v225 = vld [vmem:[%s0 + $0x638] sm:$0xff]
  %v226 = vld [vmem:[%s0 + $0x640] sm:$0xff]
  %v227 = vld [vmem:[%s0 + $0x648] sm:$0xff]
  %v228 = vld [vmem:[%s0 + $0x650] sm:$0xff]
  %v229 = vld [vmem:[%s0 + $0x658] sm:$0xff]
  %v230 = vld [vmem:[%s0 + $0x660] sm:$0xff]
  %v231 = vld [vmem:[%s0 + $0x668] sm:$0xff]
  %v232 = vld [vmem:[%s0 + $0x670] sm:$0xff]
  %v233 = vld [vmem:[%s0 + $0x678] sm:$0xff]
  %v234 = vld [vmem:[%s0 + $0x680] sm:$0xff]
  %v235 = vld [vmem:[%s0 + $0x688] sm:$0xff]
  %v236 = vld [vmem:[%s0 + $0x690] sm:$0xff]
  %v237 = vld [vmem:[%s0 + $0x698] sm:$0xff]
  %v238 = vld [vmem:[%s0 + $0x6a0] sm:$0xff]
  %v239 = vld [vmem:[%s0 + $0x6a8] sm:$0xff]
  %v240 = vld [vmem:[%s0 + $0x6b0] sm:$0xff]
  %v241 = vld [vmem:[%s0 + $0x6b8] sm:$0xff]
  %v242 = vld [vmem:[%s0 + $0x6c0] sm:$0xff]
  %v243 = vld [vmem:[%s0 + $0x6c8] sm:$0xff]
  %v244 = vld [vmem:[%s0 + $0x6d0] sm:$0xff]
  %v245 = vld [vmem:[%s0 + $0x6d8] sm:$0xff]
  %v246 = vld [vmem:[%s0 + $0x6e0] sm:$0xff]
  %v247 = vld [vmem:[%s0 + $0x6e8] sm:$0xff]
  %v248 = vld [vmem:[%s0 + $0x6f0] sm:$0xff]
  %v249 = vld [vmem:[%s0 + $0x6f8] sm:$0xff]
  %v250 = vld [vmem:[%s0 + $0x700] sm:$0xff]
  %v251 = vld [vmem:[%s0 + $0x708] sm:$0xff]
  %v252 = vld [vmem:[%s0 + $0x710] sm:$0xff]
  %v253 = vld [vmem:[%s0 + $0x718] sm:$0xff]
  %v254 = vld [vmem:[%s0 + $0x720] sm:$0xff]
  %v255 = vld [vmem:[%s0 + $0x728] sm:$0xff]
  %v256 = vld [vmem:[%s0 + $0x730] sm:$0xff]
  %v257 = vld [vmem:[%s0 + $0x738] sm:$0xff]
  %v258 = vld [vmem:[%s0 + $0x740] sm:$0xff]
  %v259 = vld [vmem:[%s0 + $0x748] sm:$0xff]
  %v260 = vld [vmem:[%s0 + $0x750] sm:$0xff]
  %v261 = vld [vmem:[%s0 + $0x758] sm:$0xff]
  %v262 = vld [vmem:[%s0 + $0x760] sm:$0xff]
  %v263 = vld [vmem:[%s0 + $0x768] sm:$0xff]
  %v264 = vld [vmem:[%s0 + $0x770] sm:$0xff]
  %v265 = vld [vmem:[%s0 + $0x778] sm:$0xff]
  %v266 = vld [vmem:[%s0 + $0x780] sm:$0xff]
  %v267 = vld [vmem:[%s0 + $0x788] sm:$0xff]
  %v268 = vld [vmem:[%s0 + $0x790] sm:$0xff]
  %v269 = vld [vmem:[%s0 + $0x798] sm:$0xff]
  %v270 = vld [vmem:[%s0 + $0x7a0] sm:$0xff]
  %v271 = vld [vmem:[%s0 + $0x7a8] sm:$0xff]
  %v272 = vld [vmem:[%s0 + $0x7b0] sm:$0xff]
  %v273 = vld [vmem:[%s0 + $0x7b8] sm:$0xff]
  %v274 = vld [vmem:[%s0 + $0x7c0] sm:$0xff]
  %v275 = vld [vmem:[%s0 + $0x7c8] sm:$0xff]
  %v276 = vld [vmem:[%s0 + $0x7d0] sm:$0xff]
  %v277 = vld [vmem:[%s0 + $0x7d8] sm:$0xff]
  %v278 = vld [vmem:[%s0 + $0x7e0] sm:$0xff]
  %v279 = vld [vmem:[%s0 + $0x7e8] sm:$0xff]
  %v280 = vld [vmem:[%s0 + $0x7f0] sm:$0xff]
  %v281 = vld [vmem:[%s0 + $0x7f8] sm:$0xff]
  %v282 = vld [vmem:[%s1] sm:$0xff]
  %v283 = vld [vmem:[%s2] sm:$0x1]
  %v285 = vperm.slane %v283, 0
  %vm287 = vcmask 64512
  %v289 = vsel %vm287, %v26, 0
  %v292 = vsel %vm287, %v27, 0
  %v295 = vsel %vm287, %v28, 0
  %v298 = vsel %vm287, %v29, 0
  %v301 = vsel %vm287, %v30, 0
  %v304 = vsel %vm287, %v31, 0
  %v307 = vsel %vm287, %v32, 0
  %v310 = vsel %vm287, %v33, 0
  %v313 = vsel %vm287, %v34, 0
  %v316 = vsel %vm287, %v35, 0
  %v319 = vsel %vm287, %v36, 0
  %v322 = vsel %vm287, %v37, 0
  %v325 = vsel %vm287, %v38, 0
  %v328 = vsel %vm287, %v39, 0
  %v331 = vsel %vm287, %v40, 0
  %v334 = vsel %vm287, %v41, 0
  %v337 = vsel %vm287, %v42, 0
  %v340 = vsel %vm287, %v43, 0
  %v343 = vsel %vm287, %v44, 0
  %v346 = vsel %vm287, %v45, 0
  %v349 = vsel %vm287, %v46, 0
  %v352 = vsel %vm287, %v47, 0
  %v355 = vsel %vm287, %v48, 0
  %v358 = vsel %vm287, %v49, 0
  %v361 = vsel %vm287, %v50, 0
  %v364 = vsel %vm287, %v51, 0
  %v367 = vsel %vm287, %v52, 0
  %v370 = vsel %vm287, %v53, 0
  %v373 = vsel %vm287, %v54, 0
  %v376 = vsel %vm287, %v55, 0
  %v379 = vsel %vm287, %v56, 0
  %v382 = vsel %vm287, %v57, 0
  %v385 = vsel %vm287, %v58, 0
  %v388 = vsel %vm287, %v59, 0
  %v391 = vsel %vm287, %v60, 0
  %v394 = vsel %vm287, %v61, 0
  %v397 = vsel %vm287, %v62, 0
  %v400 = vsel %vm287, %v63, 0
  %v403 = vsel %vm287, %v64, 0
  %v406 = vsel %vm287, %v65, 0
  %v409 = vsel %vm287, %v66, 0
  %v412 = vsel %vm287, %v67, 0
  %v415 = vsel %vm287, %v68, 0
  %v418 = vsel %vm287, %v69, 0
  %v421 = vsel %vm287, %v70, 0
  %v424 = vsel %vm287, %v71, 0
  %v427 = vsel %vm287, %v72, 0
  %v430 = vsel %vm287, %v73, 0
  %v433 = vsel %vm287, %v74, 0
  %v436 = vsel %vm287, %v75, 0
  %v439 = vsel %vm287, %v76, 0
  %v442 = vsel %vm287, %v77, 0
  %v445 = vsel %vm287, %v78, 0
  %v448 = vsel %vm287, %v79, 0
  %v451 = vsel %vm287, %v80, 0
  %v454 = vsel %vm287, %v81, 0
  %v457 = vsel %vm287, %v82, 0
  %v460 = vsel %vm287, %v83, 0
  %v463 = vsel %vm287, %v84, 0
  %v466 = vsel %vm287, %v85, 0
  %v469 = vsel %vm287, %v86, 0
  %v472 = vsel %vm287, %v87, 0
  %v475 = vsel %vm287, %v88, 0
  %v478 = vsel %vm287, %v89, 0
  %v481 = vsel %vm287, %v90, 0
  %v484 = vsel %vm287, %v91, 0
  %v487 = vsel %vm287, %v92, 0
  %v490 = vsel %vm287, %v93, 0
  %v493 = vsel %vm287, %v94, 0
  %v496 = vsel %vm287, %v95, 0
  %v499 = vsel %vm287, %v96, 0
  %v502 = vsel %vm287, %v97, 0
  %v505 = vsel %vm287, %v98, 0
  %v508 = vsel %vm287, %v99, 0
  %v511 = vsel %vm287, %v100, 0
  %v514 = vsel %vm287, %v101, 0
  %v517 = vsel %vm287, %v102, 0
  %v520 = vsel %vm287, %v103, 0
  %v523 = vsel %vm287, %v104, 0
  %v526 = vsel %vm287, %v105, 0
  %v529 = vsel %vm287, %v106, 0
  %v532 = vsel %vm287, %v107, 0
  %v535 = vsel %vm287, %v108, 0
  %v538 = vsel %vm287, %v109, 0
  %v541 = vsel %vm287, %v110, 0
  %v544 = vsel %vm287, %v111, 0
  %v547 = vsel %vm287, %v112, 0
  %v550 = vsel %vm287, %v113, 0
  %v553 = vsel %vm287, %v114, 0
  %v556 = vsel %vm287, %v115, 0
  %v559 = vsel %vm287, %v116, 0
  %v562 = vsel %vm287, %v117, 0
  %v565 = vsel %vm287, %v118, 0
  %v568 = vsel %vm287, %v119, 0
  %v571 = vsel %vm287, %v120, 0
  %v574 = vsel %vm287, %v121, 0
  %v577 = vsel %vm287, %v122, 0
  %v580 = vsel %vm287, %v123, 0
  %v583 = vsel %vm287, %v124, 0
  %v586 = vsel %vm287, %v125, 0
  %v589 = vsel %vm287, %v126, 0
  %v592 = vsel %vm287, %v127, 0
  %v595 = vsel %vm287, %v128, 0
  %v598 = vsel %vm287, %v129, 0
  %v601 = vsel %vm287, %v130, 0
  %v604 = vsel %vm287, %v131, 0
  %v607 = vsel %vm287, %v132, 0
  %v610 = vsel %vm287, %v133, 0
  %v613 = vsel %vm287, %v134, 0
  %v616 = vsel %vm287, %v135, 0
  %v619 = vsel %vm287, %v136, 0
  %v622 = vsel %vm287, %v137, 0
  %v625 = vsel %vm287, %v138, 0
  %v628 = vsel %vm287, %v139, 0
  %v631 = vsel %vm287, %v140, 0
  %v634 = vsel %vm287, %v141, 0
  %v637 = vsel %vm287, %v142, 0
  %v640 = vsel %vm287, %v143, 0
  %v643 = vsel %vm287, %v144, 0
  %v646 = vsel %vm287, %v145, 0
  %v649 = vsel %vm287, %v146, 0
  %v652 = vsel %vm287, %v147, 0
  %v655 = vsel %vm287, %v148, 0
  %v658 = vsel %vm287, %v149, 0
  %v661 = vsel %vm287, %v150, 0
  %v664 = vsel %vm287, %v151, 0
  %v667 = vsel %vm287, %v152, 0
  %v670 = vsel %vm287, %v153, 0
  %v673 = vsel %vm287, %v154, 0
  %v676 = vsel %vm287, %v155, 0
  %v679 = vsel %vm287, %v156, 0
  %v682 = vsel %vm287, %v157, 0
  %v685 = vsel %vm287, %v158, 0
  %v688 = vsel %vm287, %v159, 0
  %v691 = vsel %vm287, %v160, 0
  %v694 = vsel %vm287, %v161, 0
  %v697 = vsel %vm287, %v162, 0
  %v700 = vsel %vm287, %v163, 0
  %v703 = vsel %vm287, %v164, 0
  %v706 = vsel %vm287, %v165, 0
  %v709 = vsel %vm287, %v166, 0
  %v712 = vsel %vm287, %v167, 0
  %v715 = vsel %vm287, %v168, 0
  %v718 = vsel %vm287, %v169, 0
  %v721 = vsel %vm287, %v170, 0
  %v724 = vsel %vm287, %v171, 0
  %v727 = vsel %vm287, %v172, 0
  %v730 = vsel %vm287, %v173, 0
  %v733 = vsel %vm287, %v174, 0
  %v736 = vsel %vm287, %v175, 0
  %v739 = vsel %vm287, %v176, 0
  %v742 = vsel %vm287, %v177, 0
  %v745 = vsel %vm287, %v178, 0
  %v748 = vsel %vm287, %v179, 0
  %v751 = vsel %vm287, %v180, 0
  %v754 = vsel %vm287, %v181, 0
  %v757 = vsel %vm287, %v182, 0
  %v760 = vsel %vm287, %v183, 0
  %v763 = vsel %vm287, %v184, 0
  %v766 = vsel %vm287, %v185, 0
  %v769 = vsel %vm287, %v186, 0
  %v772 = vsel %vm287, %v187, 0
  %v775 = vsel %vm287, %v188, 0
  %v778 = vsel %vm287, %v189, 0
  %v781 = vsel %vm287, %v190, 0
  %v784 = vsel %vm287, %v191, 0
  %v787 = vsel %vm287, %v192, 0
  %v790 = vsel %vm287, %v193, 0
  %v793 = vsel %vm287, %v194, 0
  %v796 = vsel %vm287, %v195, 0
  %v799 = vsel %vm287, %v196, 0
  %v802 = vsel %vm287, %v197, 0
  %v805 = vsel %vm287, %v198, 0
  %v808 = vsel %vm287, %v199, 0
  %v811 = vsel %vm287, %v200, 0
  %v814 = vsel %vm287, %v201, 0
  %v817 = vsel %vm287, %v202, 0
  %v820 = vsel %vm287, %v203, 0
  %v823 = vsel %vm287, %v204, 0
  %v826 = vsel %vm287, %v205, 0
  %v829 = vsel %vm287, %v206, 0
  %v832 = vsel %vm287, %v207, 0
  %v835 = vsel %vm287, %v208, 0
  %v838 = vsel %vm287, %v209, 0
  %v841 = vsel %vm287, %v210, 0
  %v844 = vsel %vm287, %v211, 0
  %v847 = vsel %vm287, %v212, 0
  %v850 = vsel %vm287, %v213, 0
  %v853 = vsel %vm287, %v214, 0
  %v856 = vsel %vm287, %v215, 0
  %v859 = vsel %vm287, %v216, 0
  %v862 = vsel %vm287, %v217, 0
  %v865 = vsel %vm287, %v218, 0
  %v868 = vsel %vm287, %v219, 0
  %v871 = vsel %vm287, %v220, 0
  %v874 = vsel %vm287, %v221, 0
  %v877 = vsel %vm287, %v222, 0
  %v880 = vsel %vm287, %v223, 0
  %v883 = vsel %vm287, %v224, 0
  %v886 = vsel %vm287, %v225, 0
  %v889 = vsel %vm287, %v226, 0
  %v892 = vsel %vm287, %v227, 0
  %v895 = vsel %vm287, %v228, 0
  %v898 = vsel %vm287, %v229, 0
  %v901 = vsel %vm287, %v230, 0
  %v904 = vsel %vm287, %v231, 0
  %v907 = vsel %vm287, %v232, 0
  %v910 = vsel %vm287, %v233, 0
  %v913 = vsel %vm287, %v234, 0
  %v916 = vsel %vm287, %v235, 0
  %v919 = vsel %vm287, %v236, 0
  %v922 = vsel %vm287, %v237, 0
  %v925 = vsel %vm287, %v238, 0
  %v928 = vsel %vm287, %v239, 0
  %v931 = vsel %vm287, %v240, 0
  %v934 = vsel %vm287, %v241, 0
  %v937 = vsel %vm287, %v242, 0
  %v940 = vsel %vm287, %v243, 0
  %v943 = vsel %vm287, %v244, 0
  %v946 = vsel %vm287, %v245, 0
  %v949 = vsel %vm287, %v246, 0
  %v952 = vsel %vm287, %v247, 0
  %v955 = vsel %vm287, %v248, 0
  %v958 = vsel %vm287, %v249, 0
  %v961 = vsel %vm287, %v250, 0
  %v964 = vsel %vm287, %v251, 0
  %v967 = vsel %vm287, %v252, 0
  %v970 = vsel %vm287, %v253, 0
  %v973 = vsel %vm287, %v254, 0
  %v976 = vsel %vm287, %v255, 0
  %v979 = vsel %vm287, %v256, 0
  %v982 = vsel %vm287, %v257, 0
  %v985 = vsel %vm287, %v258, 0
  %v988 = vsel %vm287, %v259, 0
  %v991 = vsel %vm287, %v260, 0
  %v994 = vsel %vm287, %v261, 0
  %v997 = vsel %vm287, %v262, 0
  %v1000 = vsel %vm287, %v263, 0
  %v1003 = vsel %vm287, %v264, 0
  %v1006 = vsel %vm287, %v265, 0
  %v1009 = vsel %vm287, %v266, 0
  %v1012 = vsel %vm287, %v267, 0
  %v1015 = vsel %vm287, %v268, 0
  %v1018 = vsel %vm287, %v269, 0
  %v1021 = vsel %vm287, %v270, 0
  %v1024 = vsel %vm287, %v271, 0
  %v1027 = vsel %vm287, %v272, 0
  %v1030 = vsel %vm287, %v273, 0
  %v1033 = vsel %vm287, %v274, 0
  %v1036 = vsel %vm287, %v275, 0
  %v1039 = vsel %vm287, %v276, 0
  %v1042 = vsel %vm287, %v277, 0
  %v1045 = vsel %vm287, %v278, 0
  %v1048 = vsel %vm287, %v279, 0
  %v1051 = vsel %vm287, %v280, 0
  %v1054 = vsel %vm287, %v281, 0
  %1056 = vmatpush.msra.mxu0 0.0
  %1057 = vmatpush.msra.mxu0 0.0
  %1058 = vmatpush.msra.mxu0 0.0
  %1059 = vmatpush.msra.mxu0 0.0
  %1060 = vmatpush.msra.mxu0 0.0
  %1061 = vmatpush.msra.mxu0 0.0
  %1062 = vmatpush.msra.mxu0 0.0
  %1063 = vmatpush.msra.mxu0 0.0
  %1064 = vmatpush.msra.mxu0 0.0
  %1065 = vmatpush.msra.mxu0 0.0
  %1066 = vmatpush.msra.mxu0 0.0
  %1067 = vmatpush.msra.mxu0 0.0
  %1068 = vmatpush.msra.mxu0 0.0
  %1069 = vmatpush.msra.mxu0 0.0
  %1070 = vmatpush.msra.mxu0 0.0
  %1071 = vmatpush.msra.mxu0 %v282
  %1072 = vmatmul.f32.gmra.mxu0 %v289
  %v1073 = vpop.f32.mrf.mxu0
  %v1074 = vadd.f32 %v285, %v1073
  %1075 = vmatmul.f32.gmra.mxu0 %v292
  %v1076 = vpop.f32.mrf.mxu0
  %v1077 = vadd.f32 %v285, %v1076
  %1078 = vmatmul.f32.gmra.mxu0 %v295
  %v1079 = vpop.f32.mrf.mxu0
  %v1080 = vadd.f32 %v285, %v1079
  %1081 = vmatmul.f32.gmra.mxu0 %v298
  %v1082 = vpop.f32.mrf.mxu0
  %v1083 = vadd.f32 %v285, %v1082
  %1084 = vmatmul.f32.gmra.mxu0 %v301
  %v1085 = vpop.f32.mrf.mxu0
  %v1086 = vadd.f32 %v285, %v1085
  %1087 = vmatmul.f32.gmra.mxu0 %v304
  %v1088 = vpop.f32.mrf.mxu0
  %v1089 = vadd.f32 %v285, %v1088
  %1090 = vmatmul.f32.gmra.mxu0 %v307
  %v1091 = vpop.f32.mrf.mxu0
  %v1092 = vadd.f32 %v285, %v1091
  %1093 = vmatmul.f32.gmra.mxu0 %v310
  %v1094 = vpop.f32.mrf.mxu0
  %v1095 = vadd.f32 %v285, %v1094
  %1096 = vmatmul.f32.gmra.mxu0 %v313
  %v1097 = vpop.f32.mrf.mxu0
  %v1098 = vadd.f32 %v285, %v1097
  %1099 = vmatmul.f32.gmra.mxu0 %v316
  %v1100 = vpop.f32.mrf.mxu0
  %v1101 = vadd.f32 %v285, %v1100
  %1102 = vmatmul.f32.gmra.mxu0 %v319
  %v1103 = vpop.f32.mrf.mxu0
  %v1104 = vadd.f32 %v285, %v1103
  %1105 = vmatmul.f32.gmra.mxu0 %v322
  %v1106 = vpop.f32.mrf.mxu0
  %v1107 = vadd.f32 %v285, %v1106
  %1108 = vmatmul.f32.gmra.mxu0 %v325
  %v1109 = vpop.f32.mrf.mxu0
  %v1110 = vadd.f32 %v285, %v1109
  %1111 = vmatmul.f32.gmra.mxu0 %v328
  %v1112 = vpop.f32.mrf.mxu0
  %v1113 = vadd.f32 %v285, %v1112
  %1114 = vmatmul.f32.gmra.mxu0 %v331
  %v1115 = vpop.f32.mrf.mxu0
  %v1116 = vadd.f32 %v285, %v1115
  %1117 = vmatmul.f32.gmra.mxu0 %v334
  %v1118 = vpop.f32.mrf.mxu0
  %v1119 = vadd.f32 %v285, %v1118
  %1120 = vmatmul.f32.gmra.mxu0 %v337
  %v1121 = vpop.f32.mrf.mxu0
  %v1122 = vadd.f32 %v285, %v1121
  %1123 = vmatmul.f32.gmra.mxu0 %v340
  %v1124 = vpop.f32.mrf.mxu0
  %v1125 = vadd.f32 %v285, %v1124
  %1126 = vmatmul.f32.gmra.mxu0 %v343
  %v1127 = vpop.f32.mrf.mxu0
  %v1128 = vadd.f32 %v285, %v1127
  %1129 = vmatmul.f32.gmra.mxu0 %v346
  %v1130 = vpop.f32.mrf.mxu0
  %v1131 = vadd.f32 %v285, %v1130
  %1132 = vmatmul.f32.gmra.mxu0 %v349
  %v1133 = vpop.f32.mrf.mxu0
  %v1134 = vadd.f32 %v285, %v1133
  %1135 = vmatmul.f32.gmra.mxu0 %v352
  %v1136 = vpop.f32.mrf.mxu0
  %v1137 = vadd.f32 %v285, %v1136
  %1138 = vmatmul.f32.gmra.mxu0 %v355
  %v1139 = vpop.f32.mrf.mxu0
  %v1140 = vadd.f32 %v285, %v1139
  %1141 = vmatmul.f32.gmra.mxu0 %v358
  %v1142 = vpop.f32.mrf.mxu0
  %v1143 = vadd.f32 %v285, %v1142
  %1144 = vmatmul.f32.gmra.mxu0 %v361
  %v1145 = vpop.f32.mrf.mxu0
  %v1146 = vadd.f32 %v285, %v1145
  %1147 = vmatmul.f32.gmra.mxu0 %v364
  %v1148 = vpop.f32.mrf.mxu0
  %v1149 = vadd.f32 %v285, %v1148
  %1150 = vmatmul.f32.gmra.mxu0 %v367
  %v1151 = vpop.f32.mrf.mxu0
  %v1152 = vadd.f32 %v285, %v1151
  %1153 = vmatmul.f32.gmra.mxu0 %v370
  %v1154 = vpop.f32.mrf.mxu0
  %v1155 = vadd.f32 %v285, %v1154
  %1156 = vmatmul.f32.gmra.mxu0 %v373
  %v1157 = vpop.f32.mrf.mxu0
  %v1158 = vadd.f32 %v285, %v1157
  %1159 = vmatmul.f32.gmra.mxu0 %v376
  %v1160 = vpop.f32.mrf.mxu0
  %v1161 = vadd.f32 %v285, %v1160
  %1162 = vmatmul.f32.gmra.mxu0 %v379
  %v1163 = vpop.f32.mrf.mxu0
  %v1164 = vadd.f32 %v285, %v1163
  %1165 = vmatmul.f32.gmra.mxu0 %v382
  %v1166 = vpop.f32.mrf.mxu0
  %v1167 = vadd.f32 %v285, %v1166
  %1168 = vmatmul.f32.gmra.mxu0 %v385
  %v1169 = vpop.f32.mrf.mxu0
  %v1170 = vadd.f32 %v285, %v1169
  %1171 = vmatmul.f32.gmra.mxu0 %v388
  %v1172 = vpop.f32.mrf.mxu0
  %v1173 = vadd.f32 %v285, %v1172
  %1174 = vmatmul.f32.gmra.mxu0 %v391
  %v1175 = vpop.f32.mrf.mxu0
  %v1176 = vadd.f32 %v285, %v1175
  %1177 = vmatmul.f32.gmra.mxu0 %v394
  %v1178 = vpop.f32.mrf.mxu0
  %v1179 = vadd.f32 %v285, %v1178
  %1180 = vmatmul.f32.gmra.mxu0 %v397
  %v1181 = vpop.f32.mrf.mxu0
  %v1182 = vadd.f32 %v285, %v1181
  %1183 = vmatmul.f32.gmra.mxu0 %v400
  %v1184 = vpop.f32.mrf.mxu0
  %v1185 = vadd.f32 %v285, %v1184
  %1186 = vmatmul.f32.gmra.mxu0 %v403
  %v1187 = vpop.f32.mrf.mxu0
  %v1188 = vadd.f32 %v285, %v1187
  %1189 = vmatmul.f32.gmra.mxu0 %v406
  %v1190 = vpop.f32.mrf.mxu0
  %v1191 = vadd.f32 %v285, %v1190
  %1192 = vmatmul.f32.gmra.mxu0 %v409
  %v1193 = vpop.f32.mrf.mxu0
  %v1194 = vadd.f32 %v285, %v1193
  %1195 = vmatmul.f32.gmra.mxu0 %v412
  %v1196 = vpop.f32.mrf.mxu0
  %v1197 = vadd.f32 %v285, %v1196
  %1198 = vmatmul.f32.gmra.mxu0 %v415
  %v1199 = vpop.f32.mrf.mxu0
  %v1200 = vadd.f32 %v285, %v1199
  %1201 = vmatmul.f32.gmra.mxu0 %v418
  %v1202 = vpop.f32.mrf.mxu0
  %v1203 = vadd.f32 %v285, %v1202
  %1204 = vmatmul.f32.gmra.mxu0 %v421
  %v1205 = vpop.f32.mrf.mxu0
  %v1206 = vadd.f32 %v285, %v1205
  %1207 = vmatmul.f32.gmra.mxu0 %v424
  %v1208 = vpop.f32.mrf.mxu0
  %v1209 = vadd.f32 %v285, %v1208
  %1210 = vmatmul.f32.gmra.mxu0 %v427
  %v1211 = vpop.f32.mrf.mxu0
  %v1212 = vadd.f32 %v285, %v1211
  %1213 = vmatmul.f32.gmra.mxu0 %v430
  %v1214 = vpop.f32.mrf.mxu0
  %v1215 = vadd.f32 %v285, %v1214
  %1216 = vmatmul.f32.gmra.mxu0 %v433
  %v1217 = vpop.f32.mrf.mxu0
  %v1218 = vadd.f32 %v285, %v1217
  %1219 = vmatmul.f32.gmra.mxu0 %v436
  %v1220 = vpop.f32.mrf.mxu0
  %v1221 = vadd.f32 %v285, %v1220
  %1222 = vmatmul.f32.gmra.mxu0 %v439
  %v1223 = vpop.f32.mrf.mxu0
  %v1224 = vadd.f32 %v285, %v1223
  %1225 = vmatmul.f32.gmra.mxu0 %v442
  %v1226 = vpop.f32.mrf.mxu0
  %v1227 = vadd.f32 %v285, %v1226
  %1228 = vmatmul.f32.gmra.mxu0 %v445
  %v1229 = vpop.f32.mrf.mxu0
  %v1230 = vadd.f32 %v285, %v1229
  %1231 = vmatmul.f32.gmra.mxu0 %v448
  %v1232 = vpop.f32.mrf.mxu0
  %v1233 = vadd.f32 %v285, %v1232
  %1234 = vmatmul.f32.gmra.mxu0 %v451
  %v1235 = vpop.f32.mrf.mxu0
  %v1236 = vadd.f32 %v285, %v1235
  %1237 = vmatmul.f32.gmra.mxu0 %v454
  %v1238 = vpop.f32.mrf.mxu0
  %v1239 = vadd.f32 %v285, %v1238
  %1240 = vmatmul.f32.gmra.mxu0 %v457
  %v1241 = vpop.f32.mrf.mxu0
  %v1242 = vadd.f32 %v285, %v1241
  %1243 = vmatmul.f32.gmra.mxu0 %v460
  %v1244 = vpop.f32.mrf.mxu0
  %v1245 = vadd.f32 %v285, %v1244
  %1246 = vmatmul.f32.gmra.mxu0 %v463
  %v1247 = vpop.f32.mrf.mxu0
  %v1248 = vadd.f32 %v285, %v1247
  %1249 = vmatmul.f32.gmra.mxu0 %v466
  %v1250 = vpop.f32.mrf.mxu0
  %v1251 = vadd.f32 %v285, %v1250
  %1252 = vmatmul.f32.gmra.mxu0 %v469
  %v1253 = vpop.f32.mrf.mxu0
  %v1254 = vadd.f32 %v285, %v1253
  %1255 = vmatmul.f32.gmra.mxu0 %v472
  %v1256 = vpop.f32.mrf.mxu0
  %v1257 = vadd.f32 %v285, %v1256
  %1258 = vmatmul.f32.gmra.mxu0 %v475
  %v1259 = vpop.f32.mrf.mxu0
  %v1260 = vadd.f32 %v285, %v1259
  %1261 = vmatmul.f32.gmra.mxu0 %v478
  %v1262 = vpop.f32.mrf.mxu0
  %v1263 = vadd.f32 %v285, %v1262
  %1264 = vmatmul.f32.gmra.mxu0 %v481
  %v1265 = vpop.f32.mrf.mxu0
  %v1266 = vadd.f32 %v285, %v1265
  %1267 = vmatmul.f32.gmra.mxu0 %v484
  %v1268 = vpop.f32.mrf.mxu0
  %v1269 = vadd.f32 %v285, %v1268
  %1270 = vmatmul.f32.gmra.mxu0 %v487
  %v1271 = vpop.f32.mrf.mxu0
  %v1272 = vadd.f32 %v285, %v1271
  %1273 = vmatmul.f32.gmra.mxu0 %v490
  %v1274 = vpop.f32.mrf.mxu0
  %v1275 = vadd.f32 %v285, %v1274
  %1276 = vmatmul.f32.gmra.mxu0 %v493
  %v1277 = vpop.f32.mrf.mxu0
  %v1278 = vadd.f32 %v285, %v1277
  %1279 = vmatmul.f32.gmra.mxu0 %v496
  %v1280 = vpop.f32.mrf.mxu0
  %v1281 = vadd.f32 %v285, %v1280
  %1282 = vmatmul.f32.gmra.mxu0 %v499
  %v1283 = vpop.f32.mrf.mxu0
  %v1284 = vadd.f32 %v285, %v1283
  %1285 = vmatmul.f32.gmra.mxu0 %v502
  %v1286 = vpop.f32.mrf.mxu0
  %v1287 = vadd.f32 %v285, %v1286
  %1288 = vmatmul.f32.gmra.mxu0 %v505
  %v1289 = vpop.f32.mrf.mxu0
  %v1290 = vadd.f32 %v285, %v1289
  %1291 = vmatmul.f32.gmra.mxu0 %v508
  %v1292 = vpop.f32.mrf.mxu0
  %v1293 = vadd.f32 %v285, %v1292
  %1294 = vmatmul.f32.gmra.mxu0 %v511
  %v1295 = vpop.f32.mrf.mxu0
  %v1296 = vadd.f32 %v285, %v1295
  %1297 = vmatmul.f32.gmra.mxu0 %v514
  %v1298 = vpop.f32.mrf.mxu0
  %v1299 = vadd.f32 %v285, %v1298
  %1300 = vmatmul.f32.gmra.mxu0 %v517
  %v1301 = vpop.f32.mrf.mxu0
  %v1302 = vadd.f32 %v285, %v1301
  %1303 = vmatmul.f32.gmra.mxu0 %v520
  %v1304 = vpop.f32.mrf.mxu0
  %v1305 = vadd.f32 %v285, %v1304
  %1306 = vmatmul.f32.gmra.mxu0 %v523
  %v1307 = vpop.f32.mrf.mxu0
  %v1308 = vadd.f32 %v285, %v1307
  %1309 = vmatmul.f32.gmra.mxu0 %v526
  %v1310 = vpop.f32.mrf.mxu0
  %v1311 = vadd.f32 %v285, %v1310
  %1312 = vmatmul.f32.gmra.mxu0 %v529
  %v1313 = vpop.f32.mrf.mxu0
  %v1314 = vadd.f32 %v285, %v1313
  %1315 = vmatmul.f32.gmra.mxu0 %v532
  %v1316 = vpop.f32.mrf.mxu0
  %v1317 = vadd.f32 %v285, %v1316
  %1318 = vmatmul.f32.gmra.mxu0 %v535
  %v1319 = vpop.f32.mrf.mxu0
  %v1320 = vadd.f32 %v285, %v1319
  %1321 = vmatmul.f32.gmra.mxu0 %v538
  %v1322 = vpop.f32.mrf.mxu0
  %v1323 = vadd.f32 %v285, %v1322
  %1324 = vmatmul.f32.gmra.mxu0 %v541
  %v1325 = vpop.f32.mrf.mxu0
  %v1326 = vadd.f32 %v285, %v1325
  %1327 = vmatmul.f32.gmra.mxu0 %v544
  %v1328 = vpop.f32.mrf.mxu0
  %v1329 = vadd.f32 %v285, %v1328
  %1330 = vmatmul.f32.gmra.mxu0 %v547
  %v1331 = vpop.f32.mrf.mxu0
  %v1332 = vadd.f32 %v285, %v1331
  %1333 = vmatmul.f32.gmra.mxu0 %v550
  %v1334 = vpop.f32.mrf.mxu0
  %v1335 = vadd.f32 %v285, %v1334
  %1336 = vmatmul.f32.gmra.mxu0 %v553
  %v1337 = vpop.f32.mrf.mxu0
  %v1338 = vadd.f32 %v285, %v1337
  %1339 = vmatmul.f32.gmra.mxu0 %v556
  %v1340 = vpop.f32.mrf.mxu0
  %v1341 = vadd.f32 %v285, %v1340
  %1342 = vmatmul.f32.gmra.mxu0 %v559
  %v1343 = vpop.f32.mrf.mxu0
  %v1344 = vadd.f32 %v285, %v1343
  %1345 = vmatmul.f32.gmra.mxu0 %v562
  %v1346 = vpop.f32.mrf.mxu0
  %v1347 = vadd.f32 %v285, %v1346
  %1348 = vmatmul.f32.gmra.mxu0 %v565
  %v1349 = vpop.f32.mrf.mxu0
  %v1350 = vadd.f32 %v285, %v1349
  %1351 = vmatmul.f32.gmra.mxu0 %v568
  %v1352 = vpop.f32.mrf.mxu0
  %v1353 = vadd.f32 %v285, %v1352
  %1354 = vmatmul.f32.gmra.mxu0 %v571
  %v1355 = vpop.f32.mrf.mxu0
  %v1356 = vadd.f32 %v285, %v1355
  %1357 = vmatmul.f32.gmra.mxu0 %v574
  %v1358 = vpop.f32.mrf.mxu0
  %v1359 = vadd.f32 %v285, %v1358
  %1360 = vmatmul.f32.gmra.mxu0 %v577
  %v1361 = vpop.f32.mrf.mxu0
  %v1362 = vadd.f32 %v285, %v1361
  %1363 = vmatmul.f32.gmra.mxu0 %v580
  %v1364 = vpop.f32.mrf.mxu0
  %v1365 = vadd.f32 %v285, %v1364
  %1366 = vmatmul.f32.gmra.mxu0 %v583
  %v1367 = vpop.f32.mrf.mxu0
  %v1368 = vadd.f32 %v285, %v1367
  %1369 = vmatmul.f32.gmra.mxu0 %v586
  %v1370 = vpop.f32.mrf.mxu0
  %v1371 = vadd.f32 %v285, %v1370
  %1372 = vmatmul.f32.gmra.mxu0 %v589
  %v1373 = vpop.f32.mrf.mxu0
  %v1374 = vadd.f32 %v285, %v1373
  %1375 = vmatmul.f32.gmra.mxu0 %v592
  %v1376 = vpop.f32.mrf.mxu0
  %v1377 = vadd.f32 %v285, %v1376
  %1378 = vmatmul.f32.gmra.mxu0 %v595
  %v1379 = vpop.f32.mrf.mxu0
  %v1380 = vadd.f32 %v285, %v1379
  %1381 = vmatmul.f32.gmra.mxu0 %v598
  %v1382 = vpop.f32.mrf.mxu0
  %v1383 = vadd.f32 %v285, %v1382
  %1384 = vmatmul.f32.gmra.mxu0 %v601
  %v1385 = vpop.f32.mrf.mxu0
  %v1386 = vadd.f32 %v285, %v1385
  %1387 = vmatmul.f32.gmra.mxu0 %v604
  %v1388 = vpop.f32.mrf.mxu0
  %v1389 = vadd.f32 %v285, %v1388
  %1390 = vmatmul.f32.gmra.mxu0 %v607
  %v1391 = vpop.f32.mrf.mxu0
  %v1392 = vadd.f32 %v285, %v1391
  %1393 = vmatmul.f32.gmra.mxu0 %v610
  %v1394 = vpop.f32.mrf.mxu0
  %v1395 = vadd.f32 %v285, %v1394
  %1396 = vmatmul.f32.gmra.mxu0 %v613
  %v1397 = vpop.f32.mrf.mxu0
  %v1398 = vadd.f32 %v285, %v1397
  %1399 = vmatmul.f32.gmra.mxu0 %v616
  %v1400 = vpop.f32.mrf.mxu0
  %v1401 = vadd.f32 %v285, %v1400
  %1402 = vmatmul.f32.gmra.mxu0 %v619
  %v1403 = vpop.f32.mrf.mxu0
  %v1404 = vadd.f32 %v285, %v1403
  %1405 = vmatmul.f32.gmra.mxu0 %v622
  %v1406 = vpop.f32.mrf.mxu0
  %v1407 = vadd.f32 %v285, %v1406
  %1408 = vmatmul.f32.gmra.mxu0 %v625
  %v1409 = vpop.f32.mrf.mxu0
  %v1410 = vadd.f32 %v285, %v1409
  %1411 = vmatmul.f32.gmra.mxu0 %v628
  %v1412 = vpop.f32.mrf.mxu0
  %v1413 = vadd.f32 %v285, %v1412
  %1414 = vmatmul.f32.gmra.mxu0 %v631
  %v1415 = vpop.f32.mrf.mxu0
  %v1416 = vadd.f32 %v285, %v1415
  %1417 = vmatmul.f32.gmra.mxu0 %v634
  %v1418 = vpop.f32.mrf.mxu0
  %v1419 = vadd.f32 %v285, %v1418
  %1420 = vmatmul.f32.gmra.mxu0 %v637
  %v1421 = vpop.f32.mrf.mxu0
  %v1422 = vadd.f32 %v285, %v1421
  %1423 = vmatmul.f32.gmra.mxu0 %v640
  %v1424 = vpop.f32.mrf.mxu0
  %v1425 = vadd.f32 %v285, %v1424
  %1426 = vmatmul.f32.gmra.mxu0 %v643
  %v1427 = vpop.f32.mrf.mxu0
  %v1428 = vadd.f32 %v285, %v1427
  %1429 = vmatmul.f32.gmra.mxu0 %v646
  %v1430 = vpop.f32.mrf.mxu0
  %v1431 = vadd.f32 %v285, %v1430
  %1432 = vmatmul.f32.gmra.mxu0 %v649
  %v1433 = vpop.f32.mrf.mxu0
  %v1434 = vadd.f32 %v285, %v1433
  %1435 = vmatmul.f32.gmra.mxu0 %v652
  %v1436 = vpop.f32.mrf.mxu0
  %v1437 = vadd.f32 %v285, %v1436
  %1438 = vmatmul.f32.gmra.mxu0 %v655
  %v1439 = vpop.f32.mrf.mxu0
  %v1440 = vadd.f32 %v285, %v1439
  %1441 = vmatmul.f32.gmra.mxu0 %v658
  %v1442 = vpop.f32.mrf.mxu0
  %v1443 = vadd.f32 %v285, %v1442
  %1444 = vmatmul.f32.gmra.mxu0 %v661
  %v1445 = vpop.f32.mrf.mxu0
  %v1446 = vadd.f32 %v285, %v1445
  %1447 = vmatmul.f32.gmra.mxu0 %v664
  %v1448 = vpop.f32.mrf.mxu0
  %v1449 = vadd.f32 %v285, %v1448
  %1450 = vmatmul.f32.gmra.mxu0 %v667
  %v1451 = vpop.f32.mrf.mxu0
  %v1452 = vadd.f32 %v285, %v1451
  %1453 = vmatmul.f32.gmra.mxu0 %v670
  %v1454 = vpop.f32.mrf.mxu0
  %v1455 = vadd.f32 %v285, %v1454
  %1456 = vmatmul.f32.gmra.mxu0 %v673
  %v1457 = vpop.f32.mrf.mxu0
  %v1458 = vadd.f32 %v285, %v1457
  %1459 = vmatmul.f32.gmra.mxu0 %v676
  %v1460 = vpop.f32.mrf.mxu0
  %v1461 = vadd.f32 %v285, %v1460
  %1462 = vmatmul.f32.gmra.mxu0 %v679
  %v1463 = vpop.f32.mrf.mxu0
  %v1464 = vadd.f32 %v285, %v1463
  %1465 = vmatmul.f32.gmra.mxu0 %v682
  %v1466 = vpop.f32.mrf.mxu0
  %v1467 = vadd.f32 %v285, %v1466
  %1468 = vmatmul.f32.gmra.mxu0 %v685
  %v1469 = vpop.f32.mrf.mxu0
  %v1470 = vadd.f32 %v285, %v1469
  %1471 = vmatmul.f32.gmra.mxu0 %v688
  %v1472 = vpop.f32.mrf.mxu0
  %v1473 = vadd.f32 %v285, %v1472
  %1474 = vmatmul.f32.gmra.mxu0 %v691
  %v1475 = vpop.f32.mrf.mxu0
  %v1476 = vadd.f32 %v285, %v1475
  %1477 = vmatmul.f32.gmra.mxu0 %v694
  %v1478 = vpop.f32.mrf.mxu0
  %v1479 = vadd.f32 %v285, %v1478
  %1480 = vmatmul.f32.gmra.mxu0 %v697
  %v1481 = vpop.f32.mrf.mxu0
  %v1482 = vadd.f32 %v285, %v1481
  %1483 = vmatmul.f32.gmra.mxu0 %v700
  %v1484 = vpop.f32.mrf.mxu0
  %v1485 = vadd.f32 %v285, %v1484
  %1486 = vmatmul.f32.gmra.mxu0 %v703
  %v1487 = vpop.f32.mrf.mxu0
  %v1488 = vadd.f32 %v285, %v1487
  %1489 = vmatmul.f32.gmra.mxu0 %v706
  %v1490 = vpop.f32.mrf.mxu0
  %v1491 = vadd.f32 %v285, %v1490
  %1492 = vmatmul.f32.gmra.mxu0 %v709
  %v1493 = vpop.f32.mrf.mxu0
  %v1494 = vadd.f32 %v285, %v1493
  %1495 = vmatmul.f32.gmra.mxu0 %v712
  %v1496 = vpop.f32.mrf.mxu0
  %v1497 = vadd.f32 %v285, %v1496
  %1498 = vmatmul.f32.gmra.mxu0 %v715
  %v1499 = vpop.f32.mrf.mxu0
  %v1500 = vadd.f32 %v285, %v1499
  %1501 = vmatmul.f32.gmra.mxu0 %v718
  %v1502 = vpop.f32.mrf.mxu0
  %v1503 = vadd.f32 %v285, %v1502
  %1504 = vmatmul.f32.gmra.mxu0 %v721
  %v1505 = vpop.f32.mrf.mxu0
  %v1506 = vadd.f32 %v285, %v1505
  %1507 = vmatmul.f32.gmra.mxu0 %v724
  %v1508 = vpop.f32.mrf.mxu0
  %v1509 = vadd.f32 %v285, %v1508
  %1510 = vmatmul.f32.gmra.mxu0 %v727
  %v1511 = vpop.f32.mrf.mxu0
  %v1512 = vadd.f32 %v285, %v1511
  %1513 = vmatmul.f32.gmra.mxu0 %v730
  %v1514 = vpop.f32.mrf.mxu0
  %v1515 = vadd.f32 %v285, %v1514
  %1516 = vmatmul.f32.gmra.mxu0 %v733
  %v1517 = vpop.f32.mrf.mxu0
  %v1518 = vadd.f32 %v285, %v1517
  %1519 = vmatmul.f32.gmra.mxu0 %v736
  %v1520 = vpop.f32.mrf.mxu0
  %v1521 = vadd.f32 %v285, %v1520
  %1522 = vmatmul.f32.gmra.mxu0 %v739
  %v1523 = vpop.f32.mrf.mxu0
  %v1524 = vadd.f32 %v285, %v1523
  %1525 = vmatmul.f32.gmra.mxu0 %v742
  %v1526 = vpop.f32.mrf.mxu0
  %v1527 = vadd.f32 %v285, %v1526
  %1528 = vmatmul.f32.gmra.mxu0 %v745
  %v1529 = vpop.f32.mrf.mxu0
  %v1530 = vadd.f32 %v285, %v1529
  %1531 = vmatmul.f32.gmra.mxu0 %v748
  %v1532 = vpop.f32.mrf.mxu0
  %v1533 = vadd.f32 %v285, %v1532
  %1534 = vmatmul.f32.gmra.mxu0 %v751
  %v1535 = vpop.f32.mrf.mxu0
  %v1536 = vadd.f32 %v285, %v1535
  %1537 = vmatmul.f32.gmra.mxu0 %v754
  %v1538 = vpop.f32.mrf.mxu0
  %v1539 = vadd.f32 %v285, %v1538
  %1540 = vmatmul.f32.gmra.mxu0 %v757
  %v1541 = vpop.f32.mrf.mxu0
  %v1542 = vadd.f32 %v285, %v1541
  %1543 = vmatmul.f32.gmra.mxu0 %v760
  %v1544 = vpop.f32.mrf.mxu0
  %v1545 = vadd.f32 %v285, %v1544
  %1546 = vmatmul.f32.gmra.mxu0 %v763
  %v1547 = vpop.f32.mrf.mxu0
  %v1548 = vadd.f32 %v285, %v1547
  %1549 = vmatmul.f32.gmra.mxu0 %v766
  %v1550 = vpop.f32.mrf.mxu0
  %v1551 = vadd.f32 %v285, %v1550
  %1552 = vmatmul.f32.gmra.mxu0 %v769
  %v1553 = vpop.f32.mrf.mxu0
  %v1554 = vadd.f32 %v285, %v1553
  %1555 = vmatmul.f32.gmra.mxu0 %v772
  %v1556 = vpop.f32.mrf.mxu0
  %v1557 = vadd.f32 %v285, %v1556
  %1558 = vmatmul.f32.gmra.mxu0 %v775
  %v1559 = vpop.f32.mrf.mxu0
  %v1560 = vadd.f32 %v285, %v1559
  %1561 = vmatmul.f32.gmra.mxu0 %v778
  %v1562 = vpop.f32.mrf.mxu0
  %v1563 = vadd.f32 %v285, %v1562
  %1564 = vmatmul.f32.gmra.mxu0 %v781
  %v1565 = vpop.f32.mrf.mxu0
  %v1566 = vadd.f32 %v285, %v1565
  %1567 = vmatmul.f32.gmra.mxu0 %v784
  %v1568 = vpop.f32.mrf.mxu0
  %v1569 = vadd.f32 %v285, %v1568
  %1570 = vmatmul.f32.gmra.mxu0 %v787
  %v1571 = vpop.f32.mrf.mxu0
  %v1572 = vadd.f32 %v285, %v1571
  %1573 = vmatmul.f32.gmra.mxu0 %v790
  %v1574 = vpop.f32.mrf.mxu0
  %v1575 = vadd.f32 %v285, %v1574
  %1576 = vmatmul.f32.gmra.mxu0 %v793
  %v1577 = vpop.f32.mrf.mxu0
  %v1578 = vadd.f32 %v285, %v1577
  %1579 = vmatmul.f32.gmra.mxu0 %v796
  %v1580 = vpop.f32.mrf.mxu0
  %v1581 = vadd.f32 %v285, %v1580
  %1582 = vmatmul.f32.gmra.mxu0 %v799
  %v1583 = vpop.f32.mrf.mxu0
  %v1584 = vadd.f32 %v285, %v1583
  %1585 = vmatmul.f32.gmra.mxu0 %v802
  %v1586 = vpop.f32.mrf.mxu0
  %v1587 = vadd.f32 %v285, %v1586
  %1588 = vmatmul.f32.gmra.mxu0 %v805
  %v1589 = vpop.f32.mrf.mxu0
  %v1590 = vadd.f32 %v285, %v1589
  %1591 = vmatmul.f32.gmra.mxu0 %v808
  %v1592 = vpop.f32.mrf.mxu0
  %v1593 = vadd.f32 %v285, %v1592
  %1594 = vmatmul.f32.gmra.mxu0 %v811
  %v1595 = vpop.f32.mrf.mxu0
  %v1596 = vadd.f32 %v285, %v1595
  %1597 = vmatmul.f32.gmra.mxu0 %v814
  %v1598 = vpop.f32.mrf.mxu0
  %v1599 = vadd.f32 %v285, %v1598
  %1600 = vmatmul.f32.gmra.mxu0 %v817
  %v1601 = vpop.f32.mrf.mxu0
  %v1602 = vadd.f32 %v285, %v1601
  %1603 = vmatmul.f32.gmra.mxu0 %v820
  %v1604 = vpop.f32.mrf.mxu0
  %v1605 = vadd.f32 %v285, %v1604
  %1606 = vmatmul.f32.gmra.mxu0 %v823
  %v1607 = vpop.f32.mrf.mxu0
  %v1608 = vadd.f32 %v285, %v1607
  %1609 = vmatmul.f32.gmra.mxu0 %v826
  %v1610 = vpop.f32.mrf.mxu0
  %v1611 = vadd.f32 %v285, %v1610
  %1612 = vmatmul.f32.gmra.mxu0 %v829
  %v1613 = vpop.f32.mrf.mxu0
  %v1614 = vadd.f32 %v285, %v1613
  %1615 = vmatmul.f32.gmra.mxu0 %v832
  %v1616 = vpop.f32.mrf.mxu0
  %v1617 = vadd.f32 %v285, %v1616
  %1618 = vmatmul.f32.gmra.mxu0 %v835
  %v1619 = vpop.f32.mrf.mxu0
  %v1620 = vadd.f32 %v285, %v1619
  %1621 = vmatmul.f32.gmra.mxu0 %v838
  %v1622 = vpop.f32.mrf.mxu0
  %v1623 = vadd.f32 %v285, %v1622
  %1624 = vmatmul.f32.gmra.mxu0 %v841
  %v1625 = vpop.f32.mrf.mxu0
  %v1626 = vadd.f32 %v285, %v1625
  %1627 = vmatmul.f32.gmra.mxu0 %v844
  %v1628 = vpop.f32.mrf.mxu0
  %v1629 = vadd.f32 %v285, %v1628
  %1630 = vmatmul.f32.gmra.mxu0 %v847
  %v1631 = vpop.f32.mrf.mxu0
  %v1632 = vadd.f32 %v285, %v1631
  %1633 = vmatmul.f32.gmra.mxu0 %v850
  %v1634 = vpop.f32.mrf.mxu0
  %v1635 = vadd.f32 %v285, %v1634
  %1636 = vmatmul.f32.gmra.mxu0 %v853
  %v1637 = vpop.f32.mrf.mxu0
  %v1638 = vadd.f32 %v285, %v1637
  %1639 = vmatmul.f32.gmra.mxu0 %v856
  %v1640 = vpop.f32.mrf.mxu0
  %v1641 = vadd.f32 %v285, %v1640
  %1642 = vmatmul.f32.gmra.mxu0 %v859
  %v1643 = vpop.f32.mrf.mxu0
  %v1644 = vadd.f32 %v285, %v1643
  %1645 = vmatmul.f32.gmra.mxu0 %v862
  %v1646 = vpop.f32.mrf.mxu0
  %v1647 = vadd.f32 %v285, %v1646
  %1648 = vmatmul.f32.gmra.mxu0 %v865
  %v1649 = vpop.f32.mrf.mxu0
  %v1650 = vadd.f32 %v285, %v1649
  %1651 = vmatmul.f32.gmra.mxu0 %v868
  %v1652 = vpop.f32.mrf.mxu0
  %v1653 = vadd.f32 %v285, %v1652
  %1654 = vmatmul.f32.gmra.mxu0 %v871
  %v1655 = vpop.f32.mrf.mxu0
  %v1656 = vadd.f32 %v285, %v1655
  %1657 = vmatmul.f32.gmra.mxu0 %v874
  %v1658 = vpop.f32.mrf.mxu0
  %v1659 = vadd.f32 %v285, %v1658
  %1660 = vmatmul.f32.gmra.mxu0 %v877
  %v1661 = vpop.f32.mrf.mxu0
  %v1662 = vadd.f32 %v285, %v1661
  %1663 = vmatmul.f32.gmra.mxu0 %v880
  %v1664 = vpop.f32.mrf.mxu0
  %v1665 = vadd.f32 %v285, %v1664
  %1666 = vmatmul.f32.gmra.mxu0 %v883
  %v1667 = vpop.f32.mrf.mxu0
  %v1668 = vadd.f32 %v285, %v1667
  %1669 = vmatmul.f32.gmra.mxu0 %v886
  %v1670 = vpop.f32.mrf.mxu0
  %v1671 = vadd.f32 %v285, %v1670
  %1672 = vmatmul.f32.gmra.mxu0 %v889
  %v1673 = vpop.f32.mrf.mxu0
  %v1674 = vadd.f32 %v285, %v1673
  %1675 = vmatmul.f32.gmra.mxu0 %v892
  %v1676 = vpop.f32.mrf.mxu0
  %v1677 = vadd.f32 %v285, %v1676
  %1678 = vmatmul.f32.gmra.mxu0 %v895
  %v1679 = vpop.f32.mrf.mxu0
  %v1680 = vadd.f32 %v285, %v1679
  %1681 = vmatmul.f32.gmra.mxu0 %v898
  %v1682 = vpop.f32.mrf.mxu0
  %v1683 = vadd.f32 %v285, %v1682
  %1684 = vmatmul.f32.gmra.mxu0 %v901
  %v1685 = vpop.f32.mrf.mxu0
  %v1686 = vadd.f32 %v285, %v1685
  %1687 = vmatmul.f32.gmra.mxu0 %v904
  %v1688 = vpop.f32.mrf.mxu0
  %v1689 = vadd.f32 %v285, %v1688
  %1690 = vmatmul.f32.gmra.mxu0 %v907
  %v1691 = vpop.f32.mrf.mxu0
  %v1692 = vadd.f32 %v285, %v1691
  %1693 = vmatmul.f32.gmra.mxu0 %v910
  %v1694 = vpop.f32.mrf.mxu0
  %v1695 = vadd.f32 %v285, %v1694
  %1696 = vmatmul.f32.gmra.mxu0 %v913
  %v1697 = vpop.f32.mrf.mxu0
  %v1698 = vadd.f32 %v285, %v1697
  %1699 = vmatmul.f32.gmra.mxu0 %v916
  %v1700 = vpop.f32.mrf.mxu0
  %v1701 = vadd.f32 %v285, %v1700
  %1702 = vmatmul.f32.gmra.mxu0 %v919
  %v1703 = vpop.f32.mrf.mxu0
  %v1704 = vadd.f32 %v285, %v1703
  %1705 = vmatmul.f32.gmra.mxu0 %v922
  %v1706 = vpop.f32.mrf.mxu0
  %v1707 = vadd.f32 %v285, %v1706
  %1708 = vmatmul.f32.gmra.mxu0 %v925
  %v1709 = vpop.f32.mrf.mxu0
  %v1710 = vadd.f32 %v285, %v1709
  %1711 = vmatmul.f32.gmra.mxu0 %v928
  %v1712 = vpop.f32.mrf.mxu0
  %v1713 = vadd.f32 %v285, %v1712
  %1714 = vmatmul.f32.gmra.mxu0 %v931
  %v1715 = vpop.f32.mrf.mxu0
  %v1716 = vadd.f32 %v285, %v1715
  %1717 = vmatmul.f32.gmra.mxu0 %v934
  %v1718 = vpop.f32.mrf.mxu0
  %v1719 = vadd.f32 %v285, %v1718
  %1720 = vmatmul.f32.gmra.mxu0 %v937
  %v1721 = vpop.f32.mrf.mxu0
  %v1722 = vadd.f32 %v285, %v1721
  %1723 = vmatmul.f32.gmra.mxu0 %v940
  %v1724 = vpop.f32.mrf.mxu0
  %v1725 = vadd.f32 %v285, %v1724
  %1726 = vmatmul.f32.gmra.mxu0 %v943
  %v1727 = vpop.f32.mrf.mxu0
  %v1728 = vadd.f32 %v285, %v1727
  %1729 = vmatmul.f32.gmra.mxu0 %v946
  %v1730 = vpop.f32.mrf.mxu0
  %v1731 = vadd.f32 %v285, %v1730
  %1732 = vmatmul.f32.gmra.mxu0 %v949
  %v1733 = vpop.f32.mrf.mxu0
  %v1734 = vadd.f32 %v285, %v1733
  %1735 = vmatmul.f32.gmra.mxu0 %v952
  %v1736 = vpop.f32.mrf.mxu0
  %v1737 = vadd.f32 %v285, %v1736
  %1738 = vmatmul.f32.gmra.mxu0 %v955
  %v1739 = vpop.f32.mrf.mxu0
  %v1740 = vadd.f32 %v285, %v1739
  %1741 = vmatmul.f32.gmra.mxu0 %v958
  %v1742 = vpop.f32.mrf.mxu0
  %v1743 = vadd.f32 %v285, %v1742
  %1744 = vmatmul.f32.gmra.mxu0 %v961
  %v1745 = vpop.f32.mrf.mxu0
  %v1746 = vadd.f32 %v285, %v1745
  %1747 = vmatmul.f32.gmra.mxu0 %v964
  %v1748 = vpop.f32.mrf.mxu0
  %v1749 = vadd.f32 %v285, %v1748
  %1750 = vmatmul.f32.gmra.mxu0 %v967
  %v1751 = vpop.f32.mrf.mxu0
  %v1752 = vadd.f32 %v285, %v1751
  %1753 = vmatmul.f32.gmra.mxu0 %v970
  %v1754 = vpop.f32.mrf.mxu0
  %v1755 = vadd.f32 %v285, %v1754
  %1756 = vmatmul.f32.gmra.mxu0 %v973
  %v1757 = vpop.f32.mrf.mxu0
  %v1758 = vadd.f32 %v285, %v1757
  %1759 = vmatmul.f32.gmra.mxu0 %v976
  %v1760 = vpop.f32.mrf.mxu0
  %v1761 = vadd.f32 %v285, %v1760
  %1762 = vmatmul.f32.gmra.mxu0 %v979
  %v1763 = vpop.f32.mrf.mxu0
  %v1764 = vadd.f32 %v285, %v1763
  %1765 = vmatmul.f32.gmra.mxu0 %v982
  %v1766 = vpop.f32.mrf.mxu0
  %v1767 = vadd.f32 %v285, %v1766
  %1768 = vmatmul.f32.gmra.mxu0 %v985
  %v1769 = vpop.f32.mrf.mxu0
  %v1770 = vadd.f32 %v285, %v1769
  %1771 = vmatmul.f32.gmra.mxu0 %v988
  %v1772 = vpop.f32.mrf.mxu0
  %v1773 = vadd.f32 %v285, %v1772
  %1774 = vmatmul.f32.gmra.mxu0 %v991
  %v1775 = vpop.f32.mrf.mxu0
  %v1776 = vadd.f32 %v285, %v1775
  %1777 = vmatmul.f32.gmra.mxu0 %v994
  %v1778 = vpop.f32.mrf.mxu0
  %v1779 = vadd.f32 %v285, %v1778
  %1780 = vmatmul.f32.gmra.mxu0 %v997
  %v1781 = vpop.f32.mrf.mxu0
  %v1782 = vadd.f32 %v285, %v1781
  %1783 = vmatmul.f32.gmra.mxu0 %v1000
  %v1784 = vpop.f32.mrf.mxu0
  %v1785 = vadd.f32 %v285, %v1784
  %1786 = vmatmul.f32.gmra.mxu0 %v1003
  %v1787 = vpop.f32.mrf.mxu0
  %v1788 = vadd.f32 %v285, %v1787
  %1789 = vmatmul.f32.gmra.mxu0 %v1006
  %v1790 = vpop.f32.mrf.mxu0
  %v1791 = vadd.f32 %v285, %v1790
  %1792 = vmatmul.f32.gmra.mxu0 %v1009
  %v1793 = vpop.f32.mrf.mxu0
  %v1794 = vadd.f32 %v285, %v1793
  %1795 = vmatmul.f32.gmra.mxu0 %v1012
  %v1796 = vpop.f32.mrf.mxu0
  %v1797 = vadd.f32 %v285, %v1796
  %1798 = vmatmul.f32.gmra.mxu0 %v1015
  %v1799 = vpop.f32.mrf.mxu0
  %v1800 = vadd.f32 %v285, %v1799
  %1801 = vmatmul.f32.gmra.mxu0 %v1018
  %v1802 = vpop.f32.mrf.mxu0
  %v1803 = vadd.f32 %v285, %v1802
  %1804 = vmatmul.f32.gmra.mxu0 %v1021
  %v1805 = vpop.f32.mrf.mxu0
  %v1806 = vadd.f32 %v285, %v1805
  %1807 = vmatmul.f32.gmra.mxu0 %v1024
  %v1808 = vpop.f32.mrf.mxu0
  %v1809 = vadd.f32 %v285, %v1808
  %1810 = vmatmul.f32.gmra.mxu0 %v1027
  %v1811 = vpop.f32.mrf.mxu0
  %v1812 = vadd.f32 %v285, %v1811
  %1813 = vmatmul.f32.gmra.mxu0 %v1030
  %v1814 = vpop.f32.mrf.mxu0
  %v1815 = vadd.f32 %v285, %v1814
  %1816 = vmatmul.f32.gmra.mxu0 %v1033
  %v1817 = vpop.f32.mrf.mxu0
  %v1818 = vadd.f32 %v285, %v1817
  %1819 = vmatmul.f32.gmra.mxu0 %v1036
  %v1820 = vpop.f32.mrf.mxu0
  %v1821 = vadd.f32 %v285, %v1820
  %1822 = vmatmul.f32.gmra.mxu0 %v1039
  %v1823 = vpop.f32.mrf.mxu0
  %v1824 = vadd.f32 %v285, %v1823
  %1825 = vmatmul.f32.gmra.mxu0 %v1042
  %v1826 = vpop.f32.mrf.mxu0
  %v1827 = vadd.f32 %v285, %v1826
  %1828 = vmatmul.f32.gmra.mxu0 %v1045
  %v1829 = vpop.f32.mrf.mxu0
  %v1830 = vadd.f32 %v285, %v1829
  %1831 = vmatmul.f32.gmra.mxu0 %v1048
  %v1832 = vpop.f32.mrf.mxu0
  %v1833 = vadd.f32 %v285, %v1832
  %1834 = vmatmul.f32.gmra.mxu0 %v1051
  %v1835 = vpop.f32.mrf.mxu0
  %v1836 = vadd.f32 %v285, %v1835
  %1837 = vmatmul.f32.gmra.mxu0 %v1054
  %v1838 = vpop.f32.mrf.mxu0
  %v1839 = vadd.f32 %v285, %v1838
  %1840 = vdwg.mxu0
  %v1841 = vmax.f32 %v1074, 0.0
  %v1842 = vmax.f32 %v1077, 0.0
  %v1843 = vmax.f32 %v1080, 0.0
  %v1844 = vmax.f32 %v1083, 0.0
  %v1845 = vmax.f32 %v1086, 0.0
  %v1846 = vmax.f32 %v1089, 0.0
  %v1847 = vmax.f32 %v1092, 0.0
  %v1848 = vmax.f32 %v1095, 0.0
  %v1849 = vmax.f32 %v1098, 0.0
  %v1850 = vmax.f32 %v1101, 0.0
  %v1851 = vmax.f32 %v1104, 0.0
  %v1852 = vmax.f32 %v1107, 0.0
  %v1853 = vmax.f32 %v1110, 0.0
  %v1854 = vmax.f32 %v1113, 0.0
  %v1855 = vmax.f32 %v1116, 0.0
  %v1856 = vmax.f32 %v1119, 0.0
  %v1857 = vmax.f32 %v1122, 0.0
  %v1858 = vmax.f32 %v1125, 0.0
  %v1859 = vmax.f32 %v1128, 0.0
  %v1860 = vmax.f32 %v1131, 0.0
  %v1861 = vmax.f32 %v1134, 0.0
  %v1862 = vmax.f32 %v1137, 0.0
  %v1863 = vmax.f32 %v1140, 0.0
  %v1864 = vmax.f32 %v1143, 0.0
  %v1865 = vmax.f32 %v1146, 0.0
  %v1866 = vmax.f32 %v1149, 0.0
  %v1867 = vmax.f32 %v1152, 0.0
  %v1868 = vmax.f32 %v1155, 0.0
  %v1869 = vmax.f32 %v1158, 0.0
  %v1870 = vmax.f32 %v1161, 0.0
  %v1871 = vmax.f32 %v1164, 0.0
  %v1872 = vmax.f32 %v1167, 0.0
  %v1873 = vmax.f32 %v1170, 0.0
  %v1874 = vmax.f32 %v1173, 0.0
  %v1875 = vmax.f32 %v1176, 0.0
  %v1876 = vmax.f32 %v1179, 0.0
  %v1877 = vmax.f32 %v1182, 0.0
  %v1878 = vmax.f32 %v1185, 0.0
  %v1879 = vmax.f32 %v1188, 0.0
  %v1880 = vmax.f32 %v1191, 0.0
  %v1881 = vmax.f32 %v1194, 0.0
  %v1882 = vmax.f32 %v1197, 0.0
  %v1883 = vmax.f32 %v1200, 0.0
  %v1884 = vmax.f32 %v1203, 0.0
  %v1885 = vmax.f32 %v1206, 0.0
  %v1886 = vmax.f32 %v1209, 0.0
  %v1887 = vmax.f32 %v1212, 0.0
  %v1888 = vmax.f32 %v1215, 0.0
  %v1889 = vmax.f32 %v1218, 0.0
  %v1890 = vmax.f32 %v1221, 0.0
  %v1891 = vmax.f32 %v1224, 0.0
  %v1892 = vmax.f32 %v1227, 0.0
  %v1893 = vmax.f32 %v1230, 0.0
  %v1894 = vmax.f32 %v1233, 0.0
  %v1895 = vmax.f32 %v1236, 0.0
  %v1896 = vmax.f32 %v1239, 0.0
  %v1897 = vmax.f32 %v1242, 0.0
  %v1898 = vmax.f32 %v1245, 0.0
  %v1899 = vmax.f32 %v1248, 0.0
  %v1900 = vmax.f32 %v1251, 0.0
  %v1901 = vmax.f32 %v1254, 0.0
  %v1902 = vmax.f32 %v1257, 0.0
  %v1903 = vmax.f32 %v1260, 0.0
  %v1904 = vmax.f32 %v1263, 0.0
  %v1905 = vmax.f32 %v1266, 0.0
  %v1906 = vmax.f32 %v1269, 0.0
  %v1907 = vmax.f32 %v1272, 0.0
  %v1908 = vmax.f32 %v1275, 0.0
  %v1909 = vmax.f32 %v1278, 0.0
  %v1910 = vmax.f32 %v1281, 0.0
  %v1911 = vmax.f32 %v1284, 0.0
  %v1912 = vmax.f32 %v1287, 0.0
  %v1913 = vmax.f32 %v1290, 0.0
  %v1914 = vmax.f32 %v1293, 0.0
  %v1915 = vmax.f32 %v1296, 0.0
  %v1916 = vmax.f32 %v1299, 0.0
  %v1917 = vmax.f32 %v1302, 0.0
  %v1918 = vmax.f32 %v1305, 0.0
  %v1919 = vmax.f32 %v1308, 0.0
  %v1920 = vmax.f32 %v1311, 0.0
  %v1921 = vmax.f32 %v1314, 0.0
  %v1922 = vmax.f32 %v1317, 0.0
  %v1923 = vmax.f32 %v1320, 0.0
  %v1924 = vmax.f32 %v1323, 0.0
  %v1925 = vmax.f32 %v1326, 0.0
  %v1926 = vmax.f32 %v1329, 0.0
  %v1927 = vmax.f32 %v1332, 0.0
  %v1928 = vmax.f32 %v1335, 0.0
  %v1929 = vmax.f32 %v1338, 0.0
  %v1930 = vmax.f32 %v1341, 0.0
  %v1931 = vmax.f32 %v1344, 0.0
  %v1932 = vmax.f32 %v1347, 0.0
  %v1933 = vmax.f32 %v1350, 0.0
  %v1934 = vmax.f32 %v1353, 0.0
  %v1935 = vmax.f32 %v1356, 0.0
  %v1936 = vmax.f32 %v1359, 0.0
  %v1937 = vmax.f32 %v1362, 0.0
  %v1938 = vmax.f32 %v1365, 0.0
  %v1939 = vmax.f32 %v1368, 0.0
  %v1940 = vmax.f32 %v1371, 0.0
  %v1941 = vmax.f32 %v1374, 0.0
  %v1942 = vmax.f32 %v1377, 0.0
  %v1943 = vmax.f32 %v1380, 0.0
  %v1944 = vmax.f32 %v1383, 0.0
  %v1945 = vmax.f32 %v1386, 0.0
  %v1946 = vmax.f32 %v1389, 0.0
  %v1947 = vmax.f32 %v1392, 0.0
  %v1948 = vmax.f32 %v1395, 0.0
  %v1949 = vmax.f32 %v1398, 0.0
  %v1950 = vmax.f32 %v1401, 0.0
  %v1951 = vmax.f32 %v1404, 0.0
  %v1952 = vmax.f32 %v1407, 0.0
  %v1953 = vmax.f32 %v1410, 0.0
  %v1954 = vmax.f32 %v1413, 0.0
  %v1955 = vmax.f32 %v1416, 0.0
  %v1956 = vmax.f32 %v1419, 0.0
  %v1957 = vmax.f32 %v1422, 0.0
  %v1958 = vmax.f32 %v1425, 0.0
  %v1959 = vmax.f32 %v1428, 0.0
  %v1960 = vmax.f32 %v1431, 0.0
  %v1961 = vmax.f32 %v1434, 0.0
  %v1962 = vmax.f32 %v1437, 0.0
  %v1963 = vmax.f32 %v1440, 0.0
  %v1964 = vmax.f32 %v1443, 0.0
  %v1965 = vmax.f32 %v1446, 0.0
  %v1966 = vmax.f32 %v1449, 0.0
  %v1967 = vmax.f32 %v1452, 0.0
  %v1968 = vmax.f32 %v1455, 0.0
  %v1969 = vmax.f32 %v1458, 0.0
  %v1970 = vmax.f32 %v1461, 0.0
  %v1971 = vmax.f32 %v1464, 0.0
  %v1972 = vmax.f32 %v1467, 0.0
  %v1973 = vmax.f32 %v1470, 0.0
  %v1974 = vmax.f32 %v1473, 0.0
  %v1975 = vmax.f32 %v1476, 0.0
  %v1976 = vmax.f32 %v1479, 0.0
  %v1977 = vmax.f32 %v1482, 0.0
  %v1978 = vmax.f32 %v1485, 0.0
  %v1979 = vmax.f32 %v1488, 0.0
  %v1980 = vmax.f32 %v1491, 0.0
  %v1981 = vmax.f32 %v1494, 0.0
  %v1982 = vmax.f32 %v1497, 0.0
  %v1983 = vmax.f32 %v1500, 0.0
  %v1984 = vmax.f32 %v1503, 0.0
  %v1985 = vmax.f32 %v1506, 0.0
  %v1986 = vmax.f32 %v1509, 0.0
  %v1987 = vmax.f32 %v1512, 0.0
  %v1988 = vmax.f32 %v1515, 0.0
  %v1989 = vmax.f32 %v1518, 0.0
  %v1990 = vmax.f32 %v1521, 0.0
  %v1991 = vmax.f32 %v1524, 0.0
  %v1992 = vmax.f32 %v1527, 0.0
  %v1993 = vmax.f32 %v1530, 0.0
  %v1994 = vmax.f32 %v1533, 0.0
  %v1995 = vmax.f32 %v1536, 0.0
  %v1996 = vmax.f32 %v1539, 0.0
  %v1997 = vmax.f32 %v1542, 0.0
  %v1998 = vmax.f32 %v1545, 0.0
  %v1999 = vmax.f32 %v1548, 0.0
  %v2000 = vmax.f32 %v1551, 0.0
  %v2001 = vmax.f32 %v1554, 0.0
  %v2002 = vmax.f32 %v1557, 0.0
  %v2003 = vmax.f32 %v1560, 0.0
  %v2004 = vmax.f32 %v1563, 0.0
  %v2005 = vmax.f32 %v1566, 0.0
  %v2006 = vmax.f32 %v1569, 0.0
  %v2007 = vmax.f32 %v1572, 0.0
  %v2008 = vmax.f32 %v1575, 0.0
  %v2009 = vmax.f32 %v1578, 0.0
  %v2010 = vmax.f32 %v1581, 0.0
  %v2011 = vmax.f32 %v1584, 0.0
  %v2012 = vmax.f32 %v1587, 0.0
  %v2013 = vmax.f32 %v1590, 0.0
  %v2014 = vmax.f32 %v1593, 0.0
  %v2015 = vmax.f32 %v1596, 0.0
  %v2016 = vmax.f32 %v1599, 0.0
  %v2017 = vmax.f32 %v1602, 0.0
  %v2018 = vmax.f32 %v1605, 0.0
  %v2019 = vmax.f32 %v1608, 0.0
  %v2020 = vmax.f32 %v1611, 0.0
  %v2021 = vmax.f32 %v1614, 0.0
  %v2022 = vmax.f32 %v1617, 0.0
  %v2023 = vmax.f32 %v1620, 0.0
  %v2024 = vmax.f32 %v1623, 0.0
  %v2025 = vmax.f32 %v1626, 0.0
  %v2026 = vmax.f32 %v1629, 0.0
  %v2027 = vmax.f32 %v1632, 0.0
  %v2028 = vmax.f32 %v1635, 0.0
  %v2029 = vmax.f32 %v1638, 0.0
  %v2030 = vmax.f32 %v1641, 0.0
  %v2031 = vmax.f32 %v1644, 0.0
  %v2032 = vmax.f32 %v1647, 0.0
  %v2033 = vmax.f32 %v1650, 0.0
  %v2034 = vmax.f32 %v1653, 0.0
  %v2035 = vmax.f32 %v1656, 0.0
  %v2036 = vmax.f32 %v1659, 0.0
  %v2037 = vmax.f32 %v1662, 0.0
  %v2038 = vmax.f32 %v1665, 0.0
  %v2039 = vmax.f32 %v1668, 0.0
  %v2040 = vmax.f32 %v1671, 0.0
  %v2041 = vmax.f32 %v1674, 0.0
  %v2042 = vmax.f32 %v1677, 0.0
  %v2043 = vmax.f32 %v1680, 0.0
  %v2044 = vmax.f32 %v1683, 0.0
  %v2045 = vmax.f32 %v1686, 0.0
  %v2046 = vmax.f32 %v1689, 0.0
  %v2047 = vmax.f32 %v1692, 0.0
  %v2048 = vmax.f32 %v1695, 0.0
  %v2049 = vmax.f32 %v1698, 0.0
  %v2050 = vmax.f32 %v1701, 0.0
  %v2051 = vmax.f32 %v1704, 0.0
  %v2052 = vmax.f32 %v1707, 0.0
  %v2053 = vmax.f32 %v1710, 0.0
  %v2054 = vmax.f32 %v1713, 0.0
  %v2055 = vmax.f32 %v1716, 0.0
  %v2056 = vmax.f32 %v1719, 0.0
  %v2057 = vmax.f32 %v1722, 0.0
  %v2058 = vmax.f32 %v1725, 0.0
  %v2059 = vmax.f32 %v1728, 0.0
  %v2060 = vmax.f32 %v1731, 0.0
  %v2061 = vmax.f32 %v1734, 0.0
  %v2062 = vmax.f32 %v1737, 0.0
  %v2063 = vmax.f32 %v1740, 0.0
  %v2064 = vmax.f32 %v1743, 0.0
  %v2065 = vmax.f32 %v1746, 0.0
  %v2066 = vmax.f32 %v1749, 0.0
  %v2067 = vmax.f32 %v1752, 0.0
  %v2068 = vmax.f32 %v1755, 0.0
  %v2069 = vmax.f32 %v1758, 0.0
  %v2070 = vmax.f32 %v1761, 0.0
  %v2071 = vmax.f32 %v1764, 0.0
  %v2072 = vmax.f32 %v1767, 0.0
  %v2073 = vmax.f32 %v1770, 0.0
  %v2074 = vmax.f32 %v1773, 0.0
  %v2075 = vmax.f32 %v1776, 0.0
  %v2076 = vmax.f32 %v1779, 0.0
  %v2077 = vmax.f32 %v1782, 0.0
  %v2078 = vmax.f32 %v1785, 0.0
  %v2079 = vmax.f32 %v1788, 0.0
  %v2080 = vmax.f32 %v1791, 0.0
  %v2081 = vmax.f32 %v1794, 0.0
  %v2082 = vmax.f32 %v1797, 0.0
  %v2083 = vmax.f32 %v1800, 0.0
  %v2084 = vmax.f32 %v1803, 0.0
  %v2085 = vmax.f32 %v1806, 0.0
  %v2086 = vmax.f32 %v1809, 0.0
  %v2087 = vmax.f32 %v1812, 0.0
  %v2088 = vmax.f32 %v1815, 0.0
  %v2089 = vmax.f32 %v1818, 0.0
  %v2090 = vmax.f32 %v1821, 0.0
  %v2091 = vmax.f32 %v1824, 0.0
  %v2092 = vmax.f32 %v1827, 0.0
  %v2093 = vmax.f32 %v1830, 0.0
  %v2094 = vmax.f32 %v1833, 0.0
  %v2095 = vmax.f32 %v1836, 0.0
  %v2096 = vmax.f32 %v1839, 0.0
  %v2097 = vld [vmem:[%s3] sm:$0xff]
  %v2098 = vld [vmem:[%s3 + $0x8] sm:$0xff]
  %v2099 = vld [vmem:[%s3 + $0x10] sm:$0xff]
  %v2100 = vld [vmem:[%s3 + $0x18] sm:$0xff]
  %v2101 = vld [vmem:[%s4] sm:$0x1]
  %v2103 = vperm.slane %v2101, 0
  %vm2105 = vcmask 261120
  %v2107 = vsel %vm2105, %v1841, 0
  %v2110 = vsel %vm2105, %v1842, 0
  %v2113 = vsel %vm2105, %v1843, 0
  %v2116 = vsel %vm2105, %v1844, 0
  %v2119 = vsel %vm2105, %v1845, 0
  %v2122 = vsel %vm2105, %v1846, 0
  %v2125 = vsel %vm2105, %v1847, 0
  %v2128 = vsel %vm2105, %v1848, 0
  %v2131 = vsel %vm2105, %v1849, 0
  %v2134 = vsel %vm2105, %v1850, 0
  %v2137 = vsel %vm2105, %v1851, 0
  %v2140 = vsel %vm2105, %v1852, 0
  %v2143 = vsel %vm2105, %v1853, 0
  %v2146 = vsel %vm2105, %v1854, 0
  %v2149 = vsel %vm2105, %v1855, 0
  %v2152 = vsel %vm2105, %v1856, 0
  %v2155 = vsel %vm2105, %v1857, 0
  %v2158 = vsel %vm2105, %v1858, 0
  %v2161 = vsel %vm2105, %v1859, 0
  %v2164 = vsel %vm2105, %v1860, 0
  %v2167 = vsel %vm2105, %v1861, 0
  %v2170 = vsel %vm2105, %v1862, 0
  %v2173 = vsel %vm2105, %v1863, 0
  %v2176 = vsel %vm2105, %v1864, 0
  %v2179 = vsel %vm2105, %v1865, 0
  %v2182 = vsel %vm2105, %v1866, 0
  %v2185 = vsel %vm2105, %v1867, 0
  %v2188 = vsel %vm2105, %v1868, 0
  %v2191 = vsel %vm2105, %v1869, 0
  %v2194 = vsel %vm2105, %v1870, 0
  %v2197 = vsel %vm2105, %v1871, 0
  %v2200 = vsel %vm2105, %v1872, 0
  %v2203 = vsel %vm2105, %v1873, 0
  %v2206 = vsel %vm2105, %v1874, 0
  %v2209 = vsel %vm2105, %v1875, 0
  %v2212 = vsel %vm2105, %v1876, 0
  %v2215 = vsel %vm2105, %v1877, 0
  %v2218 = vsel %vm2105, %v1878, 0
  %v2221 = vsel %vm2105, %v1879, 0
  %v2224 = vsel %vm2105, %v1880, 0
  %v2227 = vsel %vm2105, %v1881, 0
  %v2230 = vsel %vm2105, %v1882, 0
  %v2233 = vsel %vm2105, %v1883, 0
  %v2236 = vsel %vm2105, %v1884, 0
  %v2239 = vsel %vm2105, %v1885, 0
  %v2242 = vsel %vm2105, %v1886, 0
  %v2245 = vsel %vm2105, %v1887, 0
  %v2248 = vsel %vm2105, %v1888, 0
  %v2251 = vsel %vm2105, %v1889, 0
  %v2254 = vsel %vm2105, %v1890, 0
  %v2257 = vsel %vm2105, %v1891, 0
  %v2260 = vsel %vm2105, %v1892, 0
  %v2263 = vsel %vm2105, %v1893, 0
  %v2266 = vsel %vm2105, %v1894, 0
  %v2269 = vsel %vm2105, %v1895, 0
  %v2272 = vsel %vm2105, %v1896, 0
  %v2275 = vsel %vm2105, %v1897, 0
  %v2278 = vsel %vm2105, %v1898, 0
  %v2281 = vsel %vm2105, %v1899, 0
  %v2284 = vsel %vm2105, %v1900, 0
  %v2287 = vsel %vm2105, %v1901, 0
  %v2290 = vsel %vm2105, %v1902, 0
  %v2293 = vsel %vm2105, %v1903, 0
  %v2296 = vsel %vm2105, %v1904, 0
  %v2299 = vsel %vm2105, %v1905, 0
  %v2302 = vsel %vm2105, %v1906, 0
  %v2305 = vsel %vm2105, %v1907, 0
  %v2308 = vsel %vm2105, %v1908, 0
  %v2311 = vsel %vm2105, %v1909, 0
  %v2314 = vsel %vm2105, %v1910, 0
  %v2317 = vsel %vm2105, %v1911, 0
  %v2320 = vsel %vm2105, %v1912, 0
  %v2323 = vsel %vm2105, %v1913, 0
  %v2326 = vsel %vm2105, %v1914, 0
  %v2329 = vsel %vm2105, %v1915, 0
  %v2332 = vsel %vm2105, %v1916, 0
  %v2335 = vsel %vm2105, %v1917, 0
  %v2338 = vsel %vm2105, %v1918, 0
  %v2341 = vsel %vm2105, %v1919, 0
  %v2344 = vsel %vm2105, %v1920, 0
  %v2347 = vsel %vm2105, %v1921, 0
  %v2350 = vsel %vm2105, %v1922, 0
  %v2353 = vsel %vm2105, %v1923, 0
  %v2356 = vsel %vm2105, %v1924, 0
  %v2359 = vsel %vm2105, %v1925, 0
  %v2362 = vsel %vm2105, %v1926, 0
  %v2365 = vsel %vm2105, %v1927, 0
  %v2368 = vsel %vm2105, %v1928, 0
  %v2371 = vsel %vm2105, %v1929, 0
  %v2374 = vsel %vm2105, %v1930, 0
  %v2377 = vsel %vm2105, %v1931, 0
  %v2380 = vsel %vm2105, %v1932, 0
  %v2383 = vsel %vm2105, %v1933, 0
  %v2386 = vsel %vm2105, %v1934, 0
  %v2389 = vsel %vm2105, %v1935, 0
  %v2392 = vsel %vm2105, %v1936, 0
  %v2395 = vsel %vm2105, %v1937, 0
  %v2398 = vsel %vm2105, %v1938, 0
  %v2401 = vsel %vm2105, %v1939, 0
  %v2404 = vsel %vm2105, %v1940, 0
  %v2407 = vsel %vm2105, %v1941, 0
  %v2410 = vsel %vm2105, %v1942, 0
  %v2413 = vsel %vm2105, %v1943, 0
  %v2416 = vsel %vm2105, %v1944, 0
  %v2419 = vsel %vm2105, %v1945, 0
  %v2422 = vsel %vm2105, %v1946, 0
  %v2425 = vsel %vm2105, %v1947, 0
  %v2428 = vsel %vm2105, %v1948, 0
  %v2431 = vsel %vm2105, %v1949, 0
  %v2434 = vsel %vm2105, %v1950, 0
  %v2437 = vsel %vm2105, %v1951, 0
  %v2440 = vsel %vm2105, %v1952, 0
  %v2443 = vsel %vm2105, %v1953, 0
  %v2446 = vsel %vm2105, %v1954, 0
  %v2449 = vsel %vm2105, %v1955, 0
  %v2452 = vsel %vm2105, %v1956, 0
  %v2455 = vsel %vm2105, %v1957, 0
  %v2458 = vsel %vm2105, %v1958, 0
  %v2461 = vsel %vm2105, %v1959, 0
  %v2464 = vsel %vm2105, %v1960, 0
  %v2467 = vsel %vm2105, %v1961, 0
  %v2470 = vsel %vm2105, %v1962, 0
  %v2473 = vsel %vm2105, %v1963, 0
  %v2476 = vsel %vm2105, %v1964, 0
  %v2479 = vsel %vm2105, %v1965, 0
  %v2482 = vsel %vm2105, %v1966, 0
  %v2485 = vsel %vm2105, %v1967, 0
  %v2488 = vsel %vm2105, %v1968, 0
  %v2491 = vsel %vm2105, %v1969, 0
  %v2494 = vsel %vm2105, %v1970, 0
  %v2497 = vsel %vm2105, %v1971, 0
  %v2500 = vsel %vm2105, %v1972, 0
  %v2503 = vsel %vm2105, %v1973, 0
  %v2506 = vsel %vm2105, %v1974, 0
  %v2509 = vsel %vm2105, %v1975, 0
  %v2512 = vsel %vm2105, %v1976, 0
  %v2515 = vsel %vm2105, %v1977, 0
  %v2518 = vsel %vm2105, %v1978, 0
  %v2521 = vsel %vm2105, %v1979, 0
  %v2524 = vsel %vm2105, %v1980, 0
  %v2527 = vsel %vm2105, %v1981, 0
  %v2530 = vsel %vm2105, %v1982, 0
  %v2533 = vsel %vm2105, %v1983, 0
  %v2536 = vsel %vm2105, %v1984, 0
  %v2539 = vsel %vm2105, %v1985, 0
  %v2542 = vsel %vm2105, %v1986, 0
  %v2545 = vsel %vm2105, %v1987, 0
  %v2548 = vsel %vm2105, %v1988, 0
  %v2551 = vsel %vm2105, %v1989, 0
  %v2554 = vsel %vm2105, %v1990, 0
  %v2557 = vsel %vm2105, %v1991, 0
  %v2560 = vsel %vm2105, %v1992, 0
  %v2563 = vsel %vm2105, %v1993, 0
  %v2566 = vsel %vm2105, %v1994, 0
  %v2569 = vsel %vm2105, %v1995, 0
  %v2572 = vsel %vm2105, %v1996, 0
  %v2575 = vsel %vm2105, %v1997, 0
  %v2578 = vsel %vm2105, %v1998, 0
  %v2581 = vsel %vm2105, %v1999, 0
  %v2584 = vsel %vm2105, %v2000, 0
  %v2587 = vsel %vm2105, %v2001, 0
  %v2590 = vsel %vm2105, %v2002, 0
  %v2593 = vsel %vm2105, %v2003, 0
  %v2596 = vsel %vm2105, %v2004, 0
  %v2599 = vsel %vm2105, %v2005, 0
  %v2602 = vsel %vm2105, %v2006, 0
  %v2605 = vsel %vm2105, %v2007, 0
  %v2608 = vsel %vm2105, %v2008, 0
  %v2611 = vsel %vm2105, %v2009, 0
  %v2614 = vsel %vm2105, %v2010, 0
  %v2617 = vsel %vm2105, %v2011, 0
  %v2620 = vsel %vm2105, %v2012, 0
  %v2623 = vsel %vm2105, %v2013, 0
  %v2626 = vsel %vm2105, %v2014, 0
  %v2629 = vsel %vm2105, %v2015, 0
  %v2632 = vsel %vm2105, %v2016, 0
  %v2635 = vsel %vm2105, %v2017, 0
  %v2638 = vsel %vm2105, %v2018, 0
  %v2641 = vsel %vm2105, %v2019, 0
  %v2644 = vsel %vm2105, %v2020, 0
  %v2647 = vsel %vm2105, %v2021, 0
  %v2650 = vsel %vm2105, %v2022, 0
  %v2653 = vsel %vm2105, %v2023, 0
  %v2656 = vsel %vm2105, %v2024, 0
  %v2659 = vsel %vm2105, %v2025, 0
  %v2662 = vsel %vm2105, %v2026, 0
  %v2665 = vsel %vm2105, %v2027, 0
  %v2668 = vsel %vm2105, %v2028, 0
  %v2671 = vsel %vm2105, %v2029, 0
  %v2674 = vsel %vm2105, %v2030, 0
  %v2677 = vsel %vm2105, %v2031, 0
  %v2680 = vsel %vm2105, %v2032, 0
  %v2683 = vsel %vm2105, %v2033, 0
  %v2686 = vsel %vm2105, %v2034, 0
  %v2689 = vsel %vm2105, %v2035, 0
  %v2692 = vsel %vm2105, %v2036, 0
  %v2695 = vsel %vm2105, %v2037, 0
  %v2698 = vsel %vm2105, %v2038, 0
  %v2701 = vsel %vm2105, %v2039, 0
  %v2704 = vsel %vm2105, %v2040, 0
  %v2707 = vsel %vm2105, %v2041, 0
  %v2710 = vsel %vm2105, %v2042, 0
  %v2713 = vsel %vm2105, %v2043, 0
  %v2716 = vsel %vm2105, %v2044, 0
  %v2719 = vsel %vm2105, %v2045, 0
  %v2722 = vsel %vm2105, %v2046, 0
  %v2725 = vsel %vm2105, %v2047, 0
  %v2728 = vsel %vm2105, %v2048, 0
  %v2731 = vsel %vm2105, %v2049, 0
  %v2734 = vsel %vm2105, %v2050, 0
  %v2737 = vsel %vm2105, %v2051, 0
  %v2740 = vsel %vm2105, %v2052, 0
  %v2743 = vsel %vm2105, %v2053, 0
  %v2746 = vsel %vm2105, %v2054, 0
  %v2749 = vsel %vm2105, %v2055, 0
  %v2752 = vsel %vm2105, %v2056, 0
  %v2755 = vsel %vm2105, %v2057, 0
  %v2758 = vsel %vm2105, %v2058, 0
  %v2761 = vsel %vm2105, %v2059, 0
  %v2764 = vsel %vm2105, %v2060, 0
  %v2767 = vsel %vm2105, %v2061, 0
  %v2770 = vsel %vm2105, %v2062, 0
  %v2773 = vsel %vm2105, %v2063, 0
  %v2776 = vsel %vm2105, %v2064, 0
  %v2779 = vsel %vm2105, %v2065, 0
  %v2782 = vsel %vm2105, %v2066, 0
  %v2785 = vsel %vm2105, %v2067, 0
  %v2788 = vsel %vm2105, %v2068, 0
  %v2791 = vsel %vm2105, %v2069, 0
  %v2794 = vsel %vm2105, %v2070, 0
  %v2797 = vsel %vm2105, %v2071, 0
  %v2800 = vsel %vm2105, %v2072, 0
  %v2803 = vsel %vm2105, %v2073, 0
  %v2806 = vsel %vm2105, %v2074, 0
  %v2809 = vsel %vm2105, %v2075, 0
  %v2812 = vsel %vm2105, %v2076, 0
  %v2815 = vsel %vm2105, %v2077, 0
  %v2818 = vsel %vm2105, %v2078, 0
  %v2821 = vsel %vm2105, %v2079, 0
  %v2824 = vsel %vm2105, %v2080, 0
  %v2827 = vsel %vm2105, %v2081, 0
  %v2830 = vsel %vm2105, %v2082, 0
  %v2833 = vsel %vm2105, %v2083, 0
  %v2836 = vsel %vm2105, %v2084, 0
  %v2839 = vsel %vm2105, %v2085, 0
  %v2842 = vsel %vm2105, %v2086, 0
  %v2845 = vsel %vm2105, %v2087, 0
  %v2848 = vsel %vm2105, %v2088, 0
  %v2851 = vsel %vm2105, %v2089, 0
  %v2854 = vsel %vm2105, %v2090, 0
  %v2857 = vsel %vm2105, %v2091, 0
  %v2860 = vsel %vm2105, %v2092, 0
  %v2863 = vsel %vm2105, %v2093, 0
  %v2866 = vsel %vm2105, %v2094, 0
  %v2869 = vsel %vm2105, %v2095, 0
  %v2872 = vsel %vm2105, %v2096, 0
  %2874 = vmatpush.msra.mxu0 0.0
  %2875 = vmatpush.msra.mxu0 0.0
  %2876 = vmatpush.msra.mxu0 0.0
  %2877 = vmatpush.msra.mxu0 0.0
  %2878 = vmatpush.msra.mxu0 0.0
  %2879 = vmatpush.msra.mxu0 0.0
  %2880 = vmatpush.msra.mxu0 0.0
  %2881 = vmatpush.msra.mxu0 0.0
  %2882 = vmatpush.msra.mxu0 0.0
  %2883 = vmatpush.msra.mxu0 0.0
  %2884 = vmatpush.msra.mxu0 0.0
  %2885 = vmatpush.msra.mxu0 0.0
  %2886 = vmatpush.msra.mxu0 %v2100
  %2887 = vmatpush.msra.mxu0 %v2099
  %2888 = vmatpush.msra.mxu0 %v2098
  %2889 = vmatpush.msra.mxu0 %v2097
  %2890 = vmatmul.f32.gmra.mxu0 %v2107
  %v2891 = vpop.f32.mrf.mxu0
  %v2892 = vadd.f32 %v2103, %v2891
  %2893 = vmatmul.f32.gmra.mxu0 %v2110
  %v2894 = vpop.f32.mrf.mxu0
  %v2895 = vadd.f32 %v2103, %v2894
  %2896 = vmatmul.f32.gmra.mxu0 %v2113
  %v2897 = vpop.f32.mrf.mxu0
  %v2898 = vadd.f32 %v2103, %v2897
  %2899 = vmatmul.f32.gmra.mxu0 %v2116
  %v2900 = vpop.f32.mrf.mxu0
  %v2901 = vadd.f32 %v2103, %v2900
  %2902 = vmatmul.f32.gmra.mxu0 %v2119
  %v2903 = vpop.f32.mrf.mxu0
  %v2904 = vadd.f32 %v2103, %v2903
  %2905 = vmatmul.f32.gmra.mxu0 %v2122
  %v2906 = vpop.f32.mrf.mxu0
  %v2907 = vadd.f32 %v2103, %v2906
  %2908 = vmatmul.f32.gmra.mxu0 %v2125
  %v2909 = vpop.f32.mrf.mxu0
  %v2910 = vadd.f32 %v2103, %v2909
  %2911 = vmatmul.f32.gmra.mxu0 %v2128
  %v2912 = vpop.f32.mrf.mxu0
  %v2913 = vadd.f32 %v2103, %v2912
  %2914 = vmatmul.f32.gmra.mxu0 %v2131
  %v2915 = vpop.f32.mrf.mxu0
  %v2916 = vadd.f32 %v2103, %v2915
  %2917 = vmatmul.f32.gmra.mxu0 %v2134
  %v2918 = vpop.f32.mrf.mxu0
  %v2919 = vadd.f32 %v2103, %v2918
  %2920 = vmatmul.f32.gmra.mxu0 %v2137
  %v2921 = vpop.f32.mrf.mxu0
  %v2922 = vadd.f32 %v2103, %v2921
  %2923 = vmatmul.f32.gmra.mxu0 %v2140
  %v2924 = vpop.f32.mrf.mxu0
  %v2925 = vadd.f32 %v2103, %v2924
  %2926 = vmatmul.f32.gmra.mxu0 %v2143
  %v2927 = vpop.f32.mrf.mxu0
  %v2928 = vadd.f32 %v2103, %v2927
  %2929 = vmatmul.f32.gmra.mxu0 %v2146
  %v2930 = vpop.f32.mrf.mxu0
  %v2931 = vadd.f32 %v2103, %v2930
  %2932 = vmatmul.f32.gmra.mxu0 %v2149
  %v2933 = vpop.f32.mrf.mxu0
  %v2934 = vadd.f32 %v2103, %v2933
  %2935 = vmatmul.f32.gmra.mxu0 %v2152
  %v2936 = vpop.f32.mrf.mxu0
  %v2937 = vadd.f32 %v2103, %v2936
  %2938 = vmatmul.f32.gmra.mxu0 %v2155
  %v2939 = vpop.f32.mrf.mxu0
  %v2940 = vadd.f32 %v2103, %v2939
  %2941 = vmatmul.f32.gmra.mxu0 %v2158
  %v2942 = vpop.f32.mrf.mxu0
  %v2943 = vadd.f32 %v2103, %v2942
  %2944 = vmatmul.f32.gmra.mxu0 %v2161
  %v2945 = vpop.f32.mrf.mxu0
  %v2946 = vadd.f32 %v2103, %v2945
  %2947 = vmatmul.f32.gmra.mxu0 %v2164
  %v2948 = vpop.f32.mrf.mxu0
  %v2949 = vadd.f32 %v2103, %v2948
  %2950 = vmatmul.f32.gmra.mxu0 %v2167
  %v2951 = vpop.f32.mrf.mxu0
  %v2952 = vadd.f32 %v2103, %v2951
  %2953 = vmatmul.f32.gmra.mxu0 %v2170
  %v2954 = vpop.f32.mrf.mxu0
  %v2955 = vadd.f32 %v2103, %v2954
  %2956 = vmatmul.f32.gmra.mxu0 %v2173
  %v2957 = vpop.f32.mrf.mxu0
  %v2958 = vadd.f32 %v2103, %v2957
  %2959 = vmatmul.f32.gmra.mxu0 %v2176
  %v2960 = vpop.f32.mrf.mxu0
  %v2961 = vadd.f32 %v2103, %v2960
  %2962 = vmatmul.f32.gmra.mxu0 %v2179
  %v2963 = vpop.f32.mrf.mxu0
  %v2964 = vadd.f32 %v2103, %v2963
  %2965 = vmatmul.f32.gmra.mxu0 %v2182
  %v2966 = vpop.f32.mrf.mxu0
  %v2967 = vadd.f32 %v2103, %v2966
  %2968 = vmatmul.f32.gmra.mxu0 %v2185
  %v2969 = vpop.f32.mrf.mxu0
  %v2970 = vadd.f32 %v2103, %v2969
  %2971 = vmatmul.f32.gmra.mxu0 %v2188
  %v2972 = vpop.f32.mrf.mxu0
  %v2973 = vadd.f32 %v2103, %v2972
  %2974 = vmatmul.f32.gmra.mxu0 %v2191
  %v2975 = vpop.f32.mrf.mxu0
  %v2976 = vadd.f32 %v2103, %v2975
  %2977 = vmatmul.f32.gmra.mxu0 %v2194
  %v2978 = vpop.f32.mrf.mxu0
  %v2979 = vadd.f32 %v2103, %v2978
  %2980 = vmatmul.f32.gmra.mxu0 %v2197
  %v2981 = vpop.f32.mrf.mxu0
  %v2982 = vadd.f32 %v2103, %v2981
  %2983 = vmatmul.f32.gmra.mxu0 %v2200
  %v2984 = vpop.f32.mrf.mxu0
  %v2985 = vadd.f32 %v2103, %v2984
  %2986 = vmatmul.f32.gmra.mxu0 %v2203
  %v2987 = vpop.f32.mrf.mxu0
  %v2988 = vadd.f32 %v2103, %v2987
  %2989 = vmatmul.f32.gmra.mxu0 %v2206
  %v2990 = vpop.f32.mrf.mxu0
  %v2991 = vadd.f32 %v2103, %v2990
  %2992 = vmatmul.f32.gmra.mxu0 %v2209
  %v2993 = vpop.f32.mrf.mxu0
  %v2994 = vadd.f32 %v2103, %v2993
  %2995 = vmatmul.f32.gmra.mxu0 %v2212
  %v2996 = vpop.f32.mrf.mxu0
  %v2997 = vadd.f32 %v2103, %v2996
  %2998 = vmatmul.f32.gmra.mxu0 %v2215
  %v2999 = vpop.f32.mrf.mxu0
  %v3000 = vadd.f32 %v2103, %v2999
  %3001 = vmatmul.f32.gmra.mxu0 %v2218
  %v3002 = vpop.f32.mrf.mxu0
  %v3003 = vadd.f32 %v2103, %v3002
  %3004 = vmatmul.f32.gmra.mxu0 %v2221
  %v3005 = vpop.f32.mrf.mxu0
  %v3006 = vadd.f32 %v2103, %v3005
  %3007 = vmatmul.f32.gmra.mxu0 %v2224
  %v3008 = vpop.f32.mrf.mxu0
  %v3009 = vadd.f32 %v2103, %v3008
  %3010 = vmatmul.f32.gmra.mxu0 %v2227
  %v3011 = vpop.f32.mrf.mxu0
  %v3012 = vadd.f32 %v2103, %v3011
  %3013 = vmatmul.f32.gmra.mxu0 %v2230
  %v3014 = vpop.f32.mrf.mxu0
  %v3015 = vadd.f32 %v2103, %v3014
  %3016 = vmatmul.f32.gmra.mxu0 %v2233
  %v3017 = vpop.f32.mrf.mxu0
  %v3018 = vadd.f32 %v2103, %v3017
  %3019 = vmatmul.f32.gmra.mxu0 %v2236
  %v3020 = vpop.f32.mrf.mxu0
  %v3021 = vadd.f32 %v2103, %v3020
  %3022 = vmatmul.f32.gmra.mxu0 %v2239
  %v3023 = vpop.f32.mrf.mxu0
  %v3024 = vadd.f32 %v2103, %v3023
  %3025 = vmatmul.f32.gmra.mxu0 %v2242
  %v3026 = vpop.f32.mrf.mxu0
  %v3027 = vadd.f32 %v2103, %v3026
  %3028 = vmatmul.f32.gmra.mxu0 %v2245
  %v3029 = vpop.f32.mrf.mxu0
  %v3030 = vadd.f32 %v2103, %v3029
  %3031 = vmatmul.f32.gmra.mxu0 %v2248
  %v3032 = vpop.f32.mrf.mxu0
  %v3033 = vadd.f32 %v2103, %v3032
  %3034 = vmatmul.f32.gmra.mxu0 %v2251
  %v3035 = vpop.f32.mrf.mxu0
  %v3036 = vadd.f32 %v2103, %v3035
  %3037 = vmatmul.f32.gmra.mxu0 %v2254
  %v3038 = vpop.f32.mrf.mxu0
  %v3039 = vadd.f32 %v2103, %v3038
  %3040 = vmatmul.f32.gmra.mxu0 %v2257
  %v3041 = vpop.f32.mrf.mxu0
  %v3042 = vadd.f32 %v2103, %v3041
  %3043 = vmatmul.f32.gmra.mxu0 %v2260
  %v3044 = vpop.f32.mrf.mxu0
  %v3045 = vadd.f32 %v2103, %v3044
  %3046 = vmatmul.f32.gmra.mxu0 %v2263
  %v3047 = vpop.f32.mrf.mxu0
  %v3048 = vadd.f32 %v2103, %v3047
  %3049 = vmatmul.f32.gmra.mxu0 %v2266
  %v3050 = vpop.f32.mrf.mxu0
  %v3051 = vadd.f32 %v2103, %v3050
  %3052 = vmatmul.f32.gmra.mxu0 %v2269
  %v3053 = vpop.f32.mrf.mxu0
  %v3054 = vadd.f32 %v2103, %v3053
  %3055 = vmatmul.f32.gmra.mxu0 %v2272
  %v3056 = vpop.f32.mrf.mxu0
  %v3057 = vadd.f32 %v2103, %v3056
  %3058 = vmatmul.f32.gmra.mxu0 %v2275
  %v3059 = vpop.f32.mrf.mxu0
  %v3060 = vadd.f32 %v2103, %v3059
  %3061 = vmatmul.f32.gmra.mxu0 %v2278
  %v3062 = vpop.f32.mrf.mxu0
  %v3063 = vadd.f32 %v2103, %v3062
  %3064 = vmatmul.f32.gmra.mxu0 %v2281
  %v3065 = vpop.f32.mrf.mxu0
  %v3066 = vadd.f32 %v2103, %v3065
  %3067 = vmatmul.f32.gmra.mxu0 %v2284
  %v3068 = vpop.f32.mrf.mxu0
  %v3069 = vadd.f32 %v2103, %v3068
  %3070 = vmatmul.f32.gmra.mxu0 %v2287
  %v3071 = vpop.f32.mrf.mxu0
  %v3072 = vadd.f32 %v2103, %v3071
  %3073 = vmatmul.f32.gmra.mxu0 %v2290
  %v3074 = vpop.f32.mrf.mxu0
  %v3075 = vadd.f32 %v2103, %v3074
  %3076 = vmatmul.f32.gmra.mxu0 %v2293
  %v3077 = vpop.f32.mrf.mxu0
  %v3078 = vadd.f32 %v2103, %v3077
  %3079 = vmatmul.f32.gmra.mxu0 %v2296
  %v3080 = vpop.f32.mrf.mxu0
  %v3081 = vadd.f32 %v2103, %v3080
  %3082 = vmatmul.f32.gmra.mxu0 %v2299
  %v3083 = vpop.f32.mrf.mxu0
  %v3084 = vadd.f32 %v2103, %v3083
  %3085 = vmatmul.f32.gmra.mxu0 %v2302
  %v3086 = vpop.f32.mrf.mxu0
  %v3087 = vadd.f32 %v2103, %v3086
  %3088 = vmatmul.f32.gmra.mxu0 %v2305
  %v3089 = vpop.f32.mrf.mxu0
  %v3090 = vadd.f32 %v2103, %v3089
  %3091 = vmatmul.f32.gmra.mxu0 %v2308
  %v3092 = vpop.f32.mrf.mxu0
  %v3093 = vadd.f32 %v2103, %v3092
  %3094 = vmatmul.f32.gmra.mxu0 %v2311
  %v3095 = vpop.f32.mrf.mxu0
  %v3096 = vadd.f32 %v2103, %v3095
  %3097 = vmatmul.f32.gmra.mxu0 %v2314
  %v3098 = vpop.f32.mrf.mxu0
  %v3099 = vadd.f32 %v2103, %v3098
  %3100 = vmatmul.f32.gmra.mxu0 %v2317
  %v3101 = vpop.f32.mrf.mxu0
  %v3102 = vadd.f32 %v2103, %v3101
  %3103 = vmatmul.f32.gmra.mxu0 %v2320
  %v3104 = vpop.f32.mrf.mxu0
  %v3105 = vadd.f32 %v2103, %v3104
  %3106 = vmatmul.f32.gmra.mxu0 %v2323
  %v3107 = vpop.f32.mrf.mxu0
  %v3108 = vadd.f32 %v2103, %v3107
  %3109 = vmatmul.f32.gmra.mxu0 %v2326
  %v3110 = vpop.f32.mrf.mxu0
  %v3111 = vadd.f32 %v2103, %v3110
  %3112 = vmatmul.f32.gmra.mxu0 %v2329
  %v3113 = vpop.f32.mrf.mxu0
  %v3114 = vadd.f32 %v2103, %v3113
  %3115 = vmatmul.f32.gmra.mxu0 %v2332
  %v3116 = vpop.f32.mrf.mxu0
  %v3117 = vadd.f32 %v2103, %v3116
  %3118 = vmatmul.f32.gmra.mxu0 %v2335
  %v3119 = vpop.f32.mrf.mxu0
  %v3120 = vadd.f32 %v2103, %v3119
  %3121 = vmatmul.f32.gmra.mxu0 %v2338
  %v3122 = vpop.f32.mrf.mxu0
  %v3123 = vadd.f32 %v2103, %v3122
  %3124 = vmatmul.f32.gmra.mxu0 %v2341
  %v3125 = vpop.f32.mrf.mxu0
  %v3126 = vadd.f32 %v2103, %v3125
  %3127 = vmatmul.f32.gmra.mxu0 %v2344
  %v3128 = vpop.f32.mrf.mxu0
  %v3129 = vadd.f32 %v2103, %v3128
  %3130 = vmatmul.f32.gmra.mxu0 %v2347
  %v3131 = vpop.f32.mrf.mxu0
  %v3132 = vadd.f32 %v2103, %v3131
  %3133 = vmatmul.f32.gmra.mxu0 %v2350
  %v3134 = vpop.f32.mrf.mxu0
  %v3135 = vadd.f32 %v2103, %v3134
  %3136 = vmatmul.f32.gmra.mxu0 %v2353
  %v3137 = vpop.f32.mrf.mxu0
  %v3138 = vadd.f32 %v2103, %v3137
  %3139 = vmatmul.f32.gmra.mxu0 %v2356
  %v3140 = vpop.f32.mrf.mxu0
  %v3141 = vadd.f32 %v2103, %v3140
  %3142 = vmatmul.f32.gmra.mxu0 %v2359
  %v3143 = vpop.f32.mrf.mxu0
  %v3144 = vadd.f32 %v2103, %v3143
  %3145 = vmatmul.f32.gmra.mxu0 %v2362
  %v3146 = vpop.f32.mrf.mxu0
  %v3147 = vadd.f32 %v2103, %v3146
  %3148 = vmatmul.f32.gmra.mxu0 %v2365
  %v3149 = vpop.f32.mrf.mxu0
  %v3150 = vadd.f32 %v2103, %v3149
  %3151 = vmatmul.f32.gmra.mxu0 %v2368
  %v3152 = vpop.f32.mrf.mxu0
  %v3153 = vadd.f32 %v2103, %v3152
  %3154 = vmatmul.f32.gmra.mxu0 %v2371
  %v3155 = vpop.f32.mrf.mxu0
  %v3156 = vadd.f32 %v2103, %v3155
  %3157 = vmatmul.f32.gmra.mxu0 %v2374
  %v3158 = vpop.f32.mrf.mxu0
  %v3159 = vadd.f32 %v2103, %v3158
  %3160 = vmatmul.f32.gmra.mxu0 %v2377
  %v3161 = vpop.f32.mrf.mxu0
  %v3162 = vadd.f32 %v2103, %v3161
  %3163 = vmatmul.f32.gmra.mxu0 %v2380
  %v3164 = vpop.f32.mrf.mxu0
  %v3165 = vadd.f32 %v2103, %v3164
  %3166 = vmatmul.f32.gmra.mxu0 %v2383
  %v3167 = vpop.f32.mrf.mxu0
  %v3168 = vadd.f32 %v2103, %v3167
  %3169 = vmatmul.f32.gmra.mxu0 %v2386
  %v3170 = vpop.f32.mrf.mxu0
  %v3171 = vadd.f32 %v2103, %v3170
  %3172 = vmatmul.f32.gmra.mxu0 %v2389
  %v3173 = vpop.f32.mrf.mxu0
  %v3174 = vadd.f32 %v2103, %v3173
  %3175 = vmatmul.f32.gmra.mxu0 %v2392
  %v3176 = vpop.f32.mrf.mxu0
  %v3177 = vadd.f32 %v2103, %v3176
  %3178 = vmatmul.f32.gmra.mxu0 %v2395
  %v3179 = vpop.f32.mrf.mxu0
  %v3180 = vadd.f32 %v2103, %v3179
  %3181 = vmatmul.f32.gmra.mxu0 %v2398
  %v3182 = vpop.f32.mrf.mxu0
  %v3183 = vadd.f32 %v2103, %v3182
  %3184 = vmatmul.f32.gmra.mxu0 %v2401
  %v3185 = vpop.f32.mrf.mxu0
  %v3186 = vadd.f32 %v2103, %v3185
  %3187 = vmatmul.f32.gmra.mxu0 %v2404
  %v3188 = vpop.f32.mrf.mxu0
  %v3189 = vadd.f32 %v2103, %v3188
  %3190 = vmatmul.f32.gmra.mxu0 %v2407
  %v3191 = vpop.f32.mrf.mxu0
  %v3192 = vadd.f32 %v2103, %v3191
  %3193 = vmatmul.f32.gmra.mxu0 %v2410
  %v3194 = vpop.f32.mrf.mxu0
  %v3195 = vadd.f32 %v2103, %v3194
  %3196 = vmatmul.f32.gmra.mxu0 %v2413
  %v3197 = vpop.f32.mrf.mxu0
  %v3198 = vadd.f32 %v2103, %v3197
  %3199 = vmatmul.f32.gmra.mxu0 %v2416
  %v3200 = vpop.f32.mrf.mxu0
  %v3201 = vadd.f32 %v2103, %v3200
  %3202 = vmatmul.f32.gmra.mxu0 %v2419
  %v3203 = vpop.f32.mrf.mxu0
  %v3204 = vadd.f32 %v2103, %v3203
  %3205 = vmatmul.f32.gmra.mxu0 %v2422
  %v3206 = vpop.f32.mrf.mxu0
  %v3207 = vadd.f32 %v2103, %v3206
  %3208 = vmatmul.f32.gmra.mxu0 %v2425
  %v3209 = vpop.f32.mrf.mxu0
  %v3210 = vadd.f32 %v2103, %v3209
  %3211 = vmatmul.f32.gmra.mxu0 %v2428
  %v3212 = vpop.f32.mrf.mxu0
  %v3213 = vadd.f32 %v2103, %v3212
  %3214 = vmatmul.f32.gmra.mxu0 %v2431
  %v3215 = vpop.f32.mrf.mxu0
  %v3216 = vadd.f32 %v2103, %v3215
  %3217 = vmatmul.f32.gmra.mxu0 %v2434
  %v3218 = vpop.f32.mrf.mxu0
  %v3219 = vadd.f32 %v2103, %v3218
  %3220 = vmatmul.f32.gmra.mxu0 %v2437
  %v3221 = vpop.f32.mrf.mxu0
  %v3222 = vadd.f32 %v2103, %v3221
  %3223 = vmatmul.f32.gmra.mxu0 %v2440
  %v3224 = vpop.f32.mrf.mxu0
  %v3225 = vadd.f32 %v2103, %v3224
  %3226 = vmatmul.f32.gmra.mxu0 %v2443
  %v3227 = vpop.f32.mrf.mxu0
  %v3228 = vadd.f32 %v2103, %v3227
  %3229 = vmatmul.f32.gmra.mxu0 %v2446
  %v3230 = vpop.f32.mrf.mxu0
  %v3231 = vadd.f32 %v2103, %v3230
  %3232 = vmatmul.f32.gmra.mxu0 %v2449
  %v3233 = vpop.f32.mrf.mxu0
  %v3234 = vadd.f32 %v2103, %v3233
  %3235 = vmatmul.f32.gmra.mxu0 %v2452
  %v3236 = vpop.f32.mrf.mxu0
  %v3237 = vadd.f32 %v2103, %v3236
  %3238 = vmatmul.f32.gmra.mxu0 %v2455
  %v3239 = vpop.f32.mrf.mxu0
  %v3240 = vadd.f32 %v2103, %v3239
  %3241 = vmatmul.f32.gmra.mxu0 %v2458
  %v3242 = vpop.f32.mrf.mxu0
  %v3243 = vadd.f32 %v2103, %v3242
  %3244 = vmatmul.f32.gmra.mxu0 %v2461
  %v3245 = vpop.f32.mrf.mxu0
  %v3246 = vadd.f32 %v2103, %v3245
  %3247 = vmatmul.f32.gmra.mxu0 %v2464
  %v3248 = vpop.f32.mrf.mxu0
  %v3249 = vadd.f32 %v2103, %v3248
  %3250 = vmatmul.f32.gmra.mxu0 %v2467
  %v3251 = vpop.f32.mrf.mxu0
  %v3252 = vadd.f32 %v2103, %v3251
  %3253 = vmatmul.f32.gmra.mxu0 %v2470
  %v3254 = vpop.f32.mrf.mxu0
  %v3255 = vadd.f32 %v2103, %v3254
  %3256 = vmatmul.f32.gmra.mxu0 %v2473
  %v3257 = vpop.f32.mrf.mxu0
  %v3258 = vadd.f32 %v2103, %v3257
  %3259 = vmatmul.f32.gmra.mxu0 %v2476
  %v3260 = vpop.f32.mrf.mxu0
  %v3261 = vadd.f32 %v2103, %v3260
  %3262 = vmatmul.f32.gmra.mxu0 %v2479
  %v3263 = vpop.f32.mrf.mxu0
  %v3264 = vadd.f32 %v2103, %v3263
  %3265 = vmatmul.f32.gmra.mxu0 %v2482
  %v3266 = vpop.f32.mrf.mxu0
  %v3267 = vadd.f32 %v2103, %v3266
  %3268 = vmatmul.f32.gmra.mxu0 %v2485
  %v3269 = vpop.f32.mrf.mxu0
  %v3270 = vadd.f32 %v2103, %v3269
  %3271 = vmatmul.f32.gmra.mxu0 %v2488
  %v3272 = vpop.f32.mrf.mxu0
  %v3273 = vadd.f32 %v2103, %v3272
  %3274 = vmatmul.f32.gmra.mxu0 %v2491
  %v3275 = vpop.f32.mrf.mxu0
  %v3276 = vadd.f32 %v2103, %v3275
  %3277 = vmatmul.f32.gmra.mxu0 %v2494
  %v3278 = vpop.f32.mrf.mxu0
  %v3279 = vadd.f32 %v2103, %v3278
  %3280 = vmatmul.f32.gmra.mxu0 %v2497
  %v3281 = vpop.f32.mrf.mxu0
  %v3282 = vadd.f32 %v2103, %v3281
  %3283 = vmatmul.f32.gmra.mxu0 %v2500
  %v3284 = vpop.f32.mrf.mxu0
  %v3285 = vadd.f32 %v2103, %v3284
  %3286 = vmatmul.f32.gmra.mxu0 %v2503
  %v3287 = vpop.f32.mrf.mxu0
  %v3288 = vadd.f32 %v2103, %v3287
  %3289 = vmatmul.f32.gmra.mxu0 %v2506
  %v3290 = vpop.f32.mrf.mxu0
  %v3291 = vadd.f32 %v2103, %v3290
  %3292 = vmatmul.f32.gmra.mxu0 %v2509
  %v3293 = vpop.f32.mrf.mxu0
  %v3294 = vadd.f32 %v2103, %v3293
  %3295 = vmatmul.f32.gmra.mxu0 %v2512
  %v3296 = vpop.f32.mrf.mxu0
  %v3297 = vadd.f32 %v2103, %v3296
  %3298 = vmatmul.f32.gmra.mxu0 %v2515
  %v3299 = vpop.f32.mrf.mxu0
  %v3300 = vadd.f32 %v2103, %v3299
  %3301 = vmatmul.f32.gmra.mxu0 %v2518
  %v3302 = vpop.f32.mrf.mxu0
  %v3303 = vadd.f32 %v2103, %v3302
  %3304 = vmatmul.f32.gmra.mxu0 %v2521
  %v3305 = vpop.f32.mrf.mxu0
  %v3306 = vadd.f32 %v2103, %v3305
  %3307 = vmatmul.f32.gmra.mxu0 %v2524
  %v3308 = vpop.f32.mrf.mxu0
  %v3309 = vadd.f32 %v2103, %v3308
  %3310 = vmatmul.f32.gmra.mxu0 %v2527
  %v3311 = vpop.f32.mrf.mxu0
  %v3312 = vadd.f32 %v2103, %v3311
  %3313 = vmatmul.f32.gmra.mxu0 %v2530
  %v3314 = vpop.f32.mrf.mxu0
  %v3315 = vadd.f32 %v2103, %v3314
  %3316 = vmatmul.f32.gmra.mxu0 %v2533
  %v3317 = vpop.f32.mrf.mxu0
  %v3318 = vadd.f32 %v2103, %v3317
  %3319 = vmatmul.f32.gmra.mxu0 %v2536
  %v3320 = vpop.f32.mrf.mxu0
  %v3321 = vadd.f32 %v2103, %v3320
  %3322 = vmatmul.f32.gmra.mxu0 %v2539
  %v3323 = vpop.f32.mrf.mxu0
  %v3324 = vadd.f32 %v2103, %v3323
  %3325 = vmatmul.f32.gmra.mxu0 %v2542
  %v3326 = vpop.f32.mrf.mxu0
  %v3327 = vadd.f32 %v2103, %v3326
  %3328 = vmatmul.f32.gmra.mxu0 %v2545
  %v3329 = vpop.f32.mrf.mxu0
  %v3330 = vadd.f32 %v2103, %v3329
  %3331 = vmatmul.f32.gmra.mxu0 %v2548
  %v3332 = vpop.f32.mrf.mxu0
  %v3333 = vadd.f32 %v2103, %v3332
  %3334 = vmatmul.f32.gmra.mxu0 %v2551
  %v3335 = vpop.f32.mrf.mxu0
  %v3336 = vadd.f32 %v2103, %v3335
  %3337 = vmatmul.f32.gmra.mxu0 %v2554
  %v3338 = vpop.f32.mrf.mxu0
  %v3339 = vadd.f32 %v2103, %v3338
  %3340 = vmatmul.f32.gmra.mxu0 %v2557
  %v3341 = vpop.f32.mrf.mxu0
  %v3342 = vadd.f32 %v2103, %v3341
  %3343 = vmatmul.f32.gmra.mxu0 %v2560
  %v3344 = vpop.f32.mrf.mxu0
  %v3345 = vadd.f32 %v2103, %v3344
  %3346 = vmatmul.f32.gmra.mxu0 %v2563
  %v3347 = vpop.f32.mrf.mxu0
  %v3348 = vadd.f32 %v2103, %v3347
  %3349 = vmatmul.f32.gmra.mxu0 %v2566
  %v3350 = vpop.f32.mrf.mxu0
  %v3351 = vadd.f32 %v2103, %v3350
  %3352 = vmatmul.f32.gmra.mxu0 %v2569
  %v3353 = vpop.f32.mrf.mxu0
  %v3354 = vadd.f32 %v2103, %v3353
  %3355 = vmatmul.f32.gmra.mxu0 %v2572
  %v3356 = vpop.f32.mrf.mxu0
  %v3357 = vadd.f32 %v2103, %v3356
  %3358 = vmatmul.f32.gmra.mxu0 %v2575
  %v3359 = vpop.f32.mrf.mxu0
  %v3360 = vadd.f32 %v2103, %v3359
  %3361 = vmatmul.f32.gmra.mxu0 %v2578
  %v3362 = vpop.f32.mrf.mxu0
  %v3363 = vadd.f32 %v2103, %v3362
  %3364 = vmatmul.f32.gmra.mxu0 %v2581
  %v3365 = vpop.f32.mrf.mxu0
  %v3366 = vadd.f32 %v2103, %v3365
  %3367 = vmatmul.f32.gmra.mxu0 %v2584
  %v3368 = vpop.f32.mrf.mxu0
  %v3369 = vadd.f32 %v2103, %v3368
  %3370 = vmatmul.f32.gmra.mxu0 %v2587
  %v3371 = vpop.f32.mrf.mxu0
  %v3372 = vadd.f32 %v2103, %v3371
  %3373 = vmatmul.f32.gmra.mxu0 %v2590
  %v3374 = vpop.f32.mrf.mxu0
  %v3375 = vadd.f32 %v2103, %v3374
  %3376 = vmatmul.f32.gmra.mxu0 %v2593
  %v3377 = vpop.f32.mrf.mxu0
  %v3378 = vadd.f32 %v2103, %v3377
  %3379 = vmatmul.f32.gmra.mxu0 %v2596
  %v3380 = vpop.f32.mrf.mxu0
  %v3381 = vadd.f32 %v2103, %v3380
  %3382 = vmatmul.f32.gmra.mxu0 %v2599
  %v3383 = vpop.f32.mrf.mxu0
  %v3384 = vadd.f32 %v2103, %v3383
  %3385 = vmatmul.f32.gmra.mxu0 %v2602
  %v3386 = vpop.f32.mrf.mxu0
  %v3387 = vadd.f32 %v2103, %v3386
  %3388 = vmatmul.f32.gmra.mxu0 %v2605
  %v3389 = vpop.f32.mrf.mxu0
  %v3390 = vadd.f32 %v2103, %v3389
  %3391 = vmatmul.f32.gmra.mxu0 %v2608
  %v3392 = vpop.f32.mrf.mxu0
  %v3393 = vadd.f32 %v2103, %v3392
  %3394 = vmatmul.f32.gmra.mxu0 %v2611
  %v3395 = vpop.f32.mrf.mxu0
  %v3396 = vadd.f32 %v2103, %v3395
  %3397 = vmatmul.f32.gmra.mxu0 %v2614
  %v3398 = vpop.f32.mrf.mxu0
  %v3399 = vadd.f32 %v2103, %v3398
  %3400 = vmatmul.f32.gmra.mxu0 %v2617
  %v3401 = vpop.f32.mrf.mxu0
  %v3402 = vadd.f32 %v2103, %v3401
  %3403 = vmatmul.f32.gmra.mxu0 %v2620
  %v3404 = vpop.f32.mrf.mxu0
  %v3405 = vadd.f32 %v2103, %v3404
  %3406 = vmatmul.f32.gmra.mxu0 %v2623
  %v3407 = vpop.f32.mrf.mxu0
  %v3408 = vadd.f32 %v2103, %v3407
  %3409 = vmatmul.f32.gmra.mxu0 %v2626
  %v3410 = vpop.f32.mrf.mxu0
  %v3411 = vadd.f32 %v2103, %v3410
  %3412 = vmatmul.f32.gmra.mxu0 %v2629
  %v3413 = vpop.f32.mrf.mxu0
  %v3414 = vadd.f32 %v2103, %v3413
  %3415 = vmatmul.f32.gmra.mxu0 %v2632
  %v3416 = vpop.f32.mrf.mxu0
  %v3417 = vadd.f32 %v2103, %v3416
  %3418 = vmatmul.f32.gmra.mxu0 %v2635
  %v3419 = vpop.f32.mrf.mxu0
  %v3420 = vadd.f32 %v2103, %v3419
  %3421 = vmatmul.f32.gmra.mxu0 %v2638
  %v3422 = vpop.f32.mrf.mxu0
  %v3423 = vadd.f32 %v2103, %v3422
  %3424 = vmatmul.f32.gmra.mxu0 %v2641
  %v3425 = vpop.f32.mrf.mxu0
  %v3426 = vadd.f32 %v2103, %v3425
  %3427 = vmatmul.f32.gmra.mxu0 %v2644
  %v3428 = vpop.f32.mrf.mxu0
  %v3429 = vadd.f32 %v2103, %v3428
  %3430 = vmatmul.f32.gmra.mxu0 %v2647
  %v3431 = vpop.f32.mrf.mxu0
  %v3432 = vadd.f32 %v2103, %v3431
  %3433 = vmatmul.f32.gmra.mxu0 %v2650
  %v3434 = vpop.f32.mrf.mxu0
  %v3435 = vadd.f32 %v2103, %v3434
  %3436 = vmatmul.f32.gmra.mxu0 %v2653
  %v3437 = vpop.f32.mrf.mxu0
  %v3438 = vadd.f32 %v2103, %v3437
  %3439 = vmatmul.f32.gmra.mxu0 %v2656
  %v3440 = vpop.f32.mrf.mxu0
  %v3441 = vadd.f32 %v2103, %v3440
  %3442 = vmatmul.f32.gmra.mxu0 %v2659
  %v3443 = vpop.f32.mrf.mxu0
  %v3444 = vadd.f32 %v2103, %v3443
  %3445 = vmatmul.f32.gmra.mxu0 %v2662
  %v3446 = vpop.f32.mrf.mxu0
  %v3447 = vadd.f32 %v2103, %v3446
  %3448 = vmatmul.f32.gmra.mxu0 %v2665
  %v3449 = vpop.f32.mrf.mxu0
  %v3450 = vadd.f32 %v2103, %v3449
  %3451 = vmatmul.f32.gmra.mxu0 %v2668
  %v3452 = vpop.f32.mrf.mxu0
  %v3453 = vadd.f32 %v2103, %v3452
  %3454 = vmatmul.f32.gmra.mxu0 %v2671
  %v3455 = vpop.f32.mrf.mxu0
  %v3456 = vadd.f32 %v2103, %v3455
  %3457 = vmatmul.f32.gmra.mxu0 %v2674
  %v3458 = vpop.f32.mrf.mxu0
  %v3459 = vadd.f32 %v2103, %v3458
  %3460 = vmatmul.f32.gmra.mxu0 %v2677
  %v3461 = vpop.f32.mrf.mxu0
  %v3462 = vadd.f32 %v2103, %v3461
  %3463 = vmatmul.f32.gmra.mxu0 %v2680
  %v3464 = vpop.f32.mrf.mxu0
  %v3465 = vadd.f32 %v2103, %v3464
  %3466 = vmatmul.f32.gmra.mxu0 %v2683
  %v3467 = vpop.f32.mrf.mxu0
  %v3468 = vadd.f32 %v2103, %v3467
  %3469 = vmatmul.f32.gmra.mxu0 %v2686
  %v3470 = vpop.f32.mrf.mxu0
  %v3471 = vadd.f32 %v2103, %v3470
  %3472 = vmatmul.f32.gmra.mxu0 %v2689
  %v3473 = vpop.f32.mrf.mxu0
  %v3474 = vadd.f32 %v2103, %v3473
  %3475 = vmatmul.f32.gmra.mxu0 %v2692
  %v3476 = vpop.f32.mrf.mxu0
  %v3477 = vadd.f32 %v2103, %v3476
  %3478 = vmatmul.f32.gmra.mxu0 %v2695
  %v3479 = vpop.f32.mrf.mxu0
  %v3480 = vadd.f32 %v2103, %v3479
  %3481 = vmatmul.f32.gmra.mxu0 %v2698
  %v3482 = vpop.f32.mrf.mxu0
  %v3483 = vadd.f32 %v2103, %v3482
  %3484 = vmatmul.f32.gmra.mxu0 %v2701
  %v3485 = vpop.f32.mrf.mxu0
  %v3486 = vadd.f32 %v2103, %v3485
  %3487 = vmatmul.f32.gmra.mxu0 %v2704
  %v3488 = vpop.f32.mrf.mxu0
  %v3489 = vadd.f32 %v2103, %v3488
  %3490 = vmatmul.f32.gmra.mxu0 %v2707
  %v3491 = vpop.f32.mrf.mxu0
  %v3492 = vadd.f32 %v2103, %v3491
  %3493 = vmatmul.f32.gmra.mxu0 %v2710
  %v3494 = vpop.f32.mrf.mxu0
  %v3495 = vadd.f32 %v2103, %v3494
  %3496 = vmatmul.f32.gmra.mxu0 %v2713
  %v3497 = vpop.f32.mrf.mxu0
  %v3498 = vadd.f32 %v2103, %v3497
  %3499 = vmatmul.f32.gmra.mxu0 %v2716
  %v3500 = vpop.f32.mrf.mxu0
  %v3501 = vadd.f32 %v2103, %v3500
  %3502 = vmatmul.f32.gmra.mxu0 %v2719
  %v3503 = vpop.f32.mrf.mxu0
  %v3504 = vadd.f32 %v2103, %v3503
  %3505 = vmatmul.f32.gmra.mxu0 %v2722
  %v3506 = vpop.f32.mrf.mxu0
  %v3507 = vadd.f32 %v2103, %v3506
  %3508 = vmatmul.f32.gmra.mxu0 %v2725
  %v3509 = vpop.f32.mrf.mxu0
  %v3510 = vadd.f32 %v2103, %v3509
  %3511 = vmatmul.f32.gmra.mxu0 %v2728
  %v3512 = vpop.f32.mrf.mxu0
  %v3513 = vadd.f32 %v2103, %v3512
  %3514 = vmatmul.f32.gmra.mxu0 %v2731
  %v3515 = vpop.f32.mrf.mxu0
  %v3516 = vadd.f32 %v2103, %v3515
  %3517 = vmatmul.f32.gmra.mxu0 %v2734
  %v3518 = vpop.f32.mrf.mxu0
  %v3519 = vadd.f32 %v2103, %v3518
  %3520 = vmatmul.f32.gmra.mxu0 %v2737
  %v3521 = vpop.f32.mrf.mxu0
  %v3522 = vadd.f32 %v2103, %v3521
  %3523 = vmatmul.f32.gmra.mxu0 %v2740
  %v3524 = vpop.f32.mrf.mxu0
  %v3525 = vadd.f32 %v2103, %v3524
  %3526 = vmatmul.f32.gmra.mxu0 %v2743
  %v3527 = vpop.f32.mrf.mxu0
  %v3528 = vadd.f32 %v2103, %v3527
  %3529 = vmatmul.f32.gmra.mxu0 %v2746
  %v3530 = vpop.f32.mrf.mxu0
  %v3531 = vadd.f32 %v2103, %v3530
  %3532 = vmatmul.f32.gmra.mxu0 %v2749
  %v3533 = vpop.f32.mrf.mxu0
  %v3534 = vadd.f32 %v2103, %v3533
  %3535 = vmatmul.f32.gmra.mxu0 %v2752
  %v3536 = vpop.f32.mrf.mxu0
  %v3537 = vadd.f32 %v2103, %v3536
  %3538 = vmatmul.f32.gmra.mxu0 %v2755
  %v3539 = vpop.f32.mrf.mxu0
  %v3540 = vadd.f32 %v2103, %v3539
  %3541 = vmatmul.f32.gmra.mxu0 %v2758
  %v3542 = vpop.f32.mrf.mxu0
  %v3543 = vadd.f32 %v2103, %v3542
  %3544 = vmatmul.f32.gmra.mxu0 %v2761
  %v3545 = vpop.f32.mrf.mxu0
  %v3546 = vadd.f32 %v2103, %v3545
  %3547 = vmatmul.f32.gmra.mxu0 %v2764
  %v3548 = vpop.f32.mrf.mxu0
  %v3549 = vadd.f32 %v2103, %v3548
  %3550 = vmatmul.f32.gmra.mxu0 %v2767
  %v3551 = vpop.f32.mrf.mxu0
  %v3552 = vadd.f32 %v2103, %v3551
  %3553 = vmatmul.f32.gmra.mxu0 %v2770
  %v3554 = vpop.f32.mrf.mxu0
  %v3555 = vadd.f32 %v2103, %v3554
  %3556 = vmatmul.f32.gmra.mxu0 %v2773
  %v3557 = vpop.f32.mrf.mxu0
  %v3558 = vadd.f32 %v2103, %v3557
  %3559 = vmatmul.f32.gmra.mxu0 %v2776
  %v3560 = vpop.f32.mrf.mxu0
  %v3561 = vadd.f32 %v2103, %v3560
  %3562 = vmatmul.f32.gmra.mxu0 %v2779
  %v3563 = vpop.f32.mrf.mxu0
  %v3564 = vadd.f32 %v2103, %v3563
  %3565 = vmatmul.f32.gmra.mxu0 %v2782
  %v3566 = vpop.f32.mrf.mxu0
  %v3567 = vadd.f32 %v2103, %v3566
  %3568 = vmatmul.f32.gmra.mxu0 %v2785
  %v3569 = vpop.f32.mrf.mxu0
  %v3570 = vadd.f32 %v2103, %v3569
  %3571 = vmatmul.f32.gmra.mxu0 %v2788
  %v3572 = vpop.f32.mrf.mxu0
  %v3573 = vadd.f32 %v2103, %v3572
  %3574 = vmatmul.f32.gmra.mxu0 %v2791
  %v3575 = vpop.f32.mrf.mxu0
  %v3576 = vadd.f32 %v2103, %v3575
  %3577 = vmatmul.f32.gmra.mxu0 %v2794
  %v3578 = vpop.f32.mrf.mxu0
  %v3579 = vadd.f32 %v2103, %v3578
  %3580 = vmatmul.f32.gmra.mxu0 %v2797
  %v3581 = vpop.f32.mrf.mxu0
  %v3582 = vadd.f32 %v2103, %v3581
  %3583 = vmatmul.f32.gmra.mxu0 %v2800
  %v3584 = vpop.f32.mrf.mxu0
  %v3585 = vadd.f32 %v2103, %v3584
  %3586 = vmatmul.f32.gmra.mxu0 %v2803
  %v3587 = vpop.f32.mrf.mxu0
  %v3588 = vadd.f32 %v2103, %v3587
  %3589 = vmatmul.f32.gmra.mxu0 %v2806
  %v3590 = vpop.f32.mrf.mxu0
  %v3591 = vadd.f32 %v2103, %v3590
  %3592 = vmatmul.f32.gmra.mxu0 %v2809
  %v3593 = vpop.f32.mrf.mxu0
  %v3594 = vadd.f32 %v2103, %v3593
  %3595 = vmatmul.f32.gmra.mxu0 %v2812
  %v3596 = vpop.f32.mrf.mxu0
  %v3597 = vadd.f32 %v2103, %v3596
  %3598 = vmatmul.f32.gmra.mxu0 %v2815
  %v3599 = vpop.f32.mrf.mxu0
  %v3600 = vadd.f32 %v2103, %v3599
  %3601 = vmatmul.f32.gmra.mxu0 %v2818
  %v3602 = vpop.f32.mrf.mxu0
  %v3603 = vadd.f32 %v2103, %v3602
  %3604 = vmatmul.f32.gmra.mxu0 %v2821
  %v3605 = vpop.f32.mrf.mxu0
  %v3606 = vadd.f32 %v2103, %v3605
  %3607 = vmatmul.f32.gmra.mxu0 %v2824
  %v3608 = vpop.f32.mrf.mxu0
  %v3609 = vadd.f32 %v2103, %v3608
  %3610 = vmatmul.f32.gmra.mxu0 %v2827
  %v3611 = vpop.f32.mrf.mxu0
  %v3612 = vadd.f32 %v2103, %v3611
  %3613 = vmatmul.f32.gmra.mxu0 %v2830
  %v3614 = vpop.f32.mrf.mxu0
  %v3615 = vadd.f32 %v2103, %v3614
  %3616 = vmatmul.f32.gmra.mxu0 %v2833
  %v3617 = vpop.f32.mrf.mxu0
  %v3618 = vadd.f32 %v2103, %v3617
  %3619 = vmatmul.f32.gmra.mxu0 %v2836
  %v3620 = vpop.f32.mrf.mxu0
  %v3621 = vadd.f32 %v2103, %v3620
  %3622 = vmatmul.f32.gmra.mxu0 %v2839
  %v3623 = vpop.f32.mrf.mxu0
  %v3624 = vadd.f32 %v2103, %v3623
  %3625 = vmatmul.f32.gmra.mxu0 %v2842
  %v3626 = vpop.f32.mrf.mxu0
  %v3627 = vadd.f32 %v2103, %v3626
  %3628 = vmatmul.f32.gmra.mxu0 %v2845
  %v3629 = vpop.f32.mrf.mxu0
  %v3630 = vadd.f32 %v2103, %v3629
  %3631 = vmatmul.f32.gmra.mxu0 %v2848
  %v3632 = vpop.f32.mrf.mxu0
  %v3633 = vadd.f32 %v2103, %v3632
  %3634 = vmatmul.f32.gmra.mxu0 %v2851
  %v3635 = vpop.f32.mrf.mxu0
  %v3636 = vadd.f32 %v2103, %v3635
  %3637 = vmatmul.f32.gmra.mxu0 %v2854
  %v3638 = vpop.f32.mrf.mxu0
  %v3639 = vadd.f32 %v2103, %v3638
  %3640 = vmatmul.f32.gmra.mxu0 %v2857
  %v3641 = vpop.f32.mrf.mxu0
  %v3642 = vadd.f32 %v2103, %v3641
  %3643 = vmatmul.f32.gmra.mxu0 %v2860
  %v3644 = vpop.f32.mrf.mxu0
  %v3645 = vadd.f32 %v2103, %v3644
  %3646 = vmatmul.f32.gmra.mxu0 %v2863
  %v3647 = vpop.f32.mrf.mxu0
  %v3648 = vadd.f32 %v2103, %v3647
  %3649 = vmatmul.f32.gmra.mxu0 %v2866
  %v3650 = vpop.f32.mrf.mxu0
  %v3651 = vadd.f32 %v2103, %v3650
  %3652 = vmatmul.f32.gmra.mxu0 %v2869
  %v3653 = vpop.f32.mrf.mxu0
  %v3654 = vadd.f32 %v2103, %v3653
  %3655 = vmatmul.f32.gmra.mxu0 %v2872
  %v3656 = vpop.f32.mrf.mxu0
  %v3657 = vadd.f32 %v2103, %v3656
  %3658 = vdwg.mxu0
  %v3659 = vmax.f32 %v2892, 0.0
  %v3660 = vmax.f32 %v2895, 0.0
  %v3661 = vmax.f32 %v2898, 0.0
  %v3662 = vmax.f32 %v2901, 0.0
  %v3663 = vmax.f32 %v2904, 0.0
  %v3664 = vmax.f32 %v2907, 0.0
  %v3665 = vmax.f32 %v2910, 0.0
  %v3666 = vmax.f32 %v2913, 0.0
  %v3667 = vmax.f32 %v2916, 0.0
  %v3668 = vmax.f32 %v2919, 0.0
  %v3669 = vmax.f32 %v2922, 0.0
  %v3670 = vmax.f32 %v2925, 0.0
  %v3671 = vmax.f32 %v2928, 0.0
  %v3672 = vmax.f32 %v2931, 0.0
  %v3673 = vmax.f32 %v2934, 0.0
  %v3674 = vmax.f32 %v2937, 0.0
  %v3675 = vmax.f32 %v2940, 0.0
  %v3676 = vmax.f32 %v2943, 0.0
  %v3677 = vmax.f32 %v2946, 0.0
  %v3678 = vmax.f32 %v2949, 0.0
  %v3679 = vmax.f32 %v2952, 0.0
  %v3680 = vmax.f32 %v2955, 0.0
  %v3681 = vmax.f32 %v2958, 0.0
  %v3682 = vmax.f32 %v2961, 0.0
  %v3683 = vmax.f32 %v2964, 0.0
  %v3684 = vmax.f32 %v2967, 0.0
  %v3685 = vmax.f32 %v2970, 0.0
  %v3686 = vmax.f32 %v2973, 0.0
  %v3687 = vmax.f32 %v2976, 0.0
  %v3688 = vmax.f32 %v2979, 0.0
  %v3689 = vmax.f32 %v2982, 0.0
  %v3690 = vmax.f32 %v2985, 0.0
  %v3691 = vmax.f32 %v2988, 0.0
  %v3692 = vmax.f32 %v2991, 0.0
  %v3693 = vmax.f32 %v2994, 0.0
  %v3694 = vmax.f32 %v2997, 0.0
  %v3695 = vmax.f32 %v3000, 0.0
  %v3696 = vmax.f32 %v3003, 0.0
  %v3697 = vmax.f32 %v3006, 0.0
  %v3698 = vmax.f32 %v3009, 0.0
  %v3699 = vmax.f32 %v3012, 0.0
  %v3700 = vmax.f32 %v3015, 0.0
  %v3701 = vmax.f32 %v3018, 0.0
  %v3702 = vmax.f32 %v3021, 0.0
  %v3703 = vmax.f32 %v3024, 0.0
  %v3704 = vmax.f32 %v3027, 0.0
  %v3705 = vmax.f32 %v3030, 0.0
  %v3706 = vmax.f32 %v3033, 0.0
  %v3707 = vmax.f32 %v3036, 0.0
  %v3708 = vmax.f32 %v3039, 0.0
  %v3709 = vmax.f32 %v3042, 0.0
  %v3710 = vmax.f32 %v3045, 0.0
  %v3711 = vmax.f32 %v3048, 0.0
  %v3712 = vmax.f32 %v3051, 0.0
  %v3713 = vmax.f32 %v3054, 0.0
  %v3714 = vmax.f32 %v3057, 0.0
  %v3715 = vmax.f32 %v3060, 0.0
  %v3716 = vmax.f32 %v3063, 0.0
  %v3717 = vmax.f32 %v3066, 0.0
  %v3718 = vmax.f32 %v3069, 0.0
  %v3719 = vmax.f32 %v3072, 0.0
  %v3720 = vmax.f32 %v3075, 0.0
  %v3721 = vmax.f32 %v3078, 0.0
  %v3722 = vmax.f32 %v3081, 0.0
  %v3723 = vmax.f32 %v3084, 0.0
  %v3724 = vmax.f32 %v3087, 0.0
  %v3725 = vmax.f32 %v3090, 0.0
  %v3726 = vmax.f32 %v3093, 0.0
  %v3727 = vmax.f32 %v3096, 0.0
  %v3728 = vmax.f32 %v3099, 0.0
  %v3729 = vmax.f32 %v3102, 0.0
  %v3730 = vmax.f32 %v3105, 0.0
  %v3731 = vmax.f32 %v3108, 0.0
  %v3732 = vmax.f32 %v3111, 0.0
  %v3733 = vmax.f32 %v3114, 0.0
  %v3734 = vmax.f32 %v3117, 0.0
  %v3735 = vmax.f32 %v3120, 0.0
  %v3736 = vmax.f32 %v3123, 0.0
  %v3737 = vmax.f32 %v3126, 0.0
  %v3738 = vmax.f32 %v3129, 0.0
  %v3739 = vmax.f32 %v3132, 0.0
  %v3740 = vmax.f32 %v3135, 0.0
  %v3741 = vmax.f32 %v3138, 0.0
  %v3742 = vmax.f32 %v3141, 0.0
  %v3743 = vmax.f32 %v3144, 0.0
  %v3744 = vmax.f32 %v3147, 0.0
  %v3745 = vmax.f32 %v3150, 0.0
  %v3746 = vmax.f32 %v3153, 0.0
  %v3747 = vmax.f32 %v3156, 0.0
  %v3748 = vmax.f32 %v3159, 0.0
  %v3749 = vmax.f32 %v3162, 0.0
  %v3750 = vmax.f32 %v3165, 0.0
  %v3751 = vmax.f32 %v3168, 0.0
  %v3752 = vmax.f32 %v3171, 0.0
  %v3753 = vmax.f32 %v3174, 0.0
  %v3754 = vmax.f32 %v3177, 0.0
  %v3755 = vmax.f32 %v3180, 0.0
  %v3756 = vmax.f32 %v3183, 0.0
  %v3757 = vmax.f32 %v3186, 0.0
  %v3758 = vmax.f32 %v3189, 0.0
  %v3759 = vmax.f32 %v3192, 0.0
  %v3760 = vmax.f32 %v3195, 0.0
  %v3761 = vmax.f32 %v3198, 0.0
  %v3762 = vmax.f32 %v3201, 0.0
  %v3763 = vmax.f32 %v3204, 0.0
  %v3764 = vmax.f32 %v3207, 0.0
  %v3765 = vmax.f32 %v3210, 0.0
  %v3766 = vmax.f32 %v3213, 0.0
  %v3767 = vmax.f32 %v3216, 0.0
  %v3768 = vmax.f32 %v3219, 0.0
  %v3769 = vmax.f32 %v3222, 0.0
  %v3770 = vmax.f32 %v3225, 0.0
  %v3771 = vmax.f32 %v3228, 0.0
  %v3772 = vmax.f32 %v3231, 0.0
  %v3773 = vmax.f32 %v3234, 0.0
  %v3774 = vmax.f32 %v3237, 0.0
  %v3775 = vmax.f32 %v3240, 0.0
  %v3776 = vmax.f32 %v3243, 0.0
  %v3777 = vmax.f32 %v3246, 0.0
  %v3778 = vmax.f32 %v3249, 0.0
  %v3779 = vmax.f32 %v3252, 0.0
  %v3780 = vmax.f32 %v3255, 0.0
  %v3781 = vmax.f32 %v3258, 0.0
  %v3782 = vmax.f32 %v3261, 0.0
  %v3783 = vmax.f32 %v3264, 0.0
  %v3784 = vmax.f32 %v3267, 0.0
  %v3785 = vmax.f32 %v3270, 0.0
  %v3786 = vmax.f32 %v3273, 0.0
  %v3787 = vmax.f32 %v3276, 0.0
  %v3788 = vmax.f32 %v3279, 0.0
  %v3789 = vmax.f32 %v3282, 0.0
  %v3790 = vmax.f32 %v3285, 0.0
  %v3791 = vmax.f32 %v3288, 0.0
  %v3792 = vmax.f32 %v3291, 0.0
  %v3793 = vmax.f32 %v3294, 0.0
  %v3794 = vmax.f32 %v3297, 0.0
  %v3795 = vmax.f32 %v3300, 0.0
  %v3796 = vmax.f32 %v3303, 0.0
  %v3797 = vmax.f32 %v3306, 0.0
  %v3798 = vmax.f32 %v3309, 0.0
  %v3799 = vmax.f32 %v3312, 0.0
  %v3800 = vmax.f32 %v3315, 0.0
  %v3801 = vmax.f32 %v3318, 0.0
  %v3802 = vmax.f32 %v3321, 0.0
  %v3803 = vmax.f32 %v3324, 0.0
  %v3804 = vmax.f32 %v3327, 0.0
  %v3805 = vmax.f32 %v3330, 0.0
  %v3806 = vmax.f32 %v3333, 0.0
  %v3807 = vmax.f32 %v3336, 0.0
  %v3808 = vmax.f32 %v3339, 0.0
  %v3809 = vmax.f32 %v3342, 0.0
  %v3810 = vmax.f32 %v3345, 0.0
  %v3811 = vmax.f32 %v3348, 0.0
  %v3812 = vmax.f32 %v3351, 0.0
  %v3813 = vmax.f32 %v3354, 0.0
  %v3814 = vmax.f32 %v3357, 0.0
  %v3815 = vmax.f32 %v3360, 0.0
  %v3816 = vmax.f32 %v3363, 0.0
  %v3817 = vmax.f32 %v3366, 0.0
  %v3818 = vmax.f32 %v3369, 0.0
  %v3819 = vmax.f32 %v3372, 0.0
  %v3820 = vmax.f32 %v3375, 0.0
  %v3821 = vmax.f32 %v3378, 0.0
  %v3822 = vmax.f32 %v3381, 0.0
  %v3823 = vmax.f32 %v3384, 0.0
  %v3824 = vmax.f32 %v3387, 0.0
  %v3825 = vmax.f32 %v3390, 0.0
  %v3826 = vmax.f32 %v3393, 0.0
  %v3827 = vmax.f32 %v3396, 0.0
  %v3828 = vmax.f32 %v3399, 0.0
  %v3829 = vmax.f32 %v3402, 0.0
  %v3830 = vmax.f32 %v3405, 0.0
  %v3831 = vmax.f32 %v3408, 0.0
  %v3832 = vmax.f32 %v3411, 0.0
  %v3833 = vmax.f32 %v3414, 0.0
  %v3834 = vmax.f32 %v3417, 0.0
  %v3835 = vmax.f32 %v3420, 0.0
  %v3836 = vmax.f32 %v3423, 0.0
  %v3837 = vmax.f32 %v3426, 0.0
  %v3838 = vmax.f32 %v3429, 0.0
  %v3839 = vmax.f32 %v3432, 0.0
  %v3840 = vmax.f32 %v3435, 0.0
  %v3841 = vmax.f32 %v3438, 0.0
  %v3842 = vmax.f32 %v3441, 0.0
  %v3843 = vmax.f32 %v3444, 0.0
  %v3844 = vmax.f32 %v3447, 0.0
  %v3845 = vmax.f32 %v3450, 0.0
  %v3846 = vmax.f32 %v3453, 0.0
  %v3847 = vmax.f32 %v3456, 0.0
  %v3848 = vmax.f32 %v3459, 0.0
  %v3849 = vmax.f32 %v3462, 0.0
  %v3850 = vmax.f32 %v3465, 0.0
  %v3851 = vmax.f32 %v3468, 0.0
  %v3852 = vmax.f32 %v3471, 0.0
  %v3853 = vmax.f32 %v3474, 0.0
  %v3854 = vmax.f32 %v3477, 0.0
  %v3855 = vmax.f32 %v3480, 0.0
  %v3856 = vmax.f32 %v3483, 0.0
  %v3857 = vmax.f32 %v3486, 0.0
  %v3858 = vmax.f32 %v3489, 0.0
  %v3859 = vmax.f32 %v3492, 0.0
  %v3860 = vmax.f32 %v3495, 0.0
  %v3861 = vmax.f32 %v3498, 0.0
  %v3862 = vmax.f32 %v3501, 0.0
  %v3863 = vmax.f32 %v3504, 0.0
  %v3864 = vmax.f32 %v3507, 0.0
  %v3865 = vmax.f32 %v3510, 0.0
  %v3866 = vmax.f32 %v3513, 0.0
  %v3867 = vmax.f32 %v3516, 0.0
  %v3868 = vmax.f32 %v3519, 0.0
  %v3869 = vmax.f32 %v3522, 0.0
  %v3870 = vmax.f32 %v3525, 0.0
  %v3871 = vmax.f32 %v3528, 0.0
  %v3872 = vmax.f32 %v3531, 0.0
  %v3873 = vmax.f32 %v3534, 0.0
  %v3874 = vmax.f32 %v3537, 0.0
  %v3875 = vmax.f32 %v3540, 0.0
  %v3876 = vmax.f32 %v3543, 0.0
  %v3877 = vmax.f32 %v3546, 0.0
  %v3878 = vmax.f32 %v3549, 0.0
  %v3879 = vmax.f32 %v3552, 0.0
  %v3880 = vmax.f32 %v3555, 0.0
  %v3881 = vmax.f32 %v3558, 0.0
  %v3882 = vmax.f32 %v3561, 0.0
  %v3883 = vmax.f32 %v3564, 0.0
  %v3884 = vmax.f32 %v3567, 0.0
  %v3885 = vmax.f32 %v3570, 0.0
  %v3886 = vmax.f32 %v3573, 0.0
  %v3887 = vmax.f32 %v3576, 0.0
  %v3888 = vmax.f32 %v3579, 0.0
  %v3889 = vmax.f32 %v3582, 0.0
  %v3890 = vmax.f32 %v3585, 0.0
  %v3891 = vmax.f32 %v3588, 0.0
  %v3892 = vmax.f32 %v3591, 0.0
  %v3893 = vmax.f32 %v3594, 0.0
  %v3894 = vmax.f32 %v3597, 0.0
  %v3895 = vmax.f32 %v3600, 0.0
  %v3896 = vmax.f32 %v3603, 0.0
  %v3897 = vmax.f32 %v3606, 0.0
  %v3898 = vmax.f32 %v3609, 0.0
  %v3899 = vmax.f32 %v3612, 0.0
  %v3900 = vmax.f32 %v3615, 0.0
  %v3901 = vmax.f32 %v3618, 0.0
  %v3902 = vmax.f32 %v3621, 0.0
  %v3903 = vmax.f32 %v3624, 0.0
  %v3904 = vmax.f32 %v3627, 0.0
  %v3905 = vmax.f32 %v3630, 0.0
  %v3906 = vmax.f32 %v3633, 0.0
  %v3907 = vmax.f32 %v3636, 0.0
  %v3908 = vmax.f32 %v3639, 0.0
  %v3909 = vmax.f32 %v3642, 0.0
  %v3910 = vmax.f32 %v3645, 0.0
  %v3911 = vmax.f32 %v3648, 0.0
  %v3912 = vmax.f32 %v3651, 0.0
  %v3913 = vmax.f32 %v3654, 0.0
  %v3914 = vmax.f32 %v3657, 0.0
  %v3915 = vld [vmem:[%s5] sm:$0xff]
  %v3916 = vld [vmem:[%s5 + $0x8] sm:$0xff]
  %v3917 = vld [vmem:[%s5 + $0x10] sm:$0xff]
  %v3918 = vld [vmem:[%s5 + $0x18] sm:$0xff]
  %v3919 = vld [vmem:[%s6] sm:$0x1]
  %v3921 = vperm.slane %v3919, 0
  %v3924 = vsel %vm2105, %v3659, 0
  %v3927 = vsel %vm2105, %v3660, 0
  %v3930 = vsel %vm2105, %v3661, 0
  %v3933 = vsel %vm2105, %v3662, 0
  %v3936 = vsel %vm2105, %v3663, 0
  %v3939 = vsel %vm2105, %v3664, 0
  %v3942 = vsel %vm2105, %v3665, 0
  %v3945 = vsel %vm2105, %v3666, 0
  %v3948 = vsel %vm2105, %v3667, 0
  %v3951 = vsel %vm2105, %v3668, 0
  %v3954 = vsel %vm2105, %v3669, 0
  %v3957 = vsel %vm2105, %v3670, 0
  %v3960 = vsel %vm2105, %v3671, 0
  %v3963 = vsel %vm2105, %v3672, 0
  %v3966 = vsel %vm2105, %v3673, 0
  %v3969 = vsel %vm2105, %v3674, 0
  %v3972 = vsel %vm2105, %v3675, 0
  %v3975 = vsel %vm2105, %v3676, 0
  %v3978 = vsel %vm2105, %v3677, 0
  %v3981 = vsel %vm2105, %v3678, 0
  %v3984 = vsel %vm2105, %v3679, 0
  %v3987 = vsel %vm2105, %v3680, 0
  %v3990 = vsel %vm2105, %v3681, 0
  %v3993 = vsel %vm2105, %v3682, 0
  %v3996 = vsel %vm2105, %v3683, 0
  %v3999 = vsel %vm2105, %v3684, 0
  %v4002 = vsel %vm2105, %v3685, 0
  %v4005 = vsel %vm2105, %v3686, 0
  %v4008 = vsel %vm2105, %v3687, 0
  %v4011 = vsel %vm2105, %v3688, 0
  %v4014 = vsel %vm2105, %v3689, 0
  %v4017 = vsel %vm2105, %v3690, 0
  %v4020 = vsel %vm2105, %v3691, 0
  %v4023 = vsel %vm2105, %v3692, 0
  %v4026 = vsel %vm2105, %v3693, 0
  %v4029 = vsel %vm2105, %v3694, 0
  %v4032 = vsel %vm2105, %v3695, 0
  %v4035 = vsel %vm2105, %v3696, 0
  %v4038 = vsel %vm2105, %v3697, 0
  %v4041 = vsel %vm2105, %v3698, 0
  %v4044 = vsel %vm2105, %v3699, 0
  %v4047 = vsel %vm2105, %v3700, 0
  %v4050 = vsel %vm2105, %v3701, 0
  %v4053 = vsel %vm2105, %v3702, 0
  %v4056 = vsel %vm2105, %v3703, 0
  %v4059 = vsel %vm2105, %v3704, 0
  %v4062 = vsel %vm2105, %v3705, 0
  %v4065 = vsel %vm2105, %v3706, 0
  %v4068 = vsel %vm2105, %v3707, 0
  %v4071 = vsel %vm2105, %v3708, 0
  %v4074 = vsel %vm2105, %v3709, 0
  %v4077 = vsel %vm2105, %v3710, 0
  %v4080 = vsel %vm2105, %v3711, 0
  %v4083 = vsel %vm2105, %v3712, 0
  %v4086 = vsel %vm2105, %v3713, 0
  %v4089 = vsel %vm2105, %v3714, 0
  %v4092 = vsel %vm2105, %v3715, 0
  %v4095 = vsel %vm2105, %v3716, 0
  %v4098 = vsel %vm2105, %v3717, 0
  %v4101 = vsel %vm2105, %v3718, 0
  %v4104 = vsel %vm2105, %v3719, 0
  %v4107 = vsel %vm2105, %v3720, 0
  %v4110 = vsel %vm2105, %v3721, 0
  %v4113 = vsel %vm2105, %v3722, 0
  %v4116 = vsel %vm2105, %v3723, 0
  %v4119 = vsel %vm2105, %v3724, 0
  %v4122 = vsel %vm2105, %v3725, 0
  %v4125 = vsel %vm2105, %v3726, 0
  %v4128 = vsel %vm2105, %v3727, 0
  %v4131 = vsel %vm2105, %v3728, 0
  %v4134 = vsel %vm2105, %v3729, 0
  %v4137 = vsel %vm2105, %v3730, 0
  %v4140 = vsel %vm2105, %v3731, 0
  %v4143 = vsel %vm2105, %v3732, 0
  %v4146 = vsel %vm2105, %v3733, 0
  %v4149 = vsel %vm2105, %v3734, 0
  %v4152 = vsel %vm2105, %v3735, 0
  %v4155 = vsel %vm2105, %v3736, 0
  %v4158 = vsel %vm2105, %v3737, 0
  %v4161 = vsel %vm2105, %v3738, 0
  %v4164 = vsel %vm2105, %v3739, 0
  %v4167 = vsel %vm2105, %v3740, 0
  %v4170 = vsel %vm2105, %v3741, 0
  %v4173 = vsel %vm2105, %v3742, 0
  %v4176 = vsel %vm2105, %v3743, 0
  %v4179 = vsel %vm2105, %v3744, 0
  %v4182 = vsel %vm2105, %v3745, 0
  %v4185 = vsel %vm2105, %v3746, 0
  %v4188 = vsel %vm2105, %v3747, 0
  %v4191 = vsel %vm2105, %v3748, 0
  %v4194 = vsel %vm2105, %v3749, 0
  %v4197 = vsel %vm2105, %v3750, 0
  %v4200 = vsel %vm2105, %v3751, 0
  %v4203 = vsel %vm2105, %v3752, 0
  %v4206 = vsel %vm2105, %v3753, 0
  %v4209 = vsel %vm2105, %v3754, 0
  %v4212 = vsel %vm2105, %v3755, 0
  %v4215 = vsel %vm2105, %v3756, 0
  %v4218 = vsel %vm2105, %v3757, 0
  %v4221 = vsel %vm2105, %v3758, 0
  %v4224 = vsel %vm2105, %v3759, 0
  %v4227 = vsel %vm2105, %v3760, 0
  %v4230 = vsel %vm2105, %v3761, 0
  %v4233 = vsel %vm2105, %v3762, 0
  %v4236 = vsel %vm2105, %v3763, 0
  %v4239 = vsel %vm2105, %v3764, 0
  %v4242 = vsel %vm2105, %v3765, 0
  %v4245 = vsel %vm2105, %v3766, 0
  %v4248 = vsel %vm2105, %v3767, 0
  %v4251 = vsel %vm2105, %v3768, 0
  %v4254 = vsel %vm2105, %v3769, 0
  %v4257 = vsel %vm2105, %v3770, 0
  %v4260 = vsel %vm2105, %v3771, 0
  %v4263 = vsel %vm2105, %v3772, 0
  %v4266 = vsel %vm2105, %v3773, 0
  %v4269 = vsel %vm2105, %v3774, 0
  %v4272 = vsel %vm2105, %v3775, 0
  %v4275 = vsel %vm2105, %v3776, 0
  %v4278 = vsel %vm2105, %v3777, 0
  %v4281 = vsel %vm2105, %v3778, 0
  %v4284 = vsel %vm2105, %v3779, 0
  %v4287 = vsel %vm2105, %v3780, 0
  %v4290 = vsel %vm2105, %v3781, 0
  %v4293 = vsel %vm2105, %v3782, 0
  %v4296 = vsel %vm2105, %v3783, 0
  %v4299 = vsel %vm2105, %v3784, 0
  %v4302 = vsel %vm2105, %v3785, 0
  %v4305 = vsel %vm2105, %v3786, 0
  %v4308 = vsel %vm2105, %v3787, 0
  %v4311 = vsel %vm2105, %v3788, 0
  %v4314 = vsel %vm2105, %v3789, 0
  %v4317 = vsel %vm2105, %v3790, 0
  %v4320 = vsel %vm2105, %v3791, 0
  %v4323 = vsel %vm2105, %v3792, 0
  %v4326 = vsel %vm2105, %v3793, 0
  %v4329 = vsel %vm2105, %v3794, 0
  %v4332 = vsel %vm2105, %v3795, 0
  %v4335 = vsel %vm2105, %v3796, 0
  %v4338 = vsel %vm2105, %v3797, 0
  %v4341 = vsel %vm2105, %v3798, 0
  %v4344 = vsel %vm2105, %v3799, 0
  %v4347 = vsel %vm2105, %v3800, 0
  %v4350 = vsel %vm2105, %v3801, 0
  %v4353 = vsel %vm2105, %v3802, 0
  %v4356 = vsel %vm2105, %v3803, 0
  %v4359 = vsel %vm2105, %v3804, 0
  %v4362 = vsel %vm2105, %v3805, 0
  %v4365 = vsel %vm2105, %v3806, 0
  %v4368 = vsel %vm2105, %v3807, 0
  %v4371 = vsel %vm2105, %v3808, 0
  %v4374 = vsel %vm2105, %v3809, 0
  %v4377 = vsel %vm2105, %v3810, 0
  %v4380 = vsel %vm2105, %v3811, 0
  %v4383 = vsel %vm2105, %v3812, 0
  %v4386 = vsel %vm2105, %v3813, 0
  %v4389 = vsel %vm2105, %v3814, 0
  %v4392 = vsel %vm2105, %v3815, 0
  %v4395 = vsel %vm2105, %v3816, 0
  %v4398 = vsel %vm2105, %v3817, 0
  %v4401 = vsel %vm2105, %v3818, 0
  %v4404 = vsel %vm2105, %v3819, 0
  %v4407 = vsel %vm2105, %v3820, 0
  %v4410 = vsel %vm2105, %v3821, 0
  %v4413 = vsel %vm2105, %v3822, 0
  %v4416 = vsel %vm2105, %v3823, 0
  %v4419 = vsel %vm2105, %v3824, 0
  %v4422 = vsel %vm2105, %v3825, 0
  %v4425 = vsel %vm2105, %v3826, 0
  %v4428 = vsel %vm2105, %v3827, 0
  %v4431 = vsel %vm2105, %v3828, 0
  %v4434 = vsel %vm2105, %v3829, 0
  %v4437 = vsel %vm2105, %v3830, 0
  %v4440 = vsel %vm2105, %v3831, 0
  %v4443 = vsel %vm2105, %v3832, 0
  %v4446 = vsel %vm2105, %v3833, 0
  %v4449 = vsel %vm2105, %v3834, 0
  %v4452 = vsel %vm2105, %v3835, 0
  %v4455 = vsel %vm2105, %v3836, 0
  %v4458 = vsel %vm2105, %v3837, 0
  %v4461 = vsel %vm2105, %v3838, 0
  %v4464 = vsel %vm2105, %v3839, 0
  %v4467 = vsel %vm2105, %v3840, 0
  %v4470 = vsel %vm2105, %v3841, 0
  %v4473 = vsel %vm2105, %v3842, 0
  %v4476 = vsel %vm2105, %v3843, 0
  %v4479 = vsel %vm2105, %v3844, 0
  %v4482 = vsel %vm2105, %v3845, 0
  %v4485 = vsel %vm2105, %v3846, 0
  %v4488 = vsel %vm2105, %v3847, 0
  %v4491 = vsel %vm2105, %v3848, 0
  %v4494 = vsel %vm2105, %v3849, 0
  %v4497 = vsel %vm2105, %v3850, 0
  %v4500 = vsel %vm2105, %v3851, 0
  %v4503 = vsel %vm2105, %v3852, 0
  %v4506 = vsel %vm2105, %v3853, 0
  %v4509 = vsel %vm2105, %v3854, 0
  %v4512 = vsel %vm2105, %v3855, 0
  %v4515 = vsel %vm2105, %v3856, 0
  %v4518 = vsel %vm2105, %v3857, 0
  %v4521 = vsel %vm2105, %v3858, 0
  %v4524 = vsel %vm2105, %v3859, 0
  %v4527 = vsel %vm2105, %v3860, 0
  %v4530 = vsel %vm2105, %v3861, 0
  %v4533 = vsel %vm2105, %v3862, 0
  %v4536 = vsel %vm2105, %v3863, 0
  %v4539 = vsel %vm2105, %v3864, 0
  %v4542 = vsel %vm2105, %v3865, 0
  %v4545 = vsel %vm2105, %v3866, 0
  %v4548 = vsel %vm2105, %v3867, 0
  %v4551 = vsel %vm2105, %v3868, 0
  %v4554 = vsel %vm2105, %v3869, 0
  %v4557 = vsel %vm2105, %v3870, 0
  %v4560 = vsel %vm2105, %v3871, 0
  %v4563 = vsel %vm2105, %v3872, 0
  %v4566 = vsel %vm2105, %v3873, 0
  %v4569 = vsel %vm2105, %v3874, 0
  %v4572 = vsel %vm2105, %v3875, 0
  %v4575 = vsel %vm2105, %v3876, 0
  %v4578 = vsel %vm2105, %v3877, 0
  %v4581 = vsel %vm2105, %v3878, 0
  %v4584 = vsel %vm2105, %v3879, 0
  %v4587 = vsel %vm2105, %v3880, 0
  %v4590 = vsel %vm2105, %v3881, 0
  %v4593 = vsel %vm2105, %v3882, 0
  %v4596 = vsel %vm2105, %v3883, 0
  %v4599 = vsel %vm2105, %v3884, 0
  %v4602 = vsel %vm2105, %v3885, 0
  %v4605 = vsel %vm2105, %v3886, 0
  %v4608 = vsel %vm2105, %v3887, 0
  %v4611 = vsel %vm2105, %v3888, 0
  %v4614 = vsel %vm2105, %v3889, 0
  %v4617 = vsel %vm2105, %v3890, 0
  %v4620 = vsel %vm2105, %v3891, 0
  %v4623 = vsel %vm2105, %v3892, 0
  %v4626 = vsel %vm2105, %v3893, 0
  %v4629 = vsel %vm2105, %v3894, 0
  %v4632 = vsel %vm2105, %v3895, 0
  %v4635 = vsel %vm2105, %v3896, 0
  %v4638 = vsel %vm2105, %v3897, 0
  %v4641 = vsel %vm2105, %v3898, 0
  %v4644 = vsel %vm2105, %v3899, 0
  %v4647 = vsel %vm2105, %v3900, 0
  %v4650 = vsel %vm2105, %v3901, 0
  %v4653 = vsel %vm2105, %v3902, 0
  %v4656 = vsel %vm2105, %v3903, 0
  %v4659 = vsel %vm2105, %v3904, 0
  %v4662 = vsel %vm2105, %v3905, 0
  %v4665 = vsel %vm2105, %v3906, 0
  %v4668 = vsel %vm2105, %v3907, 0
  %v4671 = vsel %vm2105, %v3908, 0
  %v4674 = vsel %vm2105, %v3909, 0
  %v4677 = vsel %vm2105, %v3910, 0
  %v4680 = vsel %vm2105, %v3911, 0
  %v4683 = vsel %vm2105, %v3912, 0
  %v4686 = vsel %vm2105, %v3913, 0
  %v4689 = vsel %vm2105, %v3914, 0
  %4691 = vmatpush.msra.mxu0 0.0
  %4692 = vmatpush.msra.mxu0 0.0
  %4693 = vmatpush.msra.mxu0 0.0
  %4694 = vmatpush.msra.mxu0 0.0
  %4695 = vmatpush.msra.mxu0 0.0
  %4696 = vmatpush.msra.mxu0 0.0
  %4697 = vmatpush.msra.mxu0 0.0
  %4698 = vmatpush.msra.mxu0 0.0
  %4699 = vmatpush.msra.mxu0 0.0
  %4700 = vmatpush.msra.mxu0 0.0
  %4701 = vmatpush.msra.mxu0 0.0
  %4702 = vmatpush.msra.mxu0 0.0
  %4703 = vmatpush.msra.mxu0 %v3918
  %4704 = vmatpush.msra.mxu0 %v3917
  %4705 = vmatpush.msra.mxu0 %v3916
  %4706 = vmatpush.msra.mxu0 %v3915
  %4707 = vmatmul.f32.gmra.mxu0 %v3924
  %v4708 = vpop.f32.mrf.mxu0
  %v4709 = vadd.f32 %v3921, %v4708
  %4710 = vmatmul.f32.gmra.mxu0 %v3927
  %v4711 = vpop.f32.mrf.mxu0
  %v4712 = vadd.f32 %v3921, %v4711
  %4713 = vmatmul.f32.gmra.mxu0 %v3930
  %v4714 = vpop.f32.mrf.mxu0
  %v4715 = vadd.f32 %v3921, %v4714
  %4716 = vmatmul.f32.gmra.mxu0 %v3933
  %v4717 = vpop.f32.mrf.mxu0
  %v4718 = vadd.f32 %v3921, %v4717
  %4719 = vmatmul.f32.gmra.mxu0 %v3936
  %v4720 = vpop.f32.mrf.mxu0
  %v4721 = vadd.f32 %v3921, %v4720
  %4722 = vmatmul.f32.gmra.mxu0 %v3939
  %v4723 = vpop.f32.mrf.mxu0
  %v4724 = vadd.f32 %v3921, %v4723
  %4725 = vmatmul.f32.gmra.mxu0 %v3942
  %v4726 = vpop.f32.mrf.mxu0
  %v4727 = vadd.f32 %v3921, %v4726
  %4728 = vmatmul.f32.gmra.mxu0 %v3945
  %v4729 = vpop.f32.mrf.mxu0
  %v4730 = vadd.f32 %v3921, %v4729
  %4731 = vmatmul.f32.gmra.mxu0 %v3948
  %v4732 = vpop.f32.mrf.mxu0
  %v4733 = vadd.f32 %v3921, %v4732
  %4734 = vmatmul.f32.gmra.mxu0 %v3951
  %v4735 = vpop.f32.mrf.mxu0
  %v4736 = vadd.f32 %v3921, %v4735
  %4737 = vmatmul.f32.gmra.mxu0 %v3954
  %v4738 = vpop.f32.mrf.mxu0
  %v4739 = vadd.f32 %v3921, %v4738
  %4740 = vmatmul.f32.gmra.mxu0 %v3957
  %v4741 = vpop.f32.mrf.mxu0
  %v4742 = vadd.f32 %v3921, %v4741
  %4743 = vmatmul.f32.gmra.mxu0 %v3960
  %v4744 = vpop.f32.mrf.mxu0
  %v4745 = vadd.f32 %v3921, %v4744
  %4746 = vmatmul.f32.gmra.mxu0 %v3963
  %v4747 = vpop.f32.mrf.mxu0
  %v4748 = vadd.f32 %v3921, %v4747
  %4749 = vmatmul.f32.gmra.mxu0 %v3966
  %v4750 = vpop.f32.mrf.mxu0
  %v4751 = vadd.f32 %v3921, %v4750
  %4752 = vmatmul.f32.gmra.mxu0 %v3969
  %v4753 = vpop.f32.mrf.mxu0
  %v4754 = vadd.f32 %v3921, %v4753
  %4755 = vmatmul.f32.gmra.mxu0 %v3972
  %v4756 = vpop.f32.mrf.mxu0
  %v4757 = vadd.f32 %v3921, %v4756
  %4758 = vmatmul.f32.gmra.mxu0 %v3975
  %v4759 = vpop.f32.mrf.mxu0
  %v4760 = vadd.f32 %v3921, %v4759
  %4761 = vmatmul.f32.gmra.mxu0 %v3978
  %v4762 = vpop.f32.mrf.mxu0
  %v4763 = vadd.f32 %v3921, %v4762
  %4764 = vmatmul.f32.gmra.mxu0 %v3981
  %v4765 = vpop.f32.mrf.mxu0
  %v4766 = vadd.f32 %v3921, %v4765
  %4767 = vmatmul.f32.gmra.mxu0 %v3984
  %v4768 = vpop.f32.mrf.mxu0
  %v4769 = vadd.f32 %v3921, %v4768
  %4770 = vmatmul.f32.gmra.mxu0 %v3987
  %v4771 = vpop.f32.mrf.mxu0
  %v4772 = vadd.f32 %v3921, %v4771
  %4773 = vmatmul.f32.gmra.mxu0 %v3990
  %v4774 = vpop.f32.mrf.mxu0
  %v4775 = vadd.f32 %v3921, %v4774
  %4776 = vmatmul.f32.gmra.mxu0 %v3993
  %v4777 = vpop.f32.mrf.mxu0
  %v4778 = vadd.f32 %v3921, %v4777
  %4779 = vmatmul.f32.gmra.mxu0 %v3996
  %v4780 = vpop.f32.mrf.mxu0
  %v4781 = vadd.f32 %v3921, %v4780
  %4782 = vmatmul.f32.gmra.mxu0 %v3999
  %v4783 = vpop.f32.mrf.mxu0
  %v4784 = vadd.f32 %v3921, %v4783
  %4785 = vmatmul.f32.gmra.mxu0 %v4002
  %v4786 = vpop.f32.mrf.mxu0
  %v4787 = vadd.f32 %v3921, %v4786
  %4788 = vmatmul.f32.gmra.mxu0 %v4005
  %v4789 = vpop.f32.mrf.mxu0
  %v4790 = vadd.f32 %v3921, %v4789
  %4791 = vmatmul.f32.gmra.mxu0 %v4008
  %v4792 = vpop.f32.mrf.mxu0
  %v4793 = vadd.f32 %v3921, %v4792
  %4794 = vmatmul.f32.gmra.mxu0 %v4011
  %v4795 = vpop.f32.mrf.mxu0
  %v4796 = vadd.f32 %v3921, %v4795
  %4797 = vmatmul.f32.gmra.mxu0 %v4014
  %v4798 = vpop.f32.mrf.mxu0
  %v4799 = vadd.f32 %v3921, %v4798
  %4800 = vmatmul.f32.gmra.mxu0 %v4017
  %v4801 = vpop.f32.mrf.mxu0
  %v4802 = vadd.f32 %v3921, %v4801
  %4803 = vmatmul.f32.gmra.mxu0 %v4020
  %v4804 = vpop.f32.mrf.mxu0
  %v4805 = vadd.f32 %v3921, %v4804
  %4806 = vmatmul.f32.gmra.mxu0 %v4023
  %v4807 = vpop.f32.mrf.mxu0
  %v4808 = vadd.f32 %v3921, %v4807
  %4809 = vmatmul.f32.gmra.mxu0 %v4026
  %v4810 = vpop.f32.mrf.mxu0
  %v4811 = vadd.f32 %v3921, %v4810
  %4812 = vmatmul.f32.gmra.mxu0 %v4029
  %v4813 = vpop.f32.mrf.mxu0
  %v4814 = vadd.f32 %v3921, %v4813
  %4815 = vmatmul.f32.gmra.mxu0 %v4032
  %v4816 = vpop.f32.mrf.mxu0
  %v4817 = vadd.f32 %v3921, %v4816
  %4818 = vmatmul.f32.gmra.mxu0 %v4035
  %v4819 = vpop.f32.mrf.mxu0
  %v4820 = vadd.f32 %v3921, %v4819
  %4821 = vmatmul.f32.gmra.mxu0 %v4038
  %v4822 = vpop.f32.mrf.mxu0
  %v4823 = vadd.f32 %v3921, %v4822
  %4824 = vmatmul.f32.gmra.mxu0 %v4041
  %v4825 = vpop.f32.mrf.mxu0
  %v4826 = vadd.f32 %v3921, %v4825
  %4827 = vmatmul.f32.gmra.mxu0 %v4044
  %v4828 = vpop.f32.mrf.mxu0
  %v4829 = vadd.f32 %v3921, %v4828
  %4830 = vmatmul.f32.gmra.mxu0 %v4047
  %v4831 = vpop.f32.mrf.mxu0
  %v4832 = vadd.f32 %v3921, %v4831
  %4833 = vmatmul.f32.gmra.mxu0 %v4050
  %v4834 = vpop.f32.mrf.mxu0
  %v4835 = vadd.f32 %v3921, %v4834
  %4836 = vmatmul.f32.gmra.mxu0 %v4053
  %v4837 = vpop.f32.mrf.mxu0
  %v4838 = vadd.f32 %v3921, %v4837
  %4839 = vmatmul.f32.gmra.mxu0 %v4056
  %v4840 = vpop.f32.mrf.mxu0
  %v4841 = vadd.f32 %v3921, %v4840
  %4842 = vmatmul.f32.gmra.mxu0 %v4059
  %v4843 = vpop.f32.mrf.mxu0
  %v4844 = vadd.f32 %v3921, %v4843
  %4845 = vmatmul.f32.gmra.mxu0 %v4062
  %v4846 = vpop.f32.mrf.mxu0
  %v4847 = vadd.f32 %v3921, %v4846
  %4848 = vmatmul.f32.gmra.mxu0 %v4065
  %v4849 = vpop.f32.mrf.mxu0
  %v4850 = vadd.f32 %v3921, %v4849
  %4851 = vmatmul.f32.gmra.mxu0 %v4068
  %v4852 = vpop.f32.mrf.mxu0
  %v4853 = vadd.f32 %v3921, %v4852
  %4854 = vmatmul.f32.gmra.mxu0 %v4071
  %v4855 = vpop.f32.mrf.mxu0
  %v4856 = vadd.f32 %v3921, %v4855
  %4857 = vmatmul.f32.gmra.mxu0 %v4074
  %v4858 = vpop.f32.mrf.mxu0
  %v4859 = vadd.f32 %v3921, %v4858
  %4860 = vmatmul.f32.gmra.mxu0 %v4077
  %v4861 = vpop.f32.mrf.mxu0
  %v4862 = vadd.f32 %v3921, %v4861
  %4863 = vmatmul.f32.gmra.mxu0 %v4080
  %v4864 = vpop.f32.mrf.mxu0
  %v4865 = vadd.f32 %v3921, %v4864
  %4866 = vmatmul.f32.gmra.mxu0 %v4083
  %v4867 = vpop.f32.mrf.mxu0
  %v4868 = vadd.f32 %v3921, %v4867
  %4869 = vmatmul.f32.gmra.mxu0 %v4086
  %v4870 = vpop.f32.mrf.mxu0
  %v4871 = vadd.f32 %v3921, %v4870
  %4872 = vmatmul.f32.gmra.mxu0 %v4089
  %v4873 = vpop.f32.mrf.mxu0
  %v4874 = vadd.f32 %v3921, %v4873
  %4875 = vmatmul.f32.gmra.mxu0 %v4092
  %v4876 = vpop.f32.mrf.mxu0
  %v4877 = vadd.f32 %v3921, %v4876
  %4878 = vmatmul.f32.gmra.mxu0 %v4095
  %v4879 = vpop.f32.mrf.mxu0
  %v4880 = vadd.f32 %v3921, %v4879
  %4881 = vmatmul.f32.gmra.mxu0 %v4098
  %v4882 = vpop.f32.mrf.mxu0
  %v4883 = vadd.f32 %v3921, %v4882
  %4884 = vmatmul.f32.gmra.mxu0 %v4101
  %v4885 = vpop.f32.mrf.mxu0
  %v4886 = vadd.f32 %v3921, %v4885
  %4887 = vmatmul.f32.gmra.mxu0 %v4104
  %v4888 = vpop.f32.mrf.mxu0
  %v4889 = vadd.f32 %v3921, %v4888
  %4890 = vmatmul.f32.gmra.mxu0 %v4107
  %v4891 = vpop.f32.mrf.mxu0
  %v4892 = vadd.f32 %v3921, %v4891
  %4893 = vmatmul.f32.gmra.mxu0 %v4110
  %v4894 = vpop.f32.mrf.mxu0
  %v4895 = vadd.f32 %v3921, %v4894
  %4896 = vmatmul.f32.gmra.mxu0 %v4113
  %v4897 = vpop.f32.mrf.mxu0
  %v4898 = vadd.f32 %v3921, %v4897
  %4899 = vmatmul.f32.gmra.mxu0 %v4116
  %v4900 = vpop.f32.mrf.mxu0
  %v4901 = vadd.f32 %v3921, %v4900
  %4902 = vmatmul.f32.gmra.mxu0 %v4119
  %v4903 = vpop.f32.mrf.mxu0
  %v4904 = vadd.f32 %v3921, %v4903
  %4905 = vmatmul.f32.gmra.mxu0 %v4122
  %v4906 = vpop.f32.mrf.mxu0
  %v4907 = vadd.f32 %v3921, %v4906
  %4908 = vmatmul.f32.gmra.mxu0 %v4125
  %v4909 = vpop.f32.mrf.mxu0
  %v4910 = vadd.f32 %v3921, %v4909
  %4911 = vmatmul.f32.gmra.mxu0 %v4128
  %v4912 = vpop.f32.mrf.mxu0
  %v4913 = vadd.f32 %v3921, %v4912
  %4914 = vmatmul.f32.gmra.mxu0 %v4131
  %v4915 = vpop.f32.mrf.mxu0
  %v4916 = vadd.f32 %v3921, %v4915
  %4917 = vmatmul.f32.gmra.mxu0 %v4134
  %v4918 = vpop.f32.mrf.mxu0
  %v4919 = vadd.f32 %v3921, %v4918
  %4920 = vmatmul.f32.gmra.mxu0 %v4137
  %v4921 = vpop.f32.mrf.mxu0
  %v4922 = vadd.f32 %v3921, %v4921
  %4923 = vmatmul.f32.gmra.mxu0 %v4140
  %v4924 = vpop.f32.mrf.mxu0
  %v4925 = vadd.f32 %v3921, %v4924
  %4926 = vmatmul.f32.gmra.mxu0 %v4143
  %v4927 = vpop.f32.mrf.mxu0
  %v4928 = vadd.f32 %v3921, %v4927
  %4929 = vmatmul.f32.gmra.mxu0 %v4146
  %v4930 = vpop.f32.mrf.mxu0
  %v4931 = vadd.f32 %v3921, %v4930
  %4932 = vmatmul.f32.gmra.mxu0 %v4149
  %v4933 = vpop.f32.mrf.mxu0
  %v4934 = vadd.f32 %v3921, %v4933
  %4935 = vmatmul.f32.gmra.mxu0 %v4152
  %v4936 = vpop.f32.mrf.mxu0
  %v4937 = vadd.f32 %v3921, %v4936
  %4938 = vmatmul.f32.gmra.mxu0 %v4155
  %v4939 = vpop.f32.mrf.mxu0
  %v4940 = vadd.f32 %v3921, %v4939
  %4941 = vmatmul.f32.gmra.mxu0 %v4158
  %v4942 = vpop.f32.mrf.mxu0
  %v4943 = vadd.f32 %v3921, %v4942
  %4944 = vmatmul.f32.gmra.mxu0 %v4161
  %v4945 = vpop.f32.mrf.mxu0
  %v4946 = vadd.f32 %v3921, %v4945
  %4947 = vmatmul.f32.gmra.mxu0 %v4164
  %v4948 = vpop.f32.mrf.mxu0
  %v4949 = vadd.f32 %v3921, %v4948
  %4950 = vmatmul.f32.gmra.mxu0 %v4167
  %v4951 = vpop.f32.mrf.mxu0
  %v4952 = vadd.f32 %v3921, %v4951
  %4953 = vmatmul.f32.gmra.mxu0 %v4170
  %v4954 = vpop.f32.mrf.mxu0
  %v4955 = vadd.f32 %v3921, %v4954
  %4956 = vmatmul.f32.gmra.mxu0 %v4173
  %v4957 = vpop.f32.mrf.mxu0
  %v4958 = vadd.f32 %v3921, %v4957
  %4959 = vmatmul.f32.gmra.mxu0 %v4176
  %v4960 = vpop.f32.mrf.mxu0
  %v4961 = vadd.f32 %v3921, %v4960
  %4962 = vmatmul.f32.gmra.mxu0 %v4179
  %v4963 = vpop.f32.mrf.mxu0
  %v4964 = vadd.f32 %v3921, %v4963
  %4965 = vmatmul.f32.gmra.mxu0 %v4182
  %v4966 = vpop.f32.mrf.mxu0
  %v4967 = vadd.f32 %v3921, %v4966
  %4968 = vmatmul.f32.gmra.mxu0 %v4185
  %v4969 = vpop.f32.mrf.mxu0
  %v4970 = vadd.f32 %v3921, %v4969
  %4971 = vmatmul.f32.gmra.mxu0 %v4188
  %v4972 = vpop.f32.mrf.mxu0
  %v4973 = vadd.f32 %v3921, %v4972
  %4974 = vmatmul.f32.gmra.mxu0 %v4191
  %v4975 = vpop.f32.mrf.mxu0
  %v4976 = vadd.f32 %v3921, %v4975
  %4977 = vmatmul.f32.gmra.mxu0 %v4194
  %v4978 = vpop.f32.mrf.mxu0
  %v4979 = vadd.f32 %v3921, %v4978
  %4980 = vmatmul.f32.gmra.mxu0 %v4197
  %v4981 = vpop.f32.mrf.mxu0
  %v4982 = vadd.f32 %v3921, %v4981
  %4983 = vmatmul.f32.gmra.mxu0 %v4200
  %v4984 = vpop.f32.mrf.mxu0
  %v4985 = vadd.f32 %v3921, %v4984
  %4986 = vmatmul.f32.gmra.mxu0 %v4203
  %v4987 = vpop.f32.mrf.mxu0
  %v4988 = vadd.f32 %v3921, %v4987
  %4989 = vmatmul.f32.gmra.mxu0 %v4206
  %v4990 = vpop.f32.mrf.mxu0
  %v4991 = vadd.f32 %v3921, %v4990
  %4992 = vmatmul.f32.gmra.mxu0 %v4209
  %v4993 = vpop.f32.mrf.mxu0
  %v4994 = vadd.f32 %v3921, %v4993
  %4995 = vmatmul.f32.gmra.mxu0 %v4212
  %v4996 = vpop.f32.mrf.mxu0
  %v4997 = vadd.f32 %v3921, %v4996
  %4998 = vmatmul.f32.gmra.mxu0 %v4215
  %v4999 = vpop.f32.mrf.mxu0
  %v5000 = vadd.f32 %v3921, %v4999
  %5001 = vmatmul.f32.gmra.mxu0 %v4218
  %v5002 = vpop.f32.mrf.mxu0
  %v5003 = vadd.f32 %v3921, %v5002
  %5004 = vmatmul.f32.gmra.mxu0 %v4221
  %v5005 = vpop.f32.mrf.mxu0
  %v5006 = vadd.f32 %v3921, %v5005
  %5007 = vmatmul.f32.gmra.mxu0 %v4224
  %v5008 = vpop.f32.mrf.mxu0
  %v5009 = vadd.f32 %v3921, %v5008
  %5010 = vmatmul.f32.gmra.mxu0 %v4227
  %v5011 = vpop.f32.mrf.mxu0
  %v5012 = vadd.f32 %v3921, %v5011
  %5013 = vmatmul.f32.gmra.mxu0 %v4230
  %v5014 = vpop.f32.mrf.mxu0
  %v5015 = vadd.f32 %v3921, %v5014
  %5016 = vmatmul.f32.gmra.mxu0 %v4233
  %v5017 = vpop.f32.mrf.mxu0
  %v5018 = vadd.f32 %v3921, %v5017
  %5019 = vmatmul.f32.gmra.mxu0 %v4236
  %v5020 = vpop.f32.mrf.mxu0
  %v5021 = vadd.f32 %v3921, %v5020
  %5022 = vmatmul.f32.gmra.mxu0 %v4239
  %v5023 = vpop.f32.mrf.mxu0
  %v5024 = vadd.f32 %v3921, %v5023
  %5025 = vmatmul.f32.gmra.mxu0 %v4242
  %v5026 = vpop.f32.mrf.mxu0
  %v5027 = vadd.f32 %v3921, %v5026
  %5028 = vmatmul.f32.gmra.mxu0 %v4245
  %v5029 = vpop.f32.mrf.mxu0
  %v5030 = vadd.f32 %v3921, %v5029
  %5031 = vmatmul.f32.gmra.mxu0 %v4248
  %v5032 = vpop.f32.mrf.mxu0
  %v5033 = vadd.f32 %v3921, %v5032
  %5034 = vmatmul.f32.gmra.mxu0 %v4251
  %v5035 = vpop.f32.mrf.mxu0
  %v5036 = vadd.f32 %v3921, %v5035
  %5037 = vmatmul.f32.gmra.mxu0 %v4254
  %v5038 = vpop.f32.mrf.mxu0
  %v5039 = vadd.f32 %v3921, %v5038
  %5040 = vmatmul.f32.gmra.mxu0 %v4257
  %v5041 = vpop.f32.mrf.mxu0
  %v5042 = vadd.f32 %v3921, %v5041
  %5043 = vmatmul.f32.gmra.mxu0 %v4260
  %v5044 = vpop.f32.mrf.mxu0
  %v5045 = vadd.f32 %v3921, %v5044
  %5046 = vmatmul.f32.gmra.mxu0 %v4263
  %v5047 = vpop.f32.mrf.mxu0
  %v5048 = vadd.f32 %v3921, %v5047
  %5049 = vmatmul.f32.gmra.mxu0 %v4266
  %v5050 = vpop.f32.mrf.mxu0
  %v5051 = vadd.f32 %v3921, %v5050
  %5052 = vmatmul.f32.gmra.mxu0 %v4269
  %v5053 = vpop.f32.mrf.mxu0
  %v5054 = vadd.f32 %v3921, %v5053
  %5055 = vmatmul.f32.gmra.mxu0 %v4272
  %v5056 = vpop.f32.mrf.mxu0
  %v5057 = vadd.f32 %v3921, %v5056
  %5058 = vmatmul.f32.gmra.mxu0 %v4275
  %v5059 = vpop.f32.mrf.mxu0
  %v5060 = vadd.f32 %v3921, %v5059
  %5061 = vmatmul.f32.gmra.mxu0 %v4278
  %v5062 = vpop.f32.mrf.mxu0
  %v5063 = vadd.f32 %v3921, %v5062
  %5064 = vmatmul.f32.gmra.mxu0 %v4281
  %v5065 = vpop.f32.mrf.mxu0
  %v5066 = vadd.f32 %v3921, %v5065
  %5067 = vmatmul.f32.gmra.mxu0 %v4284
  %v5068 = vpop.f32.mrf.mxu0
  %v5069 = vadd.f32 %v3921, %v5068
  %5070 = vmatmul.f32.gmra.mxu0 %v4287
  %v5071 = vpop.f32.mrf.mxu0
  %v5072 = vadd.f32 %v3921, %v5071
  %5073 = vmatmul.f32.gmra.mxu0 %v4290
  %v5074 = vpop.f32.mrf.mxu0
  %v5075 = vadd.f32 %v3921, %v5074
  %5076 = vmatmul.f32.gmra.mxu0 %v4293
  %v5077 = vpop.f32.mrf.mxu0
  %v5078 = vadd.f32 %v3921, %v5077
  %5079 = vmatmul.f32.gmra.mxu0 %v4296
  %v5080 = vpop.f32.mrf.mxu0
  %v5081 = vadd.f32 %v3921, %v5080
  %5082 = vmatmul.f32.gmra.mxu0 %v4299
  %v5083 = vpop.f32.mrf.mxu0
  %v5084 = vadd.f32 %v3921, %v5083
  %5085 = vmatmul.f32.gmra.mxu0 %v4302
  %v5086 = vpop.f32.mrf.mxu0
  %v5087 = vadd.f32 %v3921, %v5086
  %5088 = vmatmul.f32.gmra.mxu0 %v4305
  %v5089 = vpop.f32.mrf.mxu0
  %v5090 = vadd.f32 %v3921, %v5089
  %5091 = vmatmul.f32.gmra.mxu0 %v4308
  %v5092 = vpop.f32.mrf.mxu0
  %v5093 = vadd.f32 %v3921, %v5092
  %5094 = vmatmul.f32.gmra.mxu0 %v4311
  %v5095 = vpop.f32.mrf.mxu0
  %v5096 = vadd.f32 %v3921, %v5095
  %5097 = vmatmul.f32.gmra.mxu0 %v4314
  %v5098 = vpop.f32.mrf.mxu0
  %v5099 = vadd.f32 %v3921, %v5098
  %5100 = vmatmul.f32.gmra.mxu0 %v4317
  %v5101 = vpop.f32.mrf.mxu0
  %v5102 = vadd.f32 %v3921, %v5101
  %5103 = vmatmul.f32.gmra.mxu0 %v4320
  %v5104 = vpop.f32.mrf.mxu0
  %v5105 = vadd.f32 %v3921, %v5104
  %5106 = vmatmul.f32.gmra.mxu0 %v4323
  %v5107 = vpop.f32.mrf.mxu0
  %v5108 = vadd.f32 %v3921, %v5107
  %5109 = vmatmul.f32.gmra.mxu0 %v4326
  %v5110 = vpop.f32.mrf.mxu0
  %v5111 = vadd.f32 %v3921, %v5110
  %5112 = vmatmul.f32.gmra.mxu0 %v4329
  %v5113 = vpop.f32.mrf.mxu0
  %v5114 = vadd.f32 %v3921, %v5113
  %5115 = vmatmul.f32.gmra.mxu0 %v4332
  %v5116 = vpop.f32.mrf.mxu0
  %v5117 = vadd.f32 %v3921, %v5116
  %5118 = vmatmul.f32.gmra.mxu0 %v4335
  %v5119 = vpop.f32.mrf.mxu0
  %v5120 = vadd.f32 %v3921, %v5119
  %5121 = vmatmul.f32.gmra.mxu0 %v4338
  %v5122 = vpop.f32.mrf.mxu0
  %v5123 = vadd.f32 %v3921, %v5122
  %5124 = vmatmul.f32.gmra.mxu0 %v4341
  %v5125 = vpop.f32.mrf.mxu0
  %v5126 = vadd.f32 %v3921, %v5125
  %5127 = vmatmul.f32.gmra.mxu0 %v4344
  %v5128 = vpop.f32.mrf.mxu0
  %v5129 = vadd.f32 %v3921, %v5128
  %5130 = vmatmul.f32.gmra.mxu0 %v4347
  %v5131 = vpop.f32.mrf.mxu0
  %v5132 = vadd.f32 %v3921, %v5131
  %5133 = vmatmul.f32.gmra.mxu0 %v4350
  %v5134 = vpop.f32.mrf.mxu0
  %v5135 = vadd.f32 %v3921, %v5134
  %5136 = vmatmul.f32.gmra.mxu0 %v4353
  %v5137 = vpop.f32.mrf.mxu0
  %v5138 = vadd.f32 %v3921, %v5137
  %5139 = vmatmul.f32.gmra.mxu0 %v4356
  %v5140 = vpop.f32.mrf.mxu0
  %v5141 = vadd.f32 %v3921, %v5140
  %5142 = vmatmul.f32.gmra.mxu0 %v4359
  %v5143 = vpop.f32.mrf.mxu0
  %v5144 = vadd.f32 %v3921, %v5143
  %5145 = vmatmul.f32.gmra.mxu0 %v4362
  %v5146 = vpop.f32.mrf.mxu0
  %v5147 = vadd.f32 %v3921, %v5146
  %5148 = vmatmul.f32.gmra.mxu0 %v4365
  %v5149 = vpop.f32.mrf.mxu0
  %v5150 = vadd.f32 %v3921, %v5149
  %5151 = vmatmul.f32.gmra.mxu0 %v4368
  %v5152 = vpop.f32.mrf.mxu0
  %v5153 = vadd.f32 %v3921, %v5152
  %5154 = vmatmul.f32.gmra.mxu0 %v4371
  %v5155 = vpop.f32.mrf.mxu0
  %v5156 = vadd.f32 %v3921, %v5155
  %5157 = vmatmul.f32.gmra.mxu0 %v4374
  %v5158 = vpop.f32.mrf.mxu0
  %v5159 = vadd.f32 %v3921, %v5158
  %5160 = vmatmul.f32.gmra.mxu0 %v4377
  %v5161 = vpop.f32.mrf.mxu0
  %v5162 = vadd.f32 %v3921, %v5161
  %5163 = vmatmul.f32.gmra.mxu0 %v4380
  %v5164 = vpop.f32.mrf.mxu0
  %v5165 = vadd.f32 %v3921, %v5164
  %5166 = vmatmul.f32.gmra.mxu0 %v4383
  %v5167 = vpop.f32.mrf.mxu0
  %v5168 = vadd.f32 %v3921, %v5167
  %5169 = vmatmul.f32.gmra.mxu0 %v4386
  %v5170 = vpop.f32.mrf.mxu0
  %v5171 = vadd.f32 %v3921, %v5170
  %5172 = vmatmul.f32.gmra.mxu0 %v4389
  %v5173 = vpop.f32.mrf.mxu0
  %v5174 = vadd.f32 %v3921, %v5173
  %5175 = vmatmul.f32.gmra.mxu0 %v4392
  %v5176 = vpop.f32.mrf.mxu0
  %v5177 = vadd.f32 %v3921, %v5176
  %5178 = vmatmul.f32.gmra.mxu0 %v4395
  %v5179 = vpop.f32.mrf.mxu0
  %v5180 = vadd.f32 %v3921, %v5179
  %5181 = vmatmul.f32.gmra.mxu0 %v4398
  %v5182 = vpop.f32.mrf.mxu0
  %v5183 = vadd.f32 %v3921, %v5182
  %5184 = vmatmul.f32.gmra.mxu0 %v4401
  %v5185 = vpop.f32.mrf.mxu0
  %v5186 = vadd.f32 %v3921, %v5185
  %5187 = vmatmul.f32.gmra.mxu0 %v4404
  %v5188 = vpop.f32.mrf.mxu0
  %v5189 = vadd.f32 %v3921, %v5188
  %5190 = vmatmul.f32.gmra.mxu0 %v4407
  %v5191 = vpop.f32.mrf.mxu0
  %v5192 = vadd.f32 %v3921, %v5191
  %5193 = vmatmul.f32.gmra.mxu0 %v4410
  %v5194 = vpop.f32.mrf.mxu0
  %v5195 = vadd.f32 %v3921, %v5194
  %5196 = vmatmul.f32.gmra.mxu0 %v4413
  %v5197 = vpop.f32.mrf.mxu0
  %v5198 = vadd.f32 %v3921, %v5197
  %5199 = vmatmul.f32.gmra.mxu0 %v4416
  %v5200 = vpop.f32.mrf.mxu0
  %v5201 = vadd.f32 %v3921, %v5200
  %5202 = vmatmul.f32.gmra.mxu0 %v4419
  %v5203 = vpop.f32.mrf.mxu0
  %v5204 = vadd.f32 %v3921, %v5203
  %5205 = vmatmul.f32.gmra.mxu0 %v4422
  %v5206 = vpop.f32.mrf.mxu0
  %v5207 = vadd.f32 %v3921, %v5206
  %5208 = vmatmul.f32.gmra.mxu0 %v4425
  %v5209 = vpop.f32.mrf.mxu0
  %v5210 = vadd.f32 %v3921, %v5209
  %5211 = vmatmul.f32.gmra.mxu0 %v4428
  %v5212 = vpop.f32.mrf.mxu0
  %v5213 = vadd.f32 %v3921, %v5212
  %5214 = vmatmul.f32.gmra.mxu0 %v4431
  %v5215 = vpop.f32.mrf.mxu0
  %v5216 = vadd.f32 %v3921, %v5215
  %5217 = vmatmul.f32.gmra.mxu0 %v4434
  %v5218 = vpop.f32.mrf.mxu0
  %v5219 = vadd.f32 %v3921, %v5218
  %5220 = vmatmul.f32.gmra.mxu0 %v4437
  %v5221 = vpop.f32.mrf.mxu0
  %v5222 = vadd.f32 %v3921, %v5221
  %5223 = vmatmul.f32.gmra.mxu0 %v4440
  %v5224 = vpop.f32.mrf.mxu0
  %v5225 = vadd.f32 %v3921, %v5224
  %5226 = vmatmul.f32.gmra.mxu0 %v4443
  %v5227 = vpop.f32.mrf.mxu0
  %v5228 = vadd.f32 %v3921, %v5227
  %5229 = vmatmul.f32.gmra.mxu0 %v4446
  %v5230 = vpop.f32.mrf.mxu0
  %v5231 = vadd.f32 %v3921, %v5230
  %5232 = vmatmul.f32.gmra.mxu0 %v4449
  %v5233 = vpop.f32.mrf.mxu0
  %v5234 = vadd.f32 %v3921, %v5233
  %5235 = vmatmul.f32.gmra.mxu0 %v4452
  %v5236 = vpop.f32.mrf.mxu0
  %v5237 = vadd.f32 %v3921, %v5236
  %5238 = vmatmul.f32.gmra.mxu0 %v4455
  %v5239 = vpop.f32.mrf.mxu0
  %v5240 = vadd.f32 %v3921, %v5239
  %5241 = vmatmul.f32.gmra.mxu0 %v4458
  %v5242 = vpop.f32.mrf.mxu0
  %v5243 = vadd.f32 %v3921, %v5242
  %5244 = vmatmul.f32.gmra.mxu0 %v4461
  %v5245 = vpop.f32.mrf.mxu0
  %v5246 = vadd.f32 %v3921, %v5245
  %5247 = vmatmul.f32.gmra.mxu0 %v4464
  %v5248 = vpop.f32.mrf.mxu0
  %v5249 = vadd.f32 %v3921, %v5248
  %5250 = vmatmul.f32.gmra.mxu0 %v4467
  %v5251 = vpop.f32.mrf.mxu0
  %v5252 = vadd.f32 %v3921, %v5251
  %5253 = vmatmul.f32.gmra.mxu0 %v4470
  %v5254 = vpop.f32.mrf.mxu0
  %v5255 = vadd.f32 %v3921, %v5254
  %5256 = vmatmul.f32.gmra.mxu0 %v4473
  %v5257 = vpop.f32.mrf.mxu0
  %v5258 = vadd.f32 %v3921, %v5257
  %5259 = vmatmul.f32.gmra.mxu0 %v4476
  %v5260 = vpop.f32.mrf.mxu0
  %v5261 = vadd.f32 %v3921, %v5260
  %5262 = vmatmul.f32.gmra.mxu0 %v4479
  %v5263 = vpop.f32.mrf.mxu0
  %v5264 = vadd.f32 %v3921, %v5263
  %5265 = vmatmul.f32.gmra.mxu0 %v4482
  %v5266 = vpop.f32.mrf.mxu0
  %v5267 = vadd.f32 %v3921, %v5266
  %5268 = vmatmul.f32.gmra.mxu0 %v4485
  %v5269 = vpop.f32.mrf.mxu0
  %v5270 = vadd.f32 %v3921, %v5269
  %5271 = vmatmul.f32.gmra.mxu0 %v4488
  %v5272 = vpop.f32.mrf.mxu0
  %v5273 = vadd.f32 %v3921, %v5272
  %5274 = vmatmul.f32.gmra.mxu0 %v4491
  %v5275 = vpop.f32.mrf.mxu0
  %v5276 = vadd.f32 %v3921, %v5275
  %5277 = vmatmul.f32.gmra.mxu0 %v4494
  %v5278 = vpop.f32.mrf.mxu0
  %v5279 = vadd.f32 %v3921, %v5278
  %5280 = vmatmul.f32.gmra.mxu0 %v4497
  %v5281 = vpop.f32.mrf.mxu0
  %v5282 = vadd.f32 %v3921, %v5281
  %5283 = vmatmul.f32.gmra.mxu0 %v4500
  %v5284 = vpop.f32.mrf.mxu0
  %v5285 = vadd.f32 %v3921, %v5284
  %5286 = vmatmul.f32.gmra.mxu0 %v4503
  %v5287 = vpop.f32.mrf.mxu0
  %v5288 = vadd.f32 %v3921, %v5287
  %5289 = vmatmul.f32.gmra.mxu0 %v4506
  %v5290 = vpop.f32.mrf.mxu0
  %v5291 = vadd.f32 %v3921, %v5290
  %5292 = vmatmul.f32.gmra.mxu0 %v4509
  %v5293 = vpop.f32.mrf.mxu0
  %v5294 = vadd.f32 %v3921, %v5293
  %5295 = vmatmul.f32.gmra.mxu0 %v4512
  %v5296 = vpop.f32.mrf.mxu0
  %v5297 = vadd.f32 %v3921, %v5296
  %5298 = vmatmul.f32.gmra.mxu0 %v4515
  %v5299 = vpop.f32.mrf.mxu0
  %v5300 = vadd.f32 %v3921, %v5299
  %5301 = vmatmul.f32.gmra.mxu0 %v4518
  %v5302 = vpop.f32.mrf.mxu0
  %v5303 = vadd.f32 %v3921, %v5302
  %5304 = vmatmul.f32.gmra.mxu0 %v4521
  %v5305 = vpop.f32.mrf.mxu0
  %v5306 = vadd.f32 %v3921, %v5305
  %5307 = vmatmul.f32.gmra.mxu0 %v4524
  %v5308 = vpop.f32.mrf.mxu0
  %v5309 = vadd.f32 %v3921, %v5308
  %5310 = vmatmul.f32.gmra.mxu0 %v4527
  %v5311 = vpop.f32.mrf.mxu0
  %v5312 = vadd.f32 %v3921, %v5311
  %5313 = vmatmul.f32.gmra.mxu0 %v4530
  %v5314 = vpop.f32.mrf.mxu0
  %v5315 = vadd.f32 %v3921, %v5314
  %5316 = vmatmul.f32.gmra.mxu0 %v4533
  %v5317 = vpop.f32.mrf.mxu0
  %v5318 = vadd.f32 %v3921, %v5317
  %5319 = vmatmul.f32.gmra.mxu0 %v4536
  %v5320 = vpop.f32.mrf.mxu0
  %v5321 = vadd.f32 %v3921, %v5320
  %5322 = vmatmul.f32.gmra.mxu0 %v4539
  %v5323 = vpop.f32.mrf.mxu0
  %v5324 = vadd.f32 %v3921, %v5323
  %5325 = vmatmul.f32.gmra.mxu0 %v4542
  %v5326 = vpop.f32.mrf.mxu0
  %v5327 = vadd.f32 %v3921, %v5326
  %5328 = vmatmul.f32.gmra.mxu0 %v4545
  %v5329 = vpop.f32.mrf.mxu0
  %v5330 = vadd.f32 %v3921, %v5329
  %5331 = vmatmul.f32.gmra.mxu0 %v4548
  %v5332 = vpop.f32.mrf.mxu0
  %v5333 = vadd.f32 %v3921, %v5332
  %5334 = vmatmul.f32.gmra.mxu0 %v4551
  %v5335 = vpop.f32.mrf.mxu0
  %v5336 = vadd.f32 %v3921, %v5335
  %5337 = vmatmul.f32.gmra.mxu0 %v4554
  %v5338 = vpop.f32.mrf.mxu0
  %v5339 = vadd.f32 %v3921, %v5338
  %5340 = vmatmul.f32.gmra.mxu0 %v4557
  %v5341 = vpop.f32.mrf.mxu0
  %v5342 = vadd.f32 %v3921, %v5341
  %5343 = vmatmul.f32.gmra.mxu0 %v4560
  %v5344 = vpop.f32.mrf.mxu0
  %v5345 = vadd.f32 %v3921, %v5344
  %5346 = vmatmul.f32.gmra.mxu0 %v4563
  %v5347 = vpop.f32.mrf.mxu0
  %v5348 = vadd.f32 %v3921, %v5347
  %5349 = vmatmul.f32.gmra.mxu0 %v4566
  %v5350 = vpop.f32.mrf.mxu0
  %v5351 = vadd.f32 %v3921, %v5350
  %5352 = vmatmul.f32.gmra.mxu0 %v4569
  %v5353 = vpop.f32.mrf.mxu0
  %v5354 = vadd.f32 %v3921, %v5353
  %5355 = vmatmul.f32.gmra.mxu0 %v4572
  %v5356 = vpop.f32.mrf.mxu0
  %v5357 = vadd.f32 %v3921, %v5356
  %5358 = vmatmul.f32.gmra.mxu0 %v4575
  %v5359 = vpop.f32.mrf.mxu0
  %v5360 = vadd.f32 %v3921, %v5359
  %5361 = vmatmul.f32.gmra.mxu0 %v4578
  %v5362 = vpop.f32.mrf.mxu0
  %v5363 = vadd.f32 %v3921, %v5362
  %5364 = vmatmul.f32.gmra.mxu0 %v4581
  %v5365 = vpop.f32.mrf.mxu0
  %v5366 = vadd.f32 %v3921, %v5365
  %5367 = vmatmul.f32.gmra.mxu0 %v4584
  %v5368 = vpop.f32.mrf.mxu0
  %v5369 = vadd.f32 %v3921, %v5368
  %5370 = vmatmul.f32.gmra.mxu0 %v4587
  %v5371 = vpop.f32.mrf.mxu0
  %v5372 = vadd.f32 %v3921, %v5371
  %5373 = vmatmul.f32.gmra.mxu0 %v4590
  %v5374 = vpop.f32.mrf.mxu0
  %v5375 = vadd.f32 %v3921, %v5374
  %5376 = vmatmul.f32.gmra.mxu0 %v4593
  %v5377 = vpop.f32.mrf.mxu0
  %v5378 = vadd.f32 %v3921, %v5377
  %5379 = vmatmul.f32.gmra.mxu0 %v4596
  %v5380 = vpop.f32.mrf.mxu0
  %v5381 = vadd.f32 %v3921, %v5380
  %5382 = vmatmul.f32.gmra.mxu0 %v4599
  %v5383 = vpop.f32.mrf.mxu0
  %v5384 = vadd.f32 %v3921, %v5383
  %5385 = vmatmul.f32.gmra.mxu0 %v4602
  %v5386 = vpop.f32.mrf.mxu0
  %v5387 = vadd.f32 %v3921, %v5386
  %5388 = vmatmul.f32.gmra.mxu0 %v4605
  %v5389 = vpop.f32.mrf.mxu0
  %v5390 = vadd.f32 %v3921, %v5389
  %5391 = vmatmul.f32.gmra.mxu0 %v4608
  %v5392 = vpop.f32.mrf.mxu0
  %v5393 = vadd.f32 %v3921, %v5392
  %5394 = vmatmul.f32.gmra.mxu0 %v4611
  %v5395 = vpop.f32.mrf.mxu0
  %v5396 = vadd.f32 %v3921, %v5395
  %5397 = vmatmul.f32.gmra.mxu0 %v4614
  %v5398 = vpop.f32.mrf.mxu0
  %v5399 = vadd.f32 %v3921, %v5398
  %5400 = vmatmul.f32.gmra.mxu0 %v4617
  %v5401 = vpop.f32.mrf.mxu0
  %v5402 = vadd.f32 %v3921, %v5401
  %5403 = vmatmul.f32.gmra.mxu0 %v4620
  %v5404 = vpop.f32.mrf.mxu0
  %v5405 = vadd.f32 %v3921, %v5404
  %5406 = vmatmul.f32.gmra.mxu0 %v4623
  %v5407 = vpop.f32.mrf.mxu0
  %v5408 = vadd.f32 %v3921, %v5407
  %5409 = vmatmul.f32.gmra.mxu0 %v4626
  %v5410 = vpop.f32.mrf.mxu0
  %v5411 = vadd.f32 %v3921, %v5410
  %5412 = vmatmul.f32.gmra.mxu0 %v4629
  %v5413 = vpop.f32.mrf.mxu0
  %v5414 = vadd.f32 %v3921, %v5413
  %5415 = vmatmul.f32.gmra.mxu0 %v4632
  %v5416 = vpop.f32.mrf.mxu0
  %v5417 = vadd.f32 %v3921, %v5416
  %5418 = vmatmul.f32.gmra.mxu0 %v4635
  %v5419 = vpop.f32.mrf.mxu0
  %v5420 = vadd.f32 %v3921, %v5419
  %5421 = vmatmul.f32.gmra.mxu0 %v4638
  %v5422 = vpop.f32.mrf.mxu0
  %v5423 = vadd.f32 %v3921, %v5422
  %5424 = vmatmul.f32.gmra.mxu0 %v4641
  %v5425 = vpop.f32.mrf.mxu0
  %v5426 = vadd.f32 %v3921, %v5425
  %5427 = vmatmul.f32.gmra.mxu0 %v4644
  %v5428 = vpop.f32.mrf.mxu0
  %v5429 = vadd.f32 %v3921, %v5428
  %5430 = vmatmul.f32.gmra.mxu0 %v4647
  %v5431 = vpop.f32.mrf.mxu0
  %v5432 = vadd.f32 %v3921, %v5431
  %5433 = vmatmul.f32.gmra.mxu0 %v4650
  %v5434 = vpop.f32.mrf.mxu0
  %v5435 = vadd.f32 %v3921, %v5434
  %5436 = vmatmul.f32.gmra.mxu0 %v4653
  %v5437 = vpop.f32.mrf.mxu0
  %v5438 = vadd.f32 %v3921, %v5437
  %5439 = vmatmul.f32.gmra.mxu0 %v4656
  %v5440 = vpop.f32.mrf.mxu0
  %v5441 = vadd.f32 %v3921, %v5440
  %5442 = vmatmul.f32.gmra.mxu0 %v4659
  %v5443 = vpop.f32.mrf.mxu0
  %v5444 = vadd.f32 %v3921, %v5443
  %5445 = vmatmul.f32.gmra.mxu0 %v4662
  %v5446 = vpop.f32.mrf.mxu0
  %v5447 = vadd.f32 %v3921, %v5446
  %5448 = vmatmul.f32.gmra.mxu0 %v4665
  %v5449 = vpop.f32.mrf.mxu0
  %v5450 = vadd.f32 %v3921, %v5449
  %5451 = vmatmul.f32.gmra.mxu0 %v4668
  %v5452 = vpop.f32.mrf.mxu0
  %v5453 = vadd.f32 %v3921, %v5452
  %5454 = vmatmul.f32.gmra.mxu0 %v4671
  %v5455 = vpop.f32.mrf.mxu0
  %v5456 = vadd.f32 %v3921, %v5455
  %5457 = vmatmul.f32.gmra.mxu0 %v4674
  %v5458 = vpop.f32.mrf.mxu0
  %v5459 = vadd.f32 %v3921, %v5458
  %5460 = vmatmul.f32.gmra.mxu0 %v4677
  %v5461 = vpop.f32.mrf.mxu0
  %v5462 = vadd.f32 %v3921, %v5461
  %5463 = vmatmul.f32.gmra.mxu0 %v4680
  %v5464 = vpop.f32.mrf.mxu0
  %v5465 = vadd.f32 %v3921, %v5464
  %5466 = vmatmul.f32.gmra.mxu0 %v4683
  %v5467 = vpop.f32.mrf.mxu0
  %v5468 = vadd.f32 %v3921, %v5467
  %5469 = vmatmul.f32.gmra.mxu0 %v4686
  %v5470 = vpop.f32.mrf.mxu0
  %v5471 = vadd.f32 %v3921, %v5470
  %5472 = vmatmul.f32.gmra.mxu0 %v4689
  %v5473 = vpop.f32.mrf.mxu0
  %v5474 = vadd.f32 %v3921, %v5473
  %5475 = vdwg.mxu0
  %vm5476 = vcmask 48128
  %5477 = vst.msk [vmem:[%s7] sm:$0xff] %vm5476, %v4709
  %5478 = vst.msk [vmem:[%s7 + $0x8] sm:$0xff] %vm5476, %v4712
  %5479 = vst.msk [vmem:[%s7 + $0x10] sm:$0xff] %vm5476, %v4715
  %5480 = vst.msk [vmem:[%s7 + $0x18] sm:$0xff] %vm5476, %v4718
  %5481 = vst.msk [vmem:[%s7 + $0x20] sm:$0xff] %vm5476, %v4721
  %5482 = vst.msk [vmem:[%s7 + $0x28] sm:$0xff] %vm5476, %v4724
  %5483 = vst.msk [vmem:[%s7 + $0x30] sm:$0xff] %vm5476, %v4727
  %5484 = vst.msk [vmem:[%s7 + $0x38] sm:$0xff] %vm5476, %v4730
  %5485 = vst.msk [vmem:[%s7 + $0x40] sm:$0xff] %vm5476, %v4733
  %5486 = vst.msk [vmem:[%s7 + $0x48] sm:$0xff] %vm5476, %v4736
  %5487 = vst.msk [vmem:[%s7 + $0x50] sm:$0xff] %vm5476, %v4739
  %5488 = vst.msk [vmem:[%s7 + $0x58] sm:$0xff] %vm5476, %v4742
  %5489 = vst.msk [vmem:[%s7 + $0x60] sm:$0xff] %vm5476, %v4745
  %5490 = vst.msk [vmem:[%s7 + $0x68] sm:$0xff] %vm5476, %v4748
  %5491 = vst.msk [vmem:[%s7 + $0x70] sm:$0xff] %vm5476, %v4751
  %5492 = vst.msk [vmem:[%s7 + $0x78] sm:$0xff] %vm5476, %v4754
  %5493 = vst.msk [vmem:[%s7 + $0x80] sm:$0xff] %vm5476, %v4757
  %5494 = vst.msk [vmem:[%s7 + $0x88] sm:$0xff] %vm5476, %v4760
  %5495 = vst.msk [vmem:[%s7 + $0x90] sm:$0xff] %vm5476, %v4763
  %5496 = vst.msk [vmem:[%s7 + $0x98] sm:$0xff] %vm5476, %v4766
  %5497 = vst.msk [vmem:[%s7 + $0xa0] sm:$0xff] %vm5476, %v4769
  %5498 = vst.msk [vmem:[%s7 + $0xa8] sm:$0xff] %vm5476, %v4772
  %5499 = vst.msk [vmem:[%s7 + $0xb0] sm:$0xff] %vm5476, %v4775
  %5500 = vst.msk [vmem:[%s7 + $0xb8] sm:$0xff] %vm5476, %v4778
  %5501 = vst.msk [vmem:[%s7 + $0xc0] sm:$0xff] %vm5476, %v4781
  %5502 = vst.msk [vmem:[%s7 + $0xc8] sm:$0xff] %vm5476, %v4784
  %5503 = vst.msk [vmem:[%s7 + $0xd0] sm:$0xff] %vm5476, %v4787
  %5504 = vst.msk [vmem:[%s7 + $0xd8] sm:$0xff] %vm5476, %v4790
  %5505 = vst.msk [vmem:[%s7 + $0xe0] sm:$0xff] %vm5476, %v4793
  %5506 = vst.msk [vmem:[%s7 + $0xe8] sm:$0xff] %vm5476, %v4796
  %5507 = vst.msk [vmem:[%s7 + $0xf0] sm:$0xff] %vm5476, %v4799
  %5508 = vst.msk [vmem:[%s7 + $0xf8] sm:$0xff] %vm5476, %v4802
  %5509 = vst.msk [vmem:[%s7 + $0x100] sm:$0xff] %vm5476, %v4805
  %5510 = vst.msk [vmem:[%s7 + $0x108] sm:$0xff] %vm5476, %v4808
  %5511 = vst.msk [vmem:[%s7 + $0x110] sm:$0xff] %vm5476, %v4811
  %5512 = vst.msk [vmem:[%s7 + $0x118] sm:$0xff] %vm5476, %v4814
  %5513 = vst.msk [vmem:[%s7 + $0x120] sm:$0xff] %vm5476, %v4817
  %5514 = vst.msk [vmem:[%s7 + $0x128] sm:$0xff] %vm5476, %v4820
  %5515 = vst.msk [vmem:[%s7 + $0x130] sm:$0xff] %vm5476, %v4823
  %5516 = vst.msk [vmem:[%s7 + $0x138] sm:$0xff] %vm5476, %v4826
  %5517 = vst.msk [vmem:[%s7 + $0x140] sm:$0xff] %vm5476, %v4829
  %5518 = vst.msk [vmem:[%s7 + $0x148] sm:$0xff] %vm5476, %v4832
  %5519 = vst.msk [vmem:[%s7 + $0x150] sm:$0xff] %vm5476, %v4835
  %5520 = vst.msk [vmem:[%s7 + $0x158] sm:$0xff] %vm5476, %v4838
  %5521 = vst.msk [vmem:[%s7 + $0x160] sm:$0xff] %vm5476, %v4841
  %5522 = vst.msk [vmem:[%s7 + $0x168] sm:$0xff] %vm5476, %v4844
  %5523 = vst.msk [vmem:[%s7 + $0x170] sm:$0xff] %vm5476, %v4847
  %5524 = vst.msk [vmem:[%s7 + $0x178] sm:$0xff] %vm5476, %v4850
  %5525 = vst.msk [vmem:[%s7 + $0x180] sm:$0xff] %vm5476, %v4853
  %5526 = vst.msk [vmem:[%s7 + $0x188] sm:$0xff] %vm5476, %v4856
  %5527 = vst.msk [vmem:[%s7 + $0x190] sm:$0xff] %vm5476, %v4859
  %5528 = vst.msk [vmem:[%s7 + $0x198] sm:$0xff] %vm5476, %v4862
  %5529 = vst.msk [vmem:[%s7 + $0x1a0] sm:$0xff] %vm5476, %v4865
  %5530 = vst.msk [vmem:[%s7 + $0x1a8] sm:$0xff] %vm5476, %v4868
  %5531 = vst.msk [vmem:[%s7 + $0x1b0] sm:$0xff] %vm5476, %v4871
  %5532 = vst.msk [vmem:[%s7 + $0x1b8] sm:$0xff] %vm5476, %v4874
  %5533 = vst.msk [vmem:[%s7 + $0x1c0] sm:$0xff] %vm5476, %v4877
  %5534 = vst.msk [vmem:[%s7 + $0x1c8] sm:$0xff] %vm5476, %v4880
  %5535 = vst.msk [vmem:[%s7 + $0x1d0] sm:$0xff] %vm5476, %v4883
  %5536 = vst.msk [vmem:[%s7 + $0x1d8] sm:$0xff] %vm5476, %v4886
  %5537 = vst.msk [vmem:[%s7 + $0x1e0] sm:$0xff] %vm5476, %v4889
  %5538 = vst.msk [vmem:[%s7 + $0x1e8] sm:$0xff] %vm5476, %v4892
  %5539 = vst.msk [vmem:[%s7 + $0x1f0] sm:$0xff] %vm5476, %v4895
  %5540 = vst.msk [vmem:[%s7 + $0x1f8] sm:$0xff] %vm5476, %v4898
  %5541 = vst.msk [vmem:[%s7 + $0x200] sm:$0xff] %vm5476, %v4901
  %5542 = vst.msk [vmem:[%s7 + $0x208] sm:$0xff] %vm5476, %v4904
  %5543 = vst.msk [vmem:[%s7 + $0x210] sm:$0xff] %vm5476, %v4907
  %5544 = vst.msk [vmem:[%s7 + $0x218] sm:$0xff] %vm5476, %v4910
  %5545 = vst.msk [vmem:[%s7 + $0x220] sm:$0xff] %vm5476, %v4913
  %5546 = vst.msk [vmem:[%s7 + $0x228] sm:$0xff] %vm5476, %v4916
  %5547 = vst.msk [vmem:[%s7 + $0x230] sm:$0xff] %vm5476, %v4919
  %5548 = vst.msk [vmem:[%s7 + $0x238] sm:$0xff] %vm5476, %v4922
  %5549 = vst.msk [vmem:[%s7 + $0x240] sm:$0xff] %vm5476, %v4925
  %5550 = vst.msk [vmem:[%s7 + $0x248] sm:$0xff] %vm5476, %v4928
  %5551 = vst.msk [vmem:[%s7 + $0x250] sm:$0xff] %vm5476, %v4931
  %5552 = vst.msk [vmem:[%s7 + $0x258] sm:$0xff] %vm5476, %v4934
  %5553 = vst.msk [vmem:[%s7 + $0x260] sm:$0xff] %vm5476, %v4937
  %5554 = vst.msk [vmem:[%s7 + $0x268] sm:$0xff] %vm5476, %v4940
  %5555 = vst.msk [vmem:[%s7 + $0x270] sm:$0xff] %vm5476, %v4943
  %5556 = vst.msk [vmem:[%s7 + $0x278] sm:$0xff] %vm5476, %v4946
  %5557 = vst.msk [vmem:[%s7 + $0x280] sm:$0xff] %vm5476, %v4949
  %5558 = vst.msk [vmem:[%s7 + $0x288] sm:$0xff] %vm5476, %v4952
  %5559 = vst.msk [vmem:[%s7 + $0x290] sm:$0xff] %vm5476, %v4955
  %5560 = vst.msk [vmem:[%s7 + $0x298] sm:$0xff] %vm5476, %v4958
  %5561 = vst.msk [vmem:[%s7 + $0x2a0] sm:$0xff] %vm5476, %v4961
  %5562 = vst.msk [vmem:[%s7 + $0x2a8] sm:$0xff] %vm5476, %v4964
  %5563 = vst.msk [vmem:[%s7 + $0x2b0] sm:$0xff] %vm5476, %v4967
  %5564 = vst.msk [vmem:[%s7 + $0x2b8] sm:$0xff] %vm5476, %v4970
  %5565 = vst.msk [vmem:[%s7 + $0x2c0] sm:$0xff] %vm5476, %v4973
  %5566 = vst.msk [vmem:[%s7 + $0x2c8] sm:$0xff] %vm5476, %v4976
  %5567 = vst.msk [vmem:[%s7 + $0x2d0] sm:$0xff] %vm5476, %v4979
  %5568 = vst.msk [vmem:[%s7 + $0x2d8] sm:$0xff] %vm5476, %v4982
  %5569 = vst.msk [vmem:[%s7 + $0x2e0] sm:$0xff] %vm5476, %v4985
  %5570 = vst.msk [vmem:[%s7 + $0x2e8] sm:$0xff] %vm5476, %v4988
  %5571 = vst.msk [vmem:[%s7 + $0x2f0] sm:$0xff] %vm5476, %v4991
  %5572 = vst.msk [vmem:[%s7 + $0x2f8] sm:$0xff] %vm5476, %v4994
  %5573 = vst.msk [vmem:[%s7 + $0x300] sm:$0xff] %vm5476, %v4997
  %5574 = vst.msk [vmem:[%s7 + $0x308] sm:$0xff] %vm5476, %v5000
  %5575 = vst.msk [vmem:[%s7 + $0x310] sm:$0xff] %vm5476, %v5003
  %5576 = vst.msk [vmem:[%s7 + $0x318] sm:$0xff] %vm5476, %v5006
  %5577 = vst.msk [vmem:[%s7 + $0x320] sm:$0xff] %vm5476, %v5009
  %5578 = vst.msk [vmem:[%s7 + $0x328] sm:$0xff] %vm5476, %v5012
  %5579 = vst.msk [vmem:[%s7 + $0x330] sm:$0xff] %vm5476, %v5015
  %5580 = vst.msk [vmem:[%s7 + $0x338] sm:$0xff] %vm5476, %v5018
  %5581 = vst.msk [vmem:[%s7 + $0x340] sm:$0xff] %vm5476, %v5021
  %5582 = vst.msk [vmem:[%s7 + $0x348] sm:$0xff] %vm5476, %v5024
  %5583 = vst.msk [vmem:[%s7 + $0x350] sm:$0xff] %vm5476, %v5027
  %5584 = vst.msk [vmem:[%s7 + $0x358] sm:$0xff] %vm5476, %v5030
  %5585 = vst.msk [vmem:[%s7 + $0x360] sm:$0xff] %vm5476, %v5033
  %5586 = vst.msk [vmem:[%s7 + $0x368] sm:$0xff] %vm5476, %v5036
  %5587 = vst.msk [vmem:[%s7 + $0x370] sm:$0xff] %vm5476, %v5039
  %5588 = vst.msk [vmem:[%s7 + $0x378] sm:$0xff] %vm5476, %v5042
  %5589 = vst.msk [vmem:[%s7 + $0x380] sm:$0xff] %vm5476, %v5045
  %5590 = vst.msk [vmem:[%s7 + $0x388] sm:$0xff] %vm5476, %v5048
  %5591 = vst.msk [vmem:[%s7 + $0x390] sm:$0xff] %vm5476, %v5051
  %5592 = vst.msk [vmem:[%s7 + $0x398] sm:$0xff] %vm5476, %v5054
  %5593 = vst.msk [vmem:[%s7 + $0x3a0] sm:$0xff] %vm5476, %v5057
  %5594 = vst.msk [vmem:[%s7 + $0x3a8] sm:$0xff] %vm5476, %v5060
  %5595 = vst.msk [vmem:[%s7 + $0x3b0] sm:$0xff] %vm5476, %v5063
  %5596 = vst.msk [vmem:[%s7 + $0x3b8] sm:$0xff] %vm5476, %v5066
  %5597 = vst.msk [vmem:[%s7 + $0x3c0] sm:$0xff] %vm5476, %v5069
  %5598 = vst.msk [vmem:[%s7 + $0x3c8] sm:$0xff] %vm5476, %v5072
  %5599 = vst.msk [vmem:[%s7 + $0x3d0] sm:$0xff] %vm5476, %v5075
  %5600 = vst.msk [vmem:[%s7 + $0x3d8] sm:$0xff] %vm5476, %v5078
  %5601 = vst.msk [vmem:[%s7 + $0x3e0] sm:$0xff] %vm5476, %v5081
  %5602 = vst.msk [vmem:[%s7 + $0x3e8] sm:$0xff] %vm5476, %v5084
  %5603 = vst.msk [vmem:[%s7 + $0x3f0] sm:$0xff] %vm5476, %v5087
  %5604 = vst.msk [vmem:[%s7 + $0x3f8] sm:$0xff] %vm5476, %v5090
  %5605 = vst.msk [vmem:[%s7 + $0x400] sm:$0xff] %vm5476, %v5093
  %5606 = vst.msk [vmem:[%s7 + $0x408] sm:$0xff] %vm5476, %v5096
  %5607 = vst.msk [vmem:[%s7 + $0x410] sm:$0xff] %vm5476, %v5099
  %5608 = vst.msk [vmem:[%s7 + $0x418] sm:$0xff] %vm5476, %v5102
  %5609 = vst.msk [vmem:[%s7 + $0x420] sm:$0xff] %vm5476, %v5105
  %5610 = vst.msk [vmem:[%s7 + $0x428] sm:$0xff] %vm5476, %v5108
  %5611 = vst.msk [vmem:[%s7 + $0x430] sm:$0xff] %vm5476, %v5111
  %5612 = vst.msk [vmem:[%s7 + $0x438] sm:$0xff] %vm5476, %v5114
  %5613 = vst.msk [vmem:[%s7 + $0x440] sm:$0xff] %vm5476, %v5117
  %5614 = vst.msk [vmem:[%s7 + $0x448] sm:$0xff] %vm5476, %v5120
  %5615 = vst.msk [vmem:[%s7 + $0x450] sm:$0xff] %vm5476, %v5123
  %5616 = vst.msk [vmem:[%s7 + $0x458] sm:$0xff] %vm5476, %v5126
  %5617 = vst.msk [vmem:[%s7 + $0x460] sm:$0xff] %vm5476, %v5129
  %5618 = vst.msk [vmem:[%s7 + $0x468] sm:$0xff] %vm5476, %v5132
  %5619 = vst.msk [vmem:[%s7 + $0x470] sm:$0xff] %vm5476, %v5135
  %5620 = vst.msk [vmem:[%s7 + $0x478] sm:$0xff] %vm5476, %v5138
  %5621 = vst.msk [vmem:[%s7 + $0x480] sm:$0xff] %vm5476, %v5141
  %5622 = vst.msk [vmem:[%s7 + $0x488] sm:$0xff] %vm5476, %v5144
  %5623 = vst.msk [vmem:[%s7 + $0x490] sm:$0xff] %vm5476, %v5147
  %5624 = vst.msk [vmem:[%s7 + $0x498] sm:$0xff] %vm5476, %v5150
  %5625 = vst.msk [vmem:[%s7 + $0x4a0] sm:$0xff] %vm5476, %v5153
  %5626 = vst.msk [vmem:[%s7 + $0x4a8] sm:$0xff] %vm5476, %v5156
  %5627 = vst.msk [vmem:[%s7 + $0x4b0] sm:$0xff] %vm5476, %v5159
  %5628 = vst.msk [vmem:[%s7 + $0x4b8] sm:$0xff] %vm5476, %v5162
  %5629 = vst.msk [vmem:[%s7 + $0x4c0] sm:$0xff] %vm5476, %v5165
  %5630 = vst.msk [vmem:[%s7 + $0x4c8] sm:$0xff] %vm5476, %v5168
  %5631 = vst.msk [vmem:[%s7 + $0x4d0] sm:$0xff] %vm5476, %v5171
  %5632 = vst.msk [vmem:[%s7 + $0x4d8] sm:$0xff] %vm5476, %v5174
  %5633 = vst.msk [vmem:[%s7 + $0x4e0] sm:$0xff] %vm5476, %v5177
  %5634 = vst.msk [vmem:[%s7 + $0x4e8] sm:$0xff] %vm5476, %v5180
  %5635 = vst.msk [vmem:[%s7 + $0x4f0] sm:$0xff] %vm5476, %v5183
  %5636 = vst.msk [vmem:[%s7 + $0x4f8] sm:$0xff] %vm5476, %v5186
  %5637 = vst.msk [vmem:[%s7 + $0x500] sm:$0xff] %vm5476, %v5189
  %5638 = vst.msk [vmem:[%s7 + $0x508] sm:$0xff] %vm5476, %v5192
  %5639 = vst.msk [vmem:[%s7 + $0x510] sm:$0xff] %vm5476, %v5195
  %5640 = vst.msk [vmem:[%s7 + $0x518] sm:$0xff] %vm5476, %v5198
  %5641 = vst.msk [vmem:[%s7 + $0x520] sm:$0xff] %vm5476, %v5201
  %5642 = vst.msk [vmem:[%s7 + $0x528] sm:$0xff] %vm5476, %v5204
  %5643 = vst.msk [vmem:[%s7 + $0x530] sm:$0xff] %vm5476, %v5207
  %5644 = vst.msk [vmem:[%s7 + $0x538] sm:$0xff] %vm5476, %v5210
  %5645 = vst.msk [vmem:[%s7 + $0x540] sm:$0xff] %vm5476, %v5213
  %5646 = vst.msk [vmem:[%s7 + $0x548] sm:$0xff] %vm5476, %v5216
  %5647 = vst.msk [vmem:[%s7 + $0x550] sm:$0xff] %vm5476, %v5219
  %5648 = vst.msk [vmem:[%s7 + $0x558] sm:$0xff] %vm5476, %v5222
  %5649 = vst.msk [vmem:[%s7 + $0x560] sm:$0xff] %vm5476, %v5225
  %5650 = vst.msk [vmem:[%s7 + $0x568] sm:$0xff] %vm5476, %v5228
  %5651 = vst.msk [vmem:[%s7 + $0x570] sm:$0xff] %vm5476, %v5231
  %5652 = vst.msk [vmem:[%s7 + $0x578] sm:$0xff] %vm5476, %v5234
  %5653 = vst.msk [vmem:[%s7 + $0x580] sm:$0xff] %vm5476, %v5237
  %5654 = vst.msk [vmem:[%s7 + $0x588] sm:$0xff] %vm5476, %v5240
  %5655 = vst.msk [vmem:[%s7 + $0x590] sm:$0xff] %vm5476, %v5243
  %5656 = vst.msk [vmem:[%s7 + $0x598] sm:$0xff] %vm5476, %v5246
  %5657 = vst.msk [vmem:[%s7 + $0x5a0] sm:$0xff] %vm5476, %v5249
  %5658 = vst.msk [vmem:[%s7 + $0x5a8] sm:$0xff] %vm5476, %v5252
  %5659 = vst.msk [vmem:[%s7 + $0x5b0] sm:$0xff] %vm5476, %v5255
  %5660 = vst.msk [vmem:[%s7 + $0x5b8] sm:$0xff] %vm5476, %v5258
  %5661 = vst.msk [vmem:[%s7 + $0x5c0] sm:$0xff] %vm5476, %v5261
  %5662 = vst.msk [vmem:[%s7 + $0x5c8] sm:$0xff] %vm5476, %v5264
  %5663 = vst.msk [vmem:[%s7 + $0x5d0] sm:$0xff] %vm5476, %v5267
  %5664 = vst.msk [vmem:[%s7 + $0x5d8] sm:$0xff] %vm5476, %v5270
  %5665 = vst.msk [vmem:[%s7 + $0x5e0] sm:$0xff] %vm5476, %v5273
  %5666 = vst.msk [vmem:[%s7 + $0x5e8] sm:$0xff] %vm5476, %v5276
  %5667 = vst.msk [vmem:[%s7 + $0x5f0] sm:$0xff] %vm5476, %v5279
  %5668 = vst.msk [vmem:[%s7 + $0x5f8] sm:$0xff] %vm5476, %v5282
  %5669 = vst.msk [vmem:[%s7 + $0x600] sm:$0xff] %vm5476, %v5285
  %5670 = vst.msk [vmem:[%s7 + $0x608] sm:$0xff] %vm5476, %v5288
  %5671 = vst.msk [vmem:[%s7 + $0x610] sm:$0xff] %vm5476, %v5291
  %5672 = vst.msk [vmem:[%s7 + $0x618] sm:$0xff] %vm5476, %v5294
  %5673 = vst.msk [vmem:[%s7 + $0x620] sm:$0xff] %vm5476, %v5297
  %5674 = vst.msk [vmem:[%s7 + $0x628] sm:$0xff] %vm5476, %v5300
  %5675 = vst.msk [vmem:[%s7 + $0x630] sm:$0xff] %vm5476, %v5303
  %5676 = vst.msk [vmem:[%s7 + $0x638] sm:$0xff] %vm5476, %v5306
  %5677 = vst.msk [vmem:[%s7 + $0x640] sm:$0xff] %vm5476, %v5309
  %5678 = vst.msk [vmem:[%s7 + $0x648] sm:$0xff] %vm5476, %v5312
  %5679 = vst.msk [vmem:[%s7 + $0x650] sm:$0xff] %vm5476, %v5315
  %5680 = vst.msk [vmem:[%s7 + $0x658] sm:$0xff] %vm5476, %v5318
  %5681 = vst.msk [vmem:[%s7 + $0x660] sm:$0xff] %vm5476, %v5321
  %5682 = vst.msk [vmem:[%s7 + $0x668] sm:$0xff] %vm5476, %v5324
  %5683 = vst.msk [vmem:[%s7 + $0x670] sm:$0xff] %vm5476, %v5327
  %5684 = vst.msk [vmem:[%s7 + $0x678] sm:$0xff] %vm5476, %v5330
  %5685 = vst.msk [vmem:[%s7 + $0x680] sm:$0xff] %vm5476, %v5333
  %5686 = vst.msk [vmem:[%s7 + $0x688] sm:$0xff] %vm5476, %v5336
  %5687 = vst.msk [vmem:[%s7 + $0x690] sm:$0xff] %vm5476, %v5339
  %5688 = vst.msk [vmem:[%s7 + $0x698] sm:$0xff] %vm5476, %v5342
  %5689 = vst.msk [vmem:[%s7 + $0x6a0] sm:$0xff] %vm5476, %v5345
  %5690 = vst.msk [vmem:[%s7 + $0x6a8] sm:$0xff] %vm5476, %v5348
  %5691 = vst.msk [vmem:[%s7 + $0x6b0] sm:$0xff] %vm5476, %v5351
  %5692 = vst.msk [vmem:[%s7 + $0x6b8] sm:$0xff] %vm5476, %v5354
  %5693 = vst.msk [vmem:[%s7 + $0x6c0] sm:$0xff] %vm5476, %v5357
  %5694 = vst.msk [vmem:[%s7 + $0x6c8] sm:$0xff] %vm5476, %v5360
  %5695 = vst.msk [vmem:[%s7 + $0x6d0] sm:$0xff] %vm5476, %v5363
  %5696 = vst.msk [vmem:[%s7 + $0x6d8] sm:$0xff] %vm5476, %v5366
  %5697 = vst.msk [vmem:[%s7 + $0x6e0] sm:$0xff] %vm5476, %v5369
  %5698 = vst.msk [vmem:[%s7 + $0x6e8] sm:$0xff] %vm5476, %v5372
  %5699 = vst.msk [vmem:[%s7 + $0x6f0] sm:$0xff] %vm5476, %v5375
  %5700 = vst.msk [vmem:[%s7 + $0x6f8] sm:$0xff] %vm5476, %v5378
  %5701 = vst.msk [vmem:[%s7 + $0x700] sm:$0xff] %vm5476, %v5381
  %5702 = vst.msk [vmem:[%s7 + $0x708] sm:$0xff] %vm5476, %v5384
  %5703 = vst.msk [vmem:[%s7 + $0x710] sm:$0xff] %vm5476, %v5387
  %5704 = vst.msk [vmem:[%s7 + $0x718] sm:$0xff] %vm5476, %v5390
  %5705 = vst.msk [vmem:[%s7 + $0x720] sm:$0xff] %vm5476, %v5393
  %5706 = vst.msk [vmem:[%s7 + $0x728] sm:$0xff] %vm5476, %v5396
  %5707 = vst.msk [vmem:[%s7 + $0x730] sm:$0xff] %vm5476, %v5399
  %5708 = vst.msk [vmem:[%s7 + $0x738] sm:$0xff] %vm5476, %v5402
  %5709 = vst.msk [vmem:[%s7 + $0x740] sm:$0xff] %vm5476, %v5405
  %5710 = vst.msk [vmem:[%s7 + $0x748] sm:$0xff] %vm5476, %v5408
  %5711 = vst.msk [vmem:[%s7 + $0x750] sm:$0xff] %vm5476, %v5411
  %5712 = vst.msk [vmem:[%s7 + $0x758] sm:$0xff] %vm5476, %v5414
  %5713 = vst.msk [vmem:[%s7 + $0x760] sm:$0xff] %vm5476, %v5417
  %5714 = vst.msk [vmem:[%s7 + $0x768] sm:$0xff] %vm5476, %v5420
  %5715 = vst.msk [vmem:[%s7 + $0x770] sm:$0xff] %vm5476, %v5423
  %5716 = vst.msk [vmem:[%s7 + $0x778] sm:$0xff] %vm5476, %v5426
  %5717 = vst.msk [vmem:[%s7 + $0x780] sm:$0xff] %vm5476, %v5429
  %5718 = vst.msk [vmem:[%s7 + $0x788] sm:$0xff] %vm5476, %v5432
  %5719 = vst.msk [vmem:[%s7 + $0x790] sm:$0xff] %vm5476, %v5435
  %5720 = vst.msk [vmem:[%s7 + $0x798] sm:$0xff] %vm5476, %v5438
  %5721 = vst.msk [vmem:[%s7 + $0x7a0] sm:$0xff] %vm5476, %v5441
  %5722 = vst.msk [vmem:[%s7 + $0x7a8] sm:$0xff] %vm5476, %v5444
  %5723 = vst.msk [vmem:[%s7 + $0x7b0] sm:$0xff] %vm5476, %v5447
  %5724 = vst.msk [vmem:[%s7 + $0x7b8] sm:$0xff] %vm5476, %v5450
  %5725 = vst.msk [vmem:[%s7 + $0x7c0] sm:$0xff] %vm5476, %v5453
  %5726 = vst.msk [vmem:[%s7 + $0x7c8] sm:$0xff] %vm5476, %v5456
  %5727 = vst.msk [vmem:[%s7 + $0x7d0] sm:$0xff] %vm5476, %v5459
  %5728 = vst.msk [vmem:[%s7 + $0x7d8] sm:$0xff] %vm5476, %v5462
  %5729 = vst.msk [vmem:[%s7 + $0x7e0] sm:$0xff] %vm5476, %v5465
  %5730 = vst.msk [vmem:[%s7 + $0x7e8] sm:$0xff] %vm5476, %v5468
  %5731 = vst.msk [vmem:[%s7 + $0x7f0] sm:$0xff] %vm5476, %v5471
  %5732 = vst.msk [vmem:[%s7 + $0x7f8] sm:$0xff] %vm5476, %v5474
  // Predicated region
  $region30: #{tpu_custom_call.1} parent=0 // pred_check
    _
  $region31: #{tpu_custom_call.1} parent=0 // pred_check_branch
    %5734 = sbr.rel (0) target = $region33
  $region32: #{tpu_custom_call.1} parent=0 // pred_region
    _
  $region33: #{tpu_custom_call.1} parent=0 // pred_fallthru
    _
  // Predicated region
  $region34: #{tpu_custom_call.1} parent=0 // pred_check
    _
  $region35: #{tpu_custom_call.1} parent=0 // pred_check_branch
    %5736 = sbr.rel (0) target = $region37
  $region36: #{tpu_custom_call.1} parent=0 // pred_region
    _
  $region37: #{tpu_custom_call.1} parent=0 // pred_fallthru
    _

</llo_original>
